<compile_context>
chip_gen: v7x
topology: tpu7x:2x2x1
jax: 0.10.0
libtpu: 0.0.40
codegen_flags: <defaults>
</compile_context>

<pallas_src>
import functools

import jax
import jax.numpy as jnp
from jax.experimental import pallas as pl
from jax.experimental.pallas import tpu as pltpu


def _mha_kernel(x_ref, wq_ref, bq_ref, wk_ref, bk_ref, wv_ref, bv_ref,
                wo_ref, bo_ref, o_ref, *, num_heads, d_k):
    """One grid step = one (Bt, S, D) batch tile. Scale is pre-folded into wq/bq."""
    bt, s, d = x_ref.shape

    # Flatten batch*seq so each projection is a single MXU matmul (M = Bt*S).
    # Operands keep their input dtype (bf16 OK); accumulation forced to f32.
    x = x_ref[...].reshape(bt * s, d)

    wq = wq_ref[...]
    wk = wk_ref[...]
    wv = wv_ref[...]
    wo = wo_ref[...]
    bq = bq_ref[...]
    bk = bk_ref[...]
    bv = bv_ref[...]
    bo = bo_ref[...]

    q = jnp.dot(x, wq, preferred_element_type=jnp.float32) + bq   # (Bt*S, D), pre-scaled
    k = jnp.dot(x, wk, preferred_element_type=jnp.float32) + bk
    v = jnp.dot(x, wv, preferred_element_type=jnp.float32) + bv

    # Per-batch views for attention (leading-dim reshape only; no relayout).
    q = q.reshape(bt, s, d)
    k = k.reshape(bt, s, d)
    v = v.reshape(bt, s, d)

    # Heads live in contiguous d_k-wide column slices.  Static Python unroll
    # over heads; each step is batched over Bt.  No concatenate, no explicit
    # transpose: scores contract on the last dim of both operands, and the
    # output projection is accumulated head-by-head.
    # TODO(synk): for large S, switch to a KV-tiled online-softmax (flash)
    # accumulator so the (S, S) scores never materialize in full.
    out = None
    for h in range(num_heads):
        lo = h * d_k
        qh = q[:, :, lo:lo + d_k]                                    # (Bt, S, d_k)
        kh = k[:, :, lo:lo + d_k]
        vh = v[:, :, lo:lo + d_k]

        scores = jnp.einsum("bqd,bkd->bqk", qh, kh,
                            preferred_element_type=jnp.float32)      # (Bt, S, S)

        # Numerically stable softmax; reciprocal on the (otherwise idle) EUP slot.
        m = jnp.max(scores, axis=-1, keepdims=True)
        e = jnp.exp(scores - m)
        attn = e * pl.reciprocal(jnp.sum(e, axis=-1, keepdims=True), approx=True)

        ctx = jnp.einsum("bqk,bkd->bqd", attn, vh,
                         preferred_element_type=jnp.float32)          # (Bt, S, d_k)

        wo_h = wo[lo:lo + d_k, :]                                     # (d_k, D) sublane slice
        contrib = jnp.dot(ctx.reshape(bt * s, d_k), wo_h,
                          preferred_element_type=jnp.float32)         # (Bt*S, D)
        out = contrib if out is None else out + contrib

    out = out + bo
    o_ref[...] = out.reshape(bt, s, d).astype(o_ref.dtype)


def _pick_batch_tile(batch, seq, target_rows=256):
    """Largest divisor of `batch` whose tile has at most ~target_rows rows (Bt*S)."""
    want = max(1, target_rows // max(seq, 1))
    bt = 1
    for cand in range(1, batch + 1):
        if batch % cand == 0 and cand <= want:
            bt = cand
    return bt


def _build_mha_call(B, S, D, Bt, num_heads, d_k, out_dtype, *, single_buffer_weights):
    # Weights/biases never change across the grid; single-buffer them so VMEM
    # isn't wasted on a second copy (matters for large D, esp. v7x's 64 MiB VMEM).
    if single_buffer_weights:
        const_mode = dict(pipeline_mode=pl.Buffered(1))
    else:
        const_mode = {}
    w_spec = pl.BlockSpec((D, D), lambda b: (0, 0), **const_mode)
    b_spec = pl.BlockSpec((1, D), lambda b: (0, 0), **const_mode)
    x_spec = pl.BlockSpec((Bt, S, D), lambda b: (b, 0, 0))
    o_spec = pl.BlockSpec((Bt, S, D), lambda b: (b, 0, 0))

    # TODO(synk): for very large D, tile the (D, D) weights over an output-column
    # grid axis (and/or use bf16 weights) instead of keeping them fully resident.
    kernel = functools.partial(_mha_kernel, num_heads=num_heads, d_k=d_k)

    return pl.pallas_call(
        kernel,
        out_shape=jax.ShapeDtypeStruct((B, S, D), out_dtype),
        grid_spec=pltpu.PrefetchScalarGridSpec(
            num_scalar_prefetch=0,
            grid=(B // Bt,),
            in_specs=[x_spec,
                      w_spec, b_spec,    # q
                      w_spec, b_spec,    # k
                      w_spec, b_spec,    # v
                      w_spec, b_spec],   # out
            out_specs=o_spec,
        ),
        compiler_params=pltpu.CompilerParams(
            dimension_semantics=("parallel",)),
    )


def multi_head_attention(x, params, *, num_heads):
    """x: (B, S, D).  params: dict of wq,bq,wk,bk,wv,bv,wo,bo (W: (D, D), b: (D,))."""
    B, S, D = x.shape
    assert D % num_heads == 0, "d_model must be divisible by num_heads"
    d_k = D // num_heads
    scale = float(d_k) ** (-0.5)

    # Fold the attention scale into the Q projection once (wrapper-side; free).
    wq = params["wq"] * scale
    bq = (params["bq"] * scale).reshape(1, D)
    bk = params["bk"].reshape(1, D)
    bv = params["bv"].reshape(1, D)
    bo = params["bo"].reshape(1, D)

    args = (x, wq, bq, params["wk"], bk, params["wv"], bv, params["wo"], bo)
    Bt = _pick_batch_tile(B, S)

    last_err = None
    for single_buffer in (True, False):
        try:
            call = _build_mha_call(B, S, D, Bt, num_heads, d_k, x.dtype,
                                   single_buffer_weights=single_buffer)
            return jax.block_until_ready(call(*args))
        except Exception as err:  # fall back to default double-buffered weights
            last_err = err
    raise last_err


def _reference(x, params, num_heads):
    """Pure-JAX reference mirroring the PyTorch forward (eval mode, mask=None)."""
    B, S, D = x.shape
    d_k = D // num_heads
    scale = d_k ** (-0.5)

    def proj(w, b):
        return x @ w + b

    q = proj(params["wq"], params["bq"]).reshape(B, S, num_heads, d_k).transpose(0, 2, 1, 3)
    k = proj(params["wk"], params["bk"]).reshape(B, S, num_heads, d_k).transpose(0, 2, 1, 3)
    v = proj(params["wv"], params["bv"]).reshape(B, S, num_heads, d_k).transpose(0, 2, 1, 3)
    scores = jnp.einsum("bhqd,bhkd->bhqk", q, k) * scale
    attn = jax.nn.softmax(scores, axis=-1)
    out = jnp.einsum("bhqk,bhkd->bhqd", attn, v)
    out = out.transpose(0, 2, 1, 3).reshape(B, S, D)
    return out @ params["wo"] + params["bo"]


if __name__ == "__main__":
    B, S, D, H = 2, 8, 32, 4

    key = jax.random.PRNGKey(0)
    ks = jax.random.split(key, 9)
    init = lambda k, shape: (jax.random.normal(k, shape, dtype=jnp.float32) * 0.05)

    params = {
        "wq": init(ks[0], (D, D)), "bq": init(ks[1], (D,)),
        "wk": init(ks[2], (D, D)), "bk": init(ks[3], (D,)),
        "wv": init(ks[4], (D, D)), "bv": init(ks[5], (D,)),
        "wo": init(ks[6], (D, D)), "bo": init(ks[7], (D,)),
    }
    x = jax.random.normal(ks[8], (B, S, D), dtype=jnp.float32)

    out = multi_head_attention(x, params, num_heads=H)
    out = jax.block_until_ready(out)

    ref = _reference(x, params, H)
    assert out.shape == (B, S, D)
    # Slightly looser tolerance: kernel softmax uses pl.reciprocal(approx=True).
    assert jnp.allclose(out, ref, atol=5e-3, rtol=5e-3), "mismatch vs reference"

    print("KERNEL_OK")
</pallas_src>

<mosaic_0001>
module attributes {stable_mosaic.version = 11 : i64} {
  func.func @_mha_kernel(%arg0: i32, %arg1: memref<2x8x32xf32, #tpu.memory_space<vmem>>, %arg2: memref<32x32xf32, #tpu.memory_space<vmem>>, %arg3: memref<1x32xf32, #tpu.memory_space<vmem>>, %arg4: memref<32x32xf32, #tpu.memory_space<vmem>>, %arg5: memref<1x32xf32, #tpu.memory_space<vmem>>, %arg6: memref<32x32xf32, #tpu.memory_space<vmem>>, %arg7: memref<1x32xf32, #tpu.memory_space<vmem>>, %arg8: memref<32x32xf32, #tpu.memory_space<vmem>>, %arg9: memref<1x32xf32, #tpu.memory_space<vmem>>, %arg10: memref<2x8x32xf32, #tpu.memory_space<vmem>>) attributes {dimension_semantics = [#tpu.dimension_semantics<parallel>], iteration_bounds = array<i64: 1>, scalar_prefetch = 0 : i64, scratch_operands = 0 : i64, tpu.core_type = #tpu.core_type<tc>, window_params = [{transform_indices = @transform_0, window_bounds = array<i64: 2, 8, 32>}, {pipeline_mode = #tpu.pipeline_mode<synchronous>, transform_indices = @transform_1, window_bounds = array<i64: 32, 32>}, {pipeline_mode = #tpu.pipeline_mode<synchronous>, transform_indices = @transform_2, window_bounds = array<i64: 1, 32>}, {pipeline_mode = #tpu.pipeline_mode<synchronous>, transform_indices = @transform_3, window_bounds = array<i64: 32, 32>}, {pipeline_mode = #tpu.pipeline_mode<synchronous>, transform_indices = @transform_4, window_bounds = array<i64: 1, 32>}, {pipeline_mode = #tpu.pipeline_mode<synchronous>, transform_indices = @transform_5, window_bounds = array<i64: 32, 32>}, {pipeline_mode = #tpu.pipeline_mode<synchronous>, transform_indices = @transform_6, window_bounds = array<i64: 1, 32>}, {pipeline_mode = #tpu.pipeline_mode<synchronous>, transform_indices = @transform_7, window_bounds = array<i64: 32, 32>}, {pipeline_mode = #tpu.pipeline_mode<synchronous>, transform_indices = @transform_8, window_bounds = array<i64: 1, 32>}, {transform_indices = @transform_9, window_bounds = array<i64: 2, 8, 32>}]} {
    %c0 = arith.constant 0 : index
    %c0_0 = arith.constant 0 : index
    %c0_1 = arith.constant 0 : index
    %0 = vector.load %arg1[%c0, %c0_0, %c0_1] : memref<2x8x32xf32, #tpu.memory_space<vmem>>, vector<2x8x32xf32>
    %1 = vector.shape_cast %0 : vector<2x8x32xf32> to vector<16x32xf32>
    %c0_2 = arith.constant 0 : index
    %c0_3 = arith.constant 0 : index
    %2 = vector.load %arg2[%c0_2, %c0_3] : memref<32x32xf32, #tpu.memory_space<vmem>>, vector<32x32xf32>
    %c0_4 = arith.constant 0 : index
    %c0_5 = arith.constant 0 : index
    %3 = vector.load %arg4[%c0_4, %c0_5] : memref<32x32xf32, #tpu.memory_space<vmem>>, vector<32x32xf32>
    %c0_6 = arith.constant 0 : index
    %c0_7 = arith.constant 0 : index
    %4 = vector.load %arg6[%c0_6, %c0_7] : memref<32x32xf32, #tpu.memory_space<vmem>>, vector<32x32xf32>
    %c0_8 = arith.constant 0 : index
    %c0_9 = arith.constant 0 : index
    %5 = vector.load %arg8[%c0_8, %c0_9] : memref<32x32xf32, #tpu.memory_space<vmem>>, vector<32x32xf32>
    %c0_10 = arith.constant 0 : index
    %c0_11 = arith.constant 0 : index
    %6 = vector.load %arg3[%c0_10, %c0_11] : memref<1x32xf32, #tpu.memory_space<vmem>>, vector<1x32xf32>
    %c0_12 = arith.constant 0 : index
    %c0_13 = arith.constant 0 : index
    %7 = vector.load %arg5[%c0_12, %c0_13] : memref<1x32xf32, #tpu.memory_space<vmem>>, vector<1x32xf32>
    %c0_14 = arith.constant 0 : index
    %c0_15 = arith.constant 0 : index
    %8 = vector.load %arg7[%c0_14, %c0_15] : memref<1x32xf32, #tpu.memory_space<vmem>>, vector<1x32xf32>
    %c0_16 = arith.constant 0 : index
    %c0_17 = arith.constant 0 : index
    %9 = vector.load %arg9[%c0_16, %c0_17] : memref<1x32xf32, #tpu.memory_space<vmem>>, vector<1x32xf32>
    %cst = arith.constant dense<0.000000e+00> : vector<16x32xf32>
    %10 = tpu.matmul %1, %2, %cst {dimension_numbers = #tpu.dot_dimension_numbers<[1], [0], [0], [1], [0, 0, 1, 1], [], []>} : vector<16x32xf32>, vector<32x32xf32>, vector<16x32xf32> -> vector<16x32xf32>
    %11 = vector.broadcast %6 : vector<1x32xf32> to vector<16x32xf32>
    %12 = arith.addf %10, %11 : vector<16x32xf32>
    %cst_18 = arith.constant dense<0.000000e+00> : vector<16x32xf32>
    %13 = tpu.matmul %1, %3, %cst_18 {dimension_numbers = #tpu.dot_dimension_numbers<[1], [0], [0], [1], [0, 0, 1, 1], [], []>} : vector<16x32xf32>, vector<32x32xf32>, vector<16x32xf32> -> vector<16x32xf32>
    %14 = vector.broadcast %7 : vector<1x32xf32> to vector<16x32xf32>
    %15 = arith.addf %13, %14 : vector<16x32xf32>
    %cst_19 = arith.constant dense<0.000000e+00> : vector<16x32xf32>
    %16 = tpu.matmul %1, %4, %cst_19 {dimension_numbers = #tpu.dot_dimension_numbers<[1], [0], [0], [1], [0, 0, 1, 1], [], []>} : vector<16x32xf32>, vector<32x32xf32>, vector<16x32xf32> -> vector<16x32xf32>
    %17 = vector.broadcast %8 : vector<1x32xf32> to vector<16x32xf32>
    %18 = arith.addf %16, %17 : vector<16x32xf32>
    %19 = vector.shape_cast %12 : vector<16x32xf32> to vector<2x8x32xf32>
    %20 = vector.shape_cast %15 : vector<16x32xf32> to vector<2x8x32xf32>
    %21 = vector.shape_cast %18 : vector<16x32xf32> to vector<2x8x32xf32>
    %22 = vector.extract_strided_slice %19 {offsets = [0, 0, 0], sizes = [2, 8, 8], strides = [1, 1, 1]} : vector<2x8x32xf32> to vector<2x8x8xf32>
    %23 = vector.extract_strided_slice %20 {offsets = [0, 0, 0], sizes = [2, 8, 8], strides = [1, 1, 1]} : vector<2x8x32xf32> to vector<2x8x8xf32>
    %24 = vector.extract_strided_slice %21 {offsets = [0, 0, 0], sizes = [2, 8, 8], strides = [1, 1, 1]} : vector<2x8x32xf32> to vector<2x8x8xf32>
    "tpu.trace_start"() <{level = 10 : i32, message = "bqd,bkd->bqk"}> : () -> ()
    %cst_20 = arith.constant dense<0.000000e+00> : vector<2x8x8xf32>
    %25 = tpu.matmul %22, %23, %cst_20 {dimension_numbers = #tpu.dot_dimension_numbers<[2], [2], [1], [1], [0, 0, 0, 1, 1, 1], [0], [0]>} : vector<2x8x8xf32>, vector<2x8x8xf32>, vector<2x8x8xf32> -> vector<2x8x8xf32>
    "tpu.trace_stop"() : () -> ()
    %cst_21 = arith.constant dense<0xFF800000> : vector<2x8xf32>
    %26 = vector.multi_reduction <maximumf>, %25, %cst_21 [2] : vector<2x8x8xf32> to vector<2x8xf32>
    %27 = vector.shape_cast %26 : vector<2x8xf32> to vector<2x8x1xf32>
    %28 = vector.broadcast %27 : vector<2x8x1xf32> to vector<2x8x8xf32>
    %29 = arith.subf %25, %28 : vector<2x8x8xf32>
    %30 = math.exp %29 : vector<2x8x8xf32>
    %cst_22 = arith.constant dense<0.000000e+00> : vector<2x8xf32>
    %31 = vector.multi_reduction <add>, %30, %cst_22 [2] : vector<2x8x8xf32> to vector<2x8xf32>
    %32 = vector.shape_cast %31 : vector<2x8xf32> to vector<2x8x1xf32>
    %33 = tpu.reciprocal %32 {approx = true} : vector<2x8x1xf32> -> vector<2x8x1xf32>
    %34 = vector.broadcast %33 : vector<2x8x1xf32> to vector<2x8x8xf32>
    %35 = arith.mulf %30, %34 : vector<2x8x8xf32>
    "tpu.trace_start"() <{level = 10 : i32, message = "bqk,bkd->bqd"}> : () -> ()
    %cst_23 = arith.constant dense<0.000000e+00> : vector<2x8x8xf32>
    %36 = tpu.matmul %35, %24, %cst_23 {dimension_numbers = #tpu.dot_dimension_numbers<[2], [1], [1], [2], [0, 0, 0, 1, 1, 2], [0], [0]>} : vector<2x8x8xf32>, vector<2x8x8xf32>, vector<2x8x8xf32> -> vector<2x8x8xf32>
    "tpu.trace_stop"() : () -> ()
    %37 = vector.extract_strided_slice %5 {offsets = [0, 0], sizes = [8, 32], strides = [1, 1]} : vector<32x32xf32> to vector<8x32xf32>
    %38 = vector.shape_cast %36 : vector<2x8x8xf32> to vector<16x8xf32>
    %cst_24 = arith.constant dense<0.000000e+00> : vector<16x32xf32>
    %39 = tpu.matmul %38, %37, %cst_24 {dimension_numbers = #tpu.dot_dimension_numbers<[1], [0], [0], [1], [0, 0, 1, 1], [], []>} : vector<16x8xf32>, vector<8x32xf32>, vector<16x32xf32> -> vector<16x32xf32>
    %40 = vector.extract_strided_slice %19 {offsets = [0, 0, 8], sizes = [2, 8, 8], strides = [1, 1, 1]} : vector<2x8x32xf32> to vector<2x8x8xf32>
    %41 = vector.extract_strided_slice %20 {offsets = [0, 0, 8], sizes = [2, 8, 8], strides = [1, 1, 1]} : vector<2x8x32xf32> to vector<2x8x8xf32>
    %42 = vector.extract_strided_slice %21 {offsets = [0, 0, 8], sizes = [2, 8, 8], strides = [1, 1, 1]} : vector<2x8x32xf32> to vector<2x8x8xf32>
    "tpu.trace_start"() <{level = 10 : i32, message = "bqd,bkd->bqk"}> : () -> ()
    %cst_25 = arith.constant dense<0.000000e+00> : vector<2x8x8xf32>
    %43 = tpu.matmul %40, %41, %cst_25 {dimension_numbers = #tpu.dot_dimension_numbers<[2], [2], [1], [1], [0, 0, 0, 1, 1, 1], [0], [0]>} : vector<2x8x8xf32>, vector<2x8x8xf32>, vector<2x8x8xf32> -> vector<2x8x8xf32>
    "tpu.trace_stop"() : () -> ()
    %cst_26 = arith.constant dense<0xFF800000> : vector<2x8xf32>
    %44 = vector.multi_reduction <maximumf>, %43, %cst_26 [2] : vector<2x8x8xf32> to vector<2x8xf32>
    %45 = vector.shape_cast %44 : vector<2x8xf32> to vector<2x8x1xf32>
    %46 = vector.broadcast %45 : vector<2x8x1xf32> to vector<2x8x8xf32>
    %47 = arith.subf %43, %46 : vector<2x8x8xf32>
    %48 = math.exp %47 : vector<2x8x8xf32>
    %cst_27 = arith.constant dense<0.000000e+00> : vector<2x8xf32>
    %49 = vector.multi_reduction <add>, %48, %cst_27 [2] : vector<2x8x8xf32> to vector<2x8xf32>
    %50 = vector.shape_cast %49 : vector<2x8xf32> to vector<2x8x1xf32>
    %51 = tpu.reciprocal %50 {approx = true} : vector<2x8x1xf32> -> vector<2x8x1xf32>
    %52 = vector.broadcast %51 : vector<2x8x1xf32> to vector<2x8x8xf32>
    %53 = arith.mulf %48, %52 : vector<2x8x8xf32>
    "tpu.trace_start"() <{level = 10 : i32, message = "bqk,bkd->bqd"}> : () -> ()
    %cst_28 = arith.constant dense<0.000000e+00> : vector<2x8x8xf32>
    %54 = tpu.matmul %53, %42, %cst_28 {dimension_numbers = #tpu.dot_dimension_numbers<[2], [1], [1], [2], [0, 0, 0, 1, 1, 2], [0], [0]>} : vector<2x8x8xf32>, vector<2x8x8xf32>, vector<2x8x8xf32> -> vector<2x8x8xf32>
    "tpu.trace_stop"() : () -> ()
    %55 = vector.extract_strided_slice %5 {offsets = [8, 0], sizes = [8, 32], strides = [1, 1]} : vector<32x32xf32> to vector<8x32xf32>
    %56 = vector.shape_cast %54 : vector<2x8x8xf32> to vector<16x8xf32>
    %cst_29 = arith.constant dense<0.000000e+00> : vector<16x32xf32>
    %57 = tpu.matmul %56, %55, %cst_29 {dimension_numbers = #tpu.dot_dimension_numbers<[1], [0], [0], [1], [0, 0, 1, 1], [], []>} : vector<16x8xf32>, vector<8x32xf32>, vector<16x32xf32> -> vector<16x32xf32>
    %58 = arith.addf %39, %57 : vector<16x32xf32>
    %59 = vector.extract_strided_slice %19 {offsets = [0, 0, 16], sizes = [2, 8, 8], strides = [1, 1, 1]} : vector<2x8x32xf32> to vector<2x8x8xf32>
    %60 = vector.extract_strided_slice %20 {offsets = [0, 0, 16], sizes = [2, 8, 8], strides = [1, 1, 1]} : vector<2x8x32xf32> to vector<2x8x8xf32>
    %61 = vector.extract_strided_slice %21 {offsets = [0, 0, 16], sizes = [2, 8, 8], strides = [1, 1, 1]} : vector<2x8x32xf32> to vector<2x8x8xf32>
    "tpu.trace_start"() <{level = 10 : i32, message = "bqd,bkd->bqk"}> : () -> ()
    %cst_30 = arith.constant dense<0.000000e+00> : vector<2x8x8xf32>
    %62 = tpu.matmul %59, %60, %cst_30 {dimension_numbers = #tpu.dot_dimension_numbers<[2], [2], [1], [1], [0, 0, 0, 1, 1, 1], [0], [0]>} : vector<2x8x8xf32>, vector<2x8x8xf32>, vector<2x8x8xf32> -> vector<2x8x8xf32>
    "tpu.trace_stop"() : () -> ()
    %cst_31 = arith.constant dense<0xFF800000> : vector<2x8xf32>
    %63 = vector.multi_reduction <maximumf>, %62, %cst_31 [2] : vector<2x8x8xf32> to vector<2x8xf32>
    %64 = vector.shape_cast %63 : vector<2x8xf32> to vector<2x8x1xf32>
    %65 = vector.broadcast %64 : vector<2x8x1xf32> to vector<2x8x8xf32>
    %66 = arith.subf %62, %65 : vector<2x8x8xf32>
    %67 = math.exp %66 : vector<2x8x8xf32>
    %cst_32 = arith.constant dense<0.000000e+00> : vector<2x8xf32>
    %68 = vector.multi_reduction <add>, %67, %cst_32 [2] : vector<2x8x8xf32> to vector<2x8xf32>
    %69 = vector.shape_cast %68 : vector<2x8xf32> to vector<2x8x1xf32>
    %70 = tpu.reciprocal %69 {approx = true} : vector<2x8x1xf32> -> vector<2x8x1xf32>
    %71 = vector.broadcast %70 : vector<2x8x1xf32> to vector<2x8x8xf32>
    %72 = arith.mulf %67, %71 : vector<2x8x8xf32>
    "tpu.trace_start"() <{level = 10 : i32, message = "bqk,bkd->bqd"}> : () -> ()
    %cst_33 = arith.constant dense<0.000000e+00> : vector<2x8x8xf32>
    %73 = tpu.matmul %72, %61, %cst_33 {dimension_numbers = #tpu.dot_dimension_numbers<[2], [1], [1], [2], [0, 0, 0, 1, 1, 2], [0], [0]>} : vector<2x8x8xf32>, vector<2x8x8xf32>, vector<2x8x8xf32> -> vector<2x8x8xf32>
    "tpu.trace_stop"() : () -> ()
    %74 = vector.extract_strided_slice %5 {offsets = [16, 0], sizes = [8, 32], strides = [1, 1]} : vector<32x32xf32> to vector<8x32xf32>
    %75 = vector.shape_cast %73 : vector<2x8x8xf32> to vector<16x8xf32>
    %cst_34 = arith.constant dense<0.000000e+00> : vector<16x32xf32>
    %76 = tpu.matmul %75, %74, %cst_34 {dimension_numbers = #tpu.dot_dimension_numbers<[1], [0], [0], [1], [0, 0, 1, 1], [], []>} : vector<16x8xf32>, vector<8x32xf32>, vector<16x32xf32> -> vector<16x32xf32>
    %77 = arith.addf %58, %76 : vector<16x32xf32>
    %78 = vector.extract_strided_slice %19 {offsets = [0, 0, 24], sizes = [2, 8, 8], strides = [1, 1, 1]} : vector<2x8x32xf32> to vector<2x8x8xf32>
    %79 = vector.extract_strided_slice %20 {offsets = [0, 0, 24], sizes = [2, 8, 8], strides = [1, 1, 1]} : vector<2x8x32xf32> to vector<2x8x8xf32>
    %80 = vector.extract_strided_slice %21 {offsets = [0, 0, 24], sizes = [2, 8, 8], strides = [1, 1, 1]} : vector<2x8x32xf32> to vector<2x8x8xf32>
    "tpu.trace_start"() <{level = 10 : i32, message = "bqd,bkd->bqk"}> : () -> ()
    %cst_35 = arith.constant dense<0.000000e+00> : vector<2x8x8xf32>
    %81 = tpu.matmul %78, %79, %cst_35 {dimension_numbers = #tpu.dot_dimension_numbers<[2], [2], [1], [1], [0, 0, 0, 1, 1, 1], [0], [0]>} : vector<2x8x8xf32>, vector<2x8x8xf32>, vector<2x8x8xf32> -> vector<2x8x8xf32>
    "tpu.trace_stop"() : () -> ()
    %cst_36 = arith.constant dense<0xFF800000> : vector<2x8xf32>
    %82 = vector.multi_reduction <maximumf>, %81, %cst_36 [2] : vector<2x8x8xf32> to vector<2x8xf32>
    %83 = vector.shape_cast %82 : vector<2x8xf32> to vector<2x8x1xf32>
    %84 = vector.broadcast %83 : vector<2x8x1xf32> to vector<2x8x8xf32>
    %85 = arith.subf %81, %84 : vector<2x8x8xf32>
    %86 = math.exp %85 : vector<2x8x8xf32>
    %cst_37 = arith.constant dense<0.000000e+00> : vector<2x8xf32>
    %87 = vector.multi_reduction <add>, %86, %cst_37 [2] : vector<2x8x8xf32> to vector<2x8xf32>
    %88 = vector.shape_cast %87 : vector<2x8xf32> to vector<2x8x1xf32>
    %89 = tpu.reciprocal %88 {approx = true} : vector<2x8x1xf32> -> vector<2x8x1xf32>
    %90 = vector.broadcast %89 : vector<2x8x1xf32> to vector<2x8x8xf32>
    %91 = arith.mulf %86, %90 : vector<2x8x8xf32>
    "tpu.trace_start"() <{level = 10 : i32, message = "bqk,bkd->bqd"}> : () -> ()
    %cst_38 = arith.constant dense<0.000000e+00> : vector<2x8x8xf32>
    %92 = tpu.matmul %91, %80, %cst_38 {dimension_numbers = #tpu.dot_dimension_numbers<[2], [1], [1], [2], [0, 0, 0, 1, 1, 2], [0], [0]>} : vector<2x8x8xf32>, vector<2x8x8xf32>, vector<2x8x8xf32> -> vector<2x8x8xf32>
    "tpu.trace_stop"() : () -> ()
    %93 = vector.extract_strided_slice %5 {offsets = [24, 0], sizes = [8, 32], strides = [1, 1]} : vector<32x32xf32> to vector<8x32xf32>
    %94 = vector.shape_cast %92 : vector<2x8x8xf32> to vector<16x8xf32>
    %cst_39 = arith.constant dense<0.000000e+00> : vector<16x32xf32>
    %95 = tpu.matmul %94, %93, %cst_39 {dimension_numbers = #tpu.dot_dimension_numbers<[1], [0], [0], [1], [0, 0, 1, 1], [], []>} : vector<16x8xf32>, vector<8x32xf32>, vector<16x32xf32> -> vector<16x32xf32>
    %96 = arith.addf %77, %95 : vector<16x32xf32>
    %97 = vector.broadcast %9 : vector<1x32xf32> to vector<16x32xf32>
    %98 = arith.addf %96, %97 : vector<16x32xf32>
    %99 = vector.shape_cast %98 : vector<16x32xf32> to vector<2x8x32xf32>
    %c0_40 = arith.constant 0 : index
    %c0_41 = arith.constant 0 : index
    %c0_42 = arith.constant 0 : index
    %100 = vector.load %arg10[%c0_40, %c0_41, %c0_42] : memref<2x8x32xf32, #tpu.memory_space<vmem>>, vector<2x8x32xf32>
    tpu.vector_store %arg10[%c0_40, %c0_41, %c0_42], %99 {strides = array<i32>} : memref<2x8x32xf32, #tpu.memory_space<vmem>>, vector<2x8x32xf32>,
    return
  }
  func.func @transform_0(%arg0: i32) -> (i32, i32, i32) {
    %c0_i32 = arith.constant 0 : i32
    %c0_i32_0 = arith.constant 0 : i32
    %c0_i32_1 = arith.constant 0 : i32
    return %arg0, %c0_i32, %c0_i32_0 : i32, i32, i32
  }
  func.func @transform_1(%arg0: i32) -> (i32, i32) {
    %c0_i32 = arith.constant 0 : i32
    %c0_i32_0 = arith.constant 0 : i32
    %c0_i32_1 = arith.constant 0 : i32
    return %c0_i32, %c0_i32_0 : i32, i32
  }
  func.func @transform_2(%arg0: i32) -> (i32, i32) {
    %c0_i32 = arith.constant 0 : i32
    %c0_i32_0 = arith.constant 0 : i32
    %c0_i32_1 = arith.constant 0 : i32
    return %c0_i32, %c0_i32_0 : i32, i32
  }
  func.func @transform_3(%arg0: i32) -> (i32, i32) {
    %c0_i32 = arith.constant 0 : i32
    %c0_i32_0 = arith.constant 0 : i32
    %c0_i32_1 = arith.constant 0 : i32
    return %c0_i32, %c0_i32_0 : i32, i32
  }
  func.func @transform_4(%arg0: i32) -> (i32, i32) {
    %c0_i32 = arith.constant 0 : i32
    %c0_i32_0 = arith.constant 0 : i32
    %c0_i32_1 = arith.constant 0 : i32
    return %c0_i32, %c0_i32_0 : i32, i32
  }
  func.func @transform_5(%arg0: i32) -> (i32, i32) {
    %c0_i32 = arith.constant 0 : i32
    %c0_i32_0 = arith.constant 0 : i32
    %c0_i32_1 = arith.constant 0 : i32
    return %c0_i32, %c0_i32_0 : i32, i32
  }
  func.func @transform_6(%arg0: i32) -> (i32, i32) {
    %c0_i32 = arith.constant 0 : i32
    %c0_i32_0 = arith.constant 0 : i32
    %c0_i32_1 = arith.constant 0 : i32
    return %c0_i32, %c0_i32_0 : i32, i32
  }
  func.func @transform_7(%arg0: i32) -> (i32, i32) {
    %c0_i32 = arith.constant 0 : i32
    %c0_i32_0 = arith.constant 0 : i32
    %c0_i32_1 = arith.constant 0 : i32
    return %c0_i32, %c0_i32_0 : i32, i32
  }
  func.func @transform_8(%arg0: i32) -> (i32, i32) {
    %c0_i32 = arith.constant 0 : i32
    %c0_i32_0 = arith.constant 0 : i32
    %c0_i32_1 = arith.constant 0 : i32
    return %c0_i32, %c0_i32_0 : i32, i32
  }
  func.func @transform_9(%arg0: i32) -> (i32, i32, i32) {
    %c0_i32 = arith.constant 0 : i32
    %c0_i32_0 = arith.constant 0 : i32
    %c0_i32_1 = arith.constant 0 : i32
    return %arg0, %c0_i32, %c0_i32_0 : i32, i32, i32
  }
}

module attributes {stable_mosaic.version = 11 : i64} {
  func.func @_mha_kernel(%arg0: i32, %arg1: memref<2x8x32xf32, #tpu.memory_space<vmem>>, %arg2: memref<32x32xf32, #tpu.memory_space<vmem>>, %arg3: memref<1x32xf32, #tpu.memory_space<vmem>>, %arg4: memref<32x32xf32, #tpu.memory_space<vmem>>, %arg5: memref<1x32xf32, #tpu.memory_space<vmem>>, %arg6: memref<32x32xf32, #tpu.memory_space<vmem>>, %arg7: memref<1x32xf32, #tpu.memory_space<vmem>>, %arg8: memref<32x32xf32, #tpu.memory_space<vmem>>, %arg9: memref<1x32xf32, #tpu.memory_space<vmem>>, %arg10: memref<2x8x32xf32, #tpu.memory_space<vmem>>) attributes {dimension_semantics = [#tpu.dimension_semantics<parallel>], iteration_bounds = array<i64: 1>, scalar_prefetch = 0 : i64, scratch_operands = 0 : i64, tpu.core_type = #tpu.core_type<tc>, window_params = [{transform_indices = @transform_0, window_bounds = array<i64: 2, 8, 32>}, {pipeline_mode = #tpu.pipeline_mode<synchronous>, transform_indices = @transform_1, window_bounds = array<i64: 32, 32>}, {pipeline_mode = #tpu.pipeline_mode<synchronous>, transform_indices = @transform_2, window_bounds = array<i64: 1, 32>}, {pipeline_mode = #tpu.pipeline_mode<synchronous>, transform_indices = @transform_3, window_bounds = array<i64: 32, 32>}, {pipeline_mode = #tpu.pipeline_mode<synchronous>, transform_indices = @transform_4, window_bounds = array<i64: 1, 32>}, {pipeline_mode = #tpu.pipeline_mode<synchronous>, transform_indices = @transform_5, window_bounds = array<i64: 32, 32>}, {pipeline_mode = #tpu.pipeline_mode<synchronous>, transform_indices = @transform_6, window_bounds = array<i64: 1, 32>}, {pipeline_mode = #tpu.pipeline_mode<synchronous>, transform_indices = @transform_7, window_bounds = array<i64: 32, 32>}, {pipeline_mode = #tpu.pipeline_mode<synchronous>, transform_indices = @transform_8, window_bounds = array<i64: 1, 32>}, {transform_indices = @transform_9, window_bounds = array<i64: 2, 8, 32>}]} {
    %c0 = arith.constant 0 : index
    %c0_0 = arith.constant 0 : index
    %c0_1 = arith.constant 0 : index
    %0 = vector.load %arg1[%c0, %c0_0, %c0_1] : memref<2x8x32xf32, #tpu.memory_space<vmem>>, vector<2x8x32xf32>
    %1 = vector.shape_cast %0 : vector<2x8x32xf32> to vector<16x32xf32>
    %c0_2 = arith.constant 0 : index
    %c0_3 = arith.constant 0 : index
    %2 = vector.load %arg2[%c0_2, %c0_3] : memref<32x32xf32, #tpu.memory_space<vmem>>, vector<32x32xf32>
    %c0_4 = arith.constant 0 : index
    %c0_5 = arith.constant 0 : index
    %3 = vector.load %arg4[%c0_4, %c0_5] : memref<32x32xf32, #tpu.memory_space<vmem>>, vector<32x32xf32>
    %c0_6 = arith.constant 0 : index
    %c0_7 = arith.constant 0 : index
    %4 = vector.load %arg6[%c0_6, %c0_7] : memref<32x32xf32, #tpu.memory_space<vmem>>, vector<32x32xf32>
    %c0_8 = arith.constant 0 : index
    %c0_9 = arith.constant 0 : index
    %5 = vector.load %arg8[%c0_8, %c0_9] : memref<32x32xf32, #tpu.memory_space<vmem>>, vector<32x32xf32>
    %c0_10 = arith.constant 0 : index
    %c0_11 = arith.constant 0 : index
    %6 = vector.load %arg3[%c0_10, %c0_11] : memref<1x32xf32, #tpu.memory_space<vmem>>, vector<1x32xf32>
    %c0_12 = arith.constant 0 : index
    %c0_13 = arith.constant 0 : index
    %7 = vector.load %arg5[%c0_12, %c0_13] : memref<1x32xf32, #tpu.memory_space<vmem>>, vector<1x32xf32>
    %c0_14 = arith.constant 0 : index
    %c0_15 = arith.constant 0 : index
    %8 = vector.load %arg7[%c0_14, %c0_15] : memref<1x32xf32, #tpu.memory_space<vmem>>, vector<1x32xf32>
    %c0_16 = arith.constant 0 : index
    %c0_17 = arith.constant 0 : index
    %9 = vector.load %arg9[%c0_16, %c0_17] : memref<1x32xf32, #tpu.memory_space<vmem>>, vector<1x32xf32>
    %cst = arith.constant dense<0.000000e+00> : vector<16x32xf32>
    %10 = tpu.matmul %1, %2, %cst {dimension_numbers = #tpu.dot_dimension_numbers<[1], [0], [0], [1], [0, 0, 1, 1], [], []>} : vector<16x32xf32>, vector<32x32xf32>, vector<16x32xf32> -> vector<16x32xf32>
    %11 = vector.broadcast %6 : vector<1x32xf32> to vector<16x32xf32>
    %12 = arith.addf %10, %11 : vector<16x32xf32>
    %cst_18 = arith.constant dense<0.000000e+00> : vector<16x32xf32>
    %13 = tpu.matmul %1, %3, %cst_18 {dimension_numbers = #tpu.dot_dimension_numbers<[1], [0], [0], [1], [0, 0, 1, 1], [], []>} : vector<16x32xf32>, vector<32x32xf32>, vector<16x32xf32> -> vector<16x32xf32>
    %14 = vector.broadcast %7 : vector<1x32xf32> to vector<16x32xf32>
    %15 = arith.addf %13, %14 : vector<16x32xf32>
    %cst_19 = arith.constant dense<0.000000e+00> : vector<16x32xf32>
    %16 = tpu.matmul %1, %4, %cst_19 {dimension_numbers = #tpu.dot_dimension_numbers<[1], [0], [0], [1], [0, 0, 1, 1], [], []>} : vector<16x32xf32>, vector<32x32xf32>, vector<16x32xf32> -> vector<16x32xf32>
    %17 = vector.broadcast %8 : vector<1x32xf32> to vector<16x32xf32>
    %18 = arith.addf %16, %17 : vector<16x32xf32>
    %19 = vector.shape_cast %12 : vector<16x32xf32> to vector<2x8x32xf32>
    %20 = vector.shape_cast %15 : vector<16x32xf32> to vector<2x8x32xf32>
    %21 = vector.shape_cast %18 : vector<16x32xf32> to vector<2x8x32xf32>
    %22 = vector.extract_strided_slice %19 {offsets = [0, 0, 0], sizes = [2, 8, 8], strides = [1, 1, 1]} : vector<2x8x32xf32> to vector<2x8x8xf32>
    %23 = vector.extract_strided_slice %20 {offsets = [0, 0, 0], sizes = [2, 8, 8], strides = [1, 1, 1]} : vector<2x8x32xf32> to vector<2x8x8xf32>
    %24 = vector.extract_strided_slice %21 {offsets = [0, 0, 0], sizes = [2, 8, 8], strides = [1, 1, 1]} : vector<2x8x32xf32> to vector<2x8x8xf32>
    "tpu.trace_start"() <{level = 10 : i32, message = "bqd,bkd->bqk"}> : () -> ()
    %cst_20 = arith.constant dense<0.000000e+00> : vector<2x8x8xf32>
    %25 = tpu.matmul %22, %23, %cst_20 {dimension_numbers = #tpu.dot_dimension_numbers<[2], [2], [1], [1], [0, 0, 0, 1, 1, 1], [0], [0]>} : vector<2x8x8xf32>, vector<2x8x8xf32>, vector<2x8x8xf32> -> vector<2x8x8xf32>
    "tpu.trace_stop"() : () -> ()
    %cst_21 = arith.constant dense<0xFF800000> : vector<2x8xf32>
    %26 = vector.multi_reduction <maximumf>, %25, %cst_21 [2] : vector<2x8x8xf32> to vector<2x8xf32>
    %27 = vector.shape_cast %26 : vector<2x8xf32> to vector<2x8x1xf32>
    %28 = vector.broadcast %27 : vector<2x8x1xf32> to vector<2x8x8xf32>
    %29 = arith.subf %25, %28 : vector<2x8x8xf32>
    %30 = math.exp %29 : vector<2x8x8xf32>
    %cst_22 = arith.constant dense<0.000000e+00> : vector<2x8xf32>
    %31 = vector.multi_reduction <add>, %30, %cst_22 [2] : vector<2x8x8xf32> to vector<2x8xf32>
    %32 = vector.shape_cast %31 : vector<2x8xf32> to vector<2x8x1xf32>
    %33 = tpu.reciprocal %32 {approx = true} : vector<2x8x1xf32> -> vector<2x8x1xf32>
    %34 = vector.broadcast %33 : vector<2x8x1xf32> to vector<2x8x8xf32>
    %35 = arith.mulf %30, %34 : vector<2x8x8xf32>
    "tpu.trace_start"() <{level = 10 : i32, message = "bqk,bkd->bqd"}> : () -> ()
    %cst_23 = arith.constant dense<0.000000e+00> : vector<2x8x8xf32>
    %36 = tpu.matmul %35, %24, %cst_23 {dimension_numbers = #tpu.dot_dimension_numbers<[2], [1], [1], [2], [0, 0, 0, 1, 1, 2], [0], [0]>} : vector<2x8x8xf32>, vector<2x8x8xf32>, vector<2x8x8xf32> -> vector<2x8x8xf32>
    "tpu.trace_stop"() : () -> ()
    %37 = vector.extract_strided_slice %5 {offsets = [0, 0], sizes = [8, 32], strides = [1, 1]} : vector<32x32xf32> to vector<8x32xf32>
    %38 = vector.shape_cast %36 : vector<2x8x8xf32> to vector<16x8xf32>
    %cst_24 = arith.constant dense<0.000000e+00> : vector<16x32xf32>
    %39 = tpu.matmul %38, %37, %cst_24 {dimension_numbers = #tpu.dot_dimension_numbers<[1], [0], [0], [1], [0, 0, 1, 1], [], []>} : vector<16x8xf32>, vector<8x32xf32>, vector<16x32xf32> -> vector<16x32xf32>
    %40 = vector.extract_strided_slice %19 {offsets = [0, 0, 8], sizes = [2, 8, 8], strides = [1, 1, 1]} : vector<2x8x32xf32> to vector<2x8x8xf32>
    %41 = vector.extract_strided_slice %20 {offsets = [0, 0, 8], sizes = [2, 8, 8], strides = [1, 1, 1]} : vector<2x8x32xf32> to vector<2x8x8xf32>
    %42 = vector.extract_strided_slice %21 {offsets = [0, 0, 8], sizes = [2, 8, 8], strides = [1, 1, 1]} : vector<2x8x32xf32> to vector<2x8x8xf32>
    "tpu.trace_start"() <{level = 10 : i32, message = "bqd,bkd->bqk"}> : () -> ()
    %cst_25 = arith.constant dense<0.000000e+00> : vector<2x8x8xf32>
    %43 = tpu.matmul %40, %41, %cst_25 {dimension_numbers = #tpu.dot_dimension_numbers<[2], [2], [1], [1], [0, 0, 0, 1, 1, 1], [0], [0]>} : vector<2x8x8xf32>, vector<2x8x8xf32>, vector<2x8x8xf32> -> vector<2x8x8xf32>
    "tpu.trace_stop"() : () -> ()
    %cst_26 = arith.constant dense<0xFF800000> : vector<2x8xf32>
    %44 = vector.multi_reduction <maximumf>, %43, %cst_26 [2] : vector<2x8x8xf32> to vector<2x8xf32>
    %45 = vector.shape_cast %44 : vector<2x8xf32> to vector<2x8x1xf32>
    %46 = vector.broadcast %45 : vector<2x8x1xf32> to vector<2x8x8xf32>
    %47 = arith.subf %43, %46 : vector<2x8x8xf32>
    %48 = math.exp %47 : vector<2x8x8xf32>
    %cst_27 = arith.constant dense<0.000000e+00> : vector<2x8xf32>
    %49 = vector.multi_reduction <add>, %48, %cst_27 [2] : vector<2x8x8xf32> to vector<2x8xf32>
    %50 = vector.shape_cast %49 : vector<2x8xf32> to vector<2x8x1xf32>
    %51 = tpu.reciprocal %50 {approx = true} : vector<2x8x1xf32> -> vector<2x8x1xf32>
    %52 = vector.broadcast %51 : vector<2x8x1xf32> to vector<2x8x8xf32>
    %53 = arith.mulf %48, %52 : vector<2x8x8xf32>
    "tpu.trace_start"() <{level = 10 : i32, message = "bqk,bkd->bqd"}> : () -> ()
    %cst_28 = arith.constant dense<0.000000e+00> : vector<2x8x8xf32>
    %54 = tpu.matmul %53, %42, %cst_28 {dimension_numbers = #tpu.dot_dimension_numbers<[2], [1], [1], [2], [0, 0, 0, 1, 1, 2], [0], [0]>} : vector<2x8x8xf32>, vector<2x8x8xf32>, vector<2x8x8xf32> -> vector<2x8x8xf32>
    "tpu.trace_stop"() : () -> ()
    %55 = vector.extract_strided_slice %5 {offsets = [8, 0], sizes = [8, 32], strides = [1, 1]} : vector<32x32xf32> to vector<8x32xf32>
    %56 = vector.shape_cast %54 : vector<2x8x8xf32> to vector<16x8xf32>
    %cst_29 = arith.constant dense<0.000000e+00> : vector<16x32xf32>
    %57 = tpu.matmul %56, %55, %cst_29 {dimension_numbers = #tpu.dot_dimension_numbers<[1], [0], [0], [1], [0, 0, 1, 1], [], []>} : vector<16x8xf32>, vector<8x32xf32>, vector<16x32xf32> -> vector<16x32xf32>
    %58 = arith.addf %39, %57 : vector<16x32xf32>
    %59 = vector.extract_strided_slice %19 {offsets = [0, 0, 16], sizes = [2, 8, 8], strides = [1, 1, 1]} : vector<2x8x32xf32> to vector<2x8x8xf32>
    %60 = vector.extract_strided_slice %20 {offsets = [0, 0, 16], sizes = [2, 8, 8], strides = [1, 1, 1]} : vector<2x8x32xf32> to vector<2x8x8xf32>
    %61 = vector.extract_strided_slice %21 {offsets = [0, 0, 16], sizes = [2, 8, 8], strides = [1, 1, 1]} : vector<2x8x32xf32> to vector<2x8x8xf32>
    "tpu.trace_start"() <{level = 10 : i32, message = "bqd,bkd->bqk"}> : () -> ()
    %cst_30 = arith.constant dense<0.000000e+00> : vector<2x8x8xf32>
    %62 = tpu.matmul %59, %60, %cst_30 {dimension_numbers = #tpu.dot_dimension_numbers<[2], [2], [1], [1], [0, 0, 0, 1, 1, 1], [0], [0]>} : vector<2x8x8xf32>, vector<2x8x8xf32>, vector<2x8x8xf32> -> vector<2x8x8xf32>
    "tpu.trace_stop"() : () -> ()
    %cst_31 = arith.constant dense<0xFF800000> : vector<2x8xf32>
    %63 = vector.multi_reduction <maximumf>, %62, %cst_31 [2] : vector<2x8x8xf32> to vector<2x8xf32>
    %64 = vector.shape_cast %63 : vector<2x8xf32> to vector<2x8x1xf32>
    %65 = vector.broadcast %64 : vector<2x8x1xf32> to vector<2x8x8xf32>
    %66 = arith.subf %62, %65 : vector<2x8x8xf32>
    %67 = math.exp %66 : vector<2x8x8xf32>
    %cst_32 = arith.constant dense<0.000000e+00> : vector<2x8xf32>
    %68 = vector.multi_reduction <add>, %67, %cst_32 [2] : vector<2x8x8xf32> to vector<2x8xf32>
    %69 = vector.shape_cast %68 : vector<2x8xf32> to vector<2x8x1xf32>
    %70 = tpu.reciprocal %69 {approx = true} : vector<2x8x1xf32> -> vector<2x8x1xf32>
    %71 = vector.broadcast %70 : vector<2x8x1xf32> to vector<2x8x8xf32>
    %72 = arith.mulf %67, %71 : vector<2x8x8xf32>
    "tpu.trace_start"() <{level = 10 : i32, message = "bqk,bkd->bqd"}> : () -> ()
    %cst_33 = arith.constant dense<0.000000e+00> : vector<2x8x8xf32>
    %73 = tpu.matmul %72, %61, %cst_33 {dimension_numbers = #tpu.dot_dimension_numbers<[2], [1], [1], [2], [0, 0, 0, 1, 1, 2], [0], [0]>} : vector<2x8x8xf32>, vector<2x8x8xf32>, vector<2x8x8xf32> -> vector<2x8x8xf32>
    "tpu.trace_stop"() : () -> ()
    %74 = vector.extract_strided_slice %5 {offsets = [16, 0], sizes = [8, 32], strides = [1, 1]} : vector<32x32xf32> to vector<8x32xf32>
    %75 = vector.shape_cast %73 : vector<2x8x8xf32> to vector<16x8xf32>
    %cst_34 = arith.constant dense<0.000000e+00> : vector<16x32xf32>
    %76 = tpu.matmul %75, %74, %cst_34 {dimension_numbers = #tpu.dot_dimension_numbers<[1], [0], [0], [1], [0, 0, 1, 1], [], []>} : vector<16x8xf32>, vector<8x32xf32>, vector<16x32xf32> -> vector<16x32xf32>
    %77 = arith.addf %58, %76 : vector<16x32xf32>
    %78 = vector.extract_strided_slice %19 {offsets = [0, 0, 24], sizes = [2, 8, 8], strides = [1, 1, 1]} : vector<2x8x32xf32> to vector<2x8x8xf32>
    %79 = vector.extract_strided_slice %20 {offsets = [0, 0, 24], sizes = [2, 8, 8], strides = [1, 1, 1]} : vector<2x8x32xf32> to vector<2x8x8xf32>
    %80 = vector.extract_strided_slice %21 {offsets = [0, 0, 24], sizes = [2, 8, 8], strides = [1, 1, 1]} : vector<2x8x32xf32> to vector<2x8x8xf32>
    "tpu.trace_start"() <{level = 10 : i32, message = "bqd,bkd->bqk"}> : () -> ()
    %cst_35 = arith.constant dense<0.000000e+00> : vector<2x8x8xf32>
    %81 = tpu.matmul %78, %79, %cst_35 {dimension_numbers = #tpu.dot_dimension_numbers<[2], [2], [1], [1], [0, 0, 0, 1, 1, 1], [0], [0]>} : vector<2x8x8xf32>, vector<2x8x8xf32>, vector<2x8x8xf32> -> vector<2x8x8xf32>
    "tpu.trace_stop"() : () -> ()
    %cst_36 = arith.constant dense<0xFF800000> : vector<2x8xf32>
    %82 = vector.multi_reduction <maximumf>, %81, %cst_36 [2] : vector<2x8x8xf32> to vector<2x8xf32>
    %83 = vector.shape_cast %82 : vector<2x8xf32> to vector<2x8x1xf32>
    %84 = vector.broadcast %83 : vector<2x8x1xf32> to vector<2x8x8xf32>
    %85 = arith.subf %81, %84 : vector<2x8x8xf32>
    %86 = math.exp %85 : vector<2x8x8xf32>
    %cst_37 = arith.constant dense<0.000000e+00> : vector<2x8xf32>
    %87 = vector.multi_reduction <add>, %86, %cst_37 [2] : vector<2x8x8xf32> to vector<2x8xf32>
    %88 = vector.shape_cast %87 : vector<2x8xf32> to vector<2x8x1xf32>
    %89 = tpu.reciprocal %88 {approx = true} : vector<2x8x1xf32> -> vector<2x8x1xf32>
    %90 = vector.broadcast %89 : vector<2x8x1xf32> to vector<2x8x8xf32>
    %91 = arith.mulf %86, %90 : vector<2x8x8xf32>
    "tpu.trace_start"() <{level = 10 : i32, message = "bqk,bkd->bqd"}> : () -> ()
    %cst_38 = arith.constant dense<0.000000e+00> : vector<2x8x8xf32>
    %92 = tpu.matmul %91, %80, %cst_38 {dimension_numbers = #tpu.dot_dimension_numbers<[2], [1], [1], [2], [0, 0, 0, 1, 1, 2], [0], [0]>} : vector<2x8x8xf32>, vector<2x8x8xf32>, vector<2x8x8xf32> -> vector<2x8x8xf32>
    "tpu.trace_stop"() : () -> ()
    %93 = vector.extract_strided_slice %5 {offsets = [24, 0], sizes = [8, 32], strides = [1, 1]} : vector<32x32xf32> to vector<8x32xf32>
    %94 = vector.shape_cast %92 : vector<2x8x8xf32> to vector<16x8xf32>
    %cst_39 = arith.constant dense<0.000000e+00> : vector<16x32xf32>
    %95 = tpu.matmul %94, %93, %cst_39 {dimension_numbers = #tpu.dot_dimension_numbers<[1], [0], [0], [1], [0, 0, 1, 1], [], []>} : vector<16x8xf32>, vector<8x32xf32>, vector<16x32xf32> -> vector<16x32xf32>
    %96 = arith.addf %77, %95 : vector<16x32xf32>
    %97 = vector.broadcast %9 : vector<1x32xf32> to vector<16x32xf32>
    %98 = arith.addf %96, %97 : vector<16x32xf32>
    %99 = vector.shape_cast %98 : vector<16x32xf32> to vector<2x8x32xf32>
    %c0_40 = arith.constant 0 : index
    %c0_41 = arith.constant 0 : index
    %c0_42 = arith.constant 0 : index
    %100 = vector.load %arg10[%c0_40, %c0_41, %c0_42] : memref<2x8x32xf32, #tpu.memory_space<vmem>>, vector<2x8x32xf32>
    tpu.vector_store %arg10[%c0_40, %c0_41, %c0_42], %99 {strides = array<i32>} : memref<2x8x32xf32, #tpu.memory_space<vmem>>, vector<2x8x32xf32>,
    return
  }
  func.func @transform_0(%arg0: i32) -> (i32, i32, i32) {
    %c0_i32 = arith.constant 0 : i32
    %c0_i32_0 = arith.constant 0 : i32
    %c0_i32_1 = arith.constant 0 : i32
    return %arg0, %c0_i32, %c0_i32_0 : i32, i32, i32
  }
  func.func @transform_1(%arg0: i32) -> (i32, i32) {
    %c0_i32 = arith.constant 0 : i32
    %c0_i32_0 = arith.constant 0 : i32
    %c0_i32_1 = arith.constant 0 : i32
    return %c0_i32, %c0_i32_0 : i32, i32
  }
  func.func @transform_2(%arg0: i32) -> (i32, i32) {
    %c0_i32 = arith.constant 0 : i32
    %c0_i32_0 = arith.constant 0 : i32
    %c0_i32_1 = arith.constant 0 : i32
    return %c0_i32, %c0_i32_0 : i32, i32
  }
  func.func @transform_3(%arg0: i32) -> (i32, i32) {
    %c0_i32 = arith.constant 0 : i32
    %c0_i32_0 = arith.constant 0 : i32
    %c0_i32_1 = arith.constant 0 : i32
    return %c0_i32, %c0_i32_0 : i32, i32
  }
  func.func @transform_4(%arg0: i32) -> (i32, i32) {
    %c0_i32 = arith.constant 0 : i32
    %c0_i32_0 = arith.constant 0 : i32
    %c0_i32_1 = arith.constant 0 : i32
    return %c0_i32, %c0_i32_0 : i32, i32
  }
  func.func @transform_5(%arg0: i32) -> (i32, i32) {
    %c0_i32 = arith.constant 0 : i32
    %c0_i32_0 = arith.constant 0 : i32
    %c0_i32_1 = arith.constant 0 : i32
    return %c0_i32, %c0_i32_0 : i32, i32
  }
  func.func @transform_6(%arg0: i32) -> (i32, i32) {
    %c0_i32 = arith.constant 0 : i32
    %c0_i32_0 = arith.constant 0 : i32
    %c0_i32_1 = arith.constant 0 : i32
    return %c0_i32, %c0_i32_0 : i32, i32
  }
  func.func @transform_7(%arg0: i32) -> (i32, i32) {
    %c0_i32 = arith.constant 0 : i32
    %c0_i32_0 = arith.constant 0 : i32
    %c0_i32_1 = arith.constant 0 : i32
    return %c0_i32, %c0_i32_0 : i32, i32
  }
  func.func @transform_8(%arg0: i32) -> (i32, i32) {
    %c0_i32 = arith.constant 0 : i32
    %c0_i32_0 = arith.constant 0 : i32
    %c0_i32_1 = arith.constant 0 : i32
    return %c0_i32, %c0_i32_0 : i32, i32
  }
  func.func @transform_9(%arg0: i32) -> (i32, i32, i32) {
    %c0_i32 = arith.constant 0 : i32
    %c0_i32_0 = arith.constant 0 : i32
    %c0_i32_1 = arith.constant 0 : i32
    return %arg0, %c0_i32, %c0_i32_0 : i32, i32, i32
  }
}

</mosaic_0001>

<llo_original>
// kernel: tpu_custom_call.1
$region0: #{tpu_custom_call.1}
  #allocation0 [shape = 'u32[]', space=smem, size = 0x4, offset = 0x4, fixed_abs, tag = 'smem constant byte address 0x4 - core index']
  #allocation1 [shape = 'u32[144,128]{1,0:T(1,128)}', space=vmem, size = 0x12000, scoped, tag = 'internal scratch']
  %s0 = inlined_call_operand.hbm [shape: f32[2,8,32], index: 0, kind: input, shape index: {}]
  %s1 = inlined_call_operand.hbm [shape: f32[32,32], index: 1, kind: input, shape index: {}]
  %s2 = inlined_call_operand.vmem [shape: f32[1,32], index: 2, kind: input, shape index: {}]
  %s3 = inlined_call_operand.hbm [shape: f32[32,32], index: 3, kind: input, shape index: {}]
  %s4 = inlined_call_operand.vmem [shape: f32[1,32], index: 4, kind: input, shape index: {}]
  %s5 = inlined_call_operand.hbm [shape: f32[32,32], index: 5, kind: input, shape index: {}]
  %s6 = inlined_call_operand.vmem [shape: f32[1,32], index: 6, kind: input, shape index: {}]
  %s7 = inlined_call_operand.hbm [shape: f32[32,32], index: 7, kind: input, shape index: {}]
  %s8 = inlined_call_operand.vmem [shape: f32[1,32], index: 8, kind: input, shape index: {}]
  %s9 = inlined_call_operand.hbm [shape: f32[2,8,32], index: 9, kind: output, shape index: {}]
  %s10 = sld [smem:[#allocation0]]
  $region66: #{tpu_custom_call.1} parent=0
    _
  %s12 = ssub.s32 1, %s10
  %s13 = scalar_select 0, %s12, %s10
  $region1: #{tpu_custom_call.1} parent=0
    #allocation2 [shape = 'u8[8192]{0}', space=vmem, size = 0x2000, scoped, tag = 'input window, operand 0, single buffered']
    #allocation3 [shape = 's32[1]{0}', space=sflag, size = 0x4, scoped, tag = 'scoped memory for tpu_custom_call.1']
    #allocation4 [shape = 's32[1]{0}', space=sflag, size = 0x4, scoped, tag = 'scoped memory for tpu_custom_call.1']
    #allocation5 [shape = 'u8[16384]{0}', space=vmem, size = 0x4000, scoped, tag = 'input window, operand 1, single buffered']
    #allocation6 [shape = 's32[1]{0}', space=sflag, size = 0x4, scoped, tag = 'scoped memory for tpu_custom_call.1']
    #allocation7 [shape = 'u8[16384]{0}', space=vmem, size = 0x4000, scoped, tag = 'input window, operand 3, single buffered']
    #allocation8 [shape = 'u8[16384]{0}', space=vmem, size = 0x4000, scoped, tag = 'input window, operand 5, single buffered']
    #allocation9 [shape = 's32[1]{0}', space=sflag, size = 0x4, scoped, tag = 'scoped memory for tpu_custom_call.1']
    #allocation10 [shape = 'u8[16384]{0}', space=vmem, size = 0x4000, scoped, tag = 'input window, operand 7, single buffered']
    #allocation11 [shape = 'u8[8192]{0}', space=vmem, size = 0x2000, scoped, tag = 'output window, operand 0, single buffered']
    %14 = vsyncpa [#allocation3], 0
    %15 = vsyncpa [#allocation6], 0
    %16 = vsyncpa [#allocation9], 0
    %17 = vsyncpa [#allocation4], 0
    // Predicated region
    $region2: #{tpu_custom_call.1} parent=1 // pred_check
      _
    $region3: #{tpu_custom_call.1} parent=1 // pred_check_branch
      %19 = sbr.rel (0) target = $region5
    $region4: #{tpu_custom_call.1} parent=1 // pred_region
      %s21 = ssub.s32 256, 256
      %22 = vsyncadd [#allocation3], %s21
      %s23 = sshll.u32 [#allocation2], 4
      %s24 = int_to_ptr.vmem [resolvable:$true] %s23
      %29 = dma.hbm_to_vmem [thread:$0]  %s0, 256, %s24, [#allocation3], 128, 128, 8
    $region5: #{tpu_custom_call.1} parent=1 // pred_fallthru
      _
    // Predicated region
    $region6: #{tpu_custom_call.1} parent=1 // pred_check
      _
    $region7: #{tpu_custom_call.1} parent=1 // pred_check_branch
      %31 = sbr.rel (0) target = $region9
    $region8: #{tpu_custom_call.1} parent=1 // pred_region
      %s33 = ssub.s32 512, 512
      %34 = vsyncadd [#allocation6], %s33
      %s35 = sshll.u32 [#allocation5], 4
      %s36 = int_to_ptr.vmem [resolvable:$true] %s35
      %41 = dma.hbm_to_vmem [thread:$0]  %s1, 512, %s36, [#allocation6], 128, 128, 8
    $region9: #{tpu_custom_call.1} parent=1 // pred_fallthru
      _
    // Predicated region
    $region10: #{tpu_custom_call.1} parent=1 // pred_check
      _
    $region11: #{tpu_custom_call.1} parent=1 // pred_check_branch
      %43 = sbr.rel (0) target = $region13
    $region12: #{tpu_custom_call.1} parent=1 // pred_region
      _
    $region13: #{tpu_custom_call.1} parent=1 // pred_fallthru
      _
    // Predicated region
    $region14: #{tpu_custom_call.1} parent=1 // pred_check
      _
    $region15: #{tpu_custom_call.1} parent=1 // pred_check_branch
      %45 = sbr.rel (0) target = $region17
    $region16: #{tpu_custom_call.1} parent=1 // pred_region
      %s47 = ssub.s32 512, 512
      %48 = vsyncadd [#allocation6], %s47
      %s49 = sshll.u32 [#allocation7], 4
      %s50 = int_to_ptr.vmem [resolvable:$true] %s49
      %55 = dma.hbm_to_vmem [thread:$0]  %s3, 512, %s50, [#allocation6], 128, 128, 8
    $region17: #{tpu_custom_call.1} parent=1 // pred_fallthru
      _
    // Predicated region
    $region18: #{tpu_custom_call.1} parent=1 // pred_check
      _
    $region19: #{tpu_custom_call.1} parent=1 // pred_check_branch
      %57 = sbr.rel (0) target = $region21
    $region20: #{tpu_custom_call.1} parent=1 // pred_region
      _
    $region21: #{tpu_custom_call.1} parent=1 // pred_fallthru
      _
    // Predicated region
    $region22: #{tpu_custom_call.1} parent=1 // pred_check
      _
    $region23: #{tpu_custom_call.1} parent=1 // pred_check_branch
      %59 = sbr.rel (0) target = $region25
    $region24: #{tpu_custom_call.1} parent=1 // pred_region
      %s61 = ssub.s32 512, 512
      %62 = vsyncadd [#allocation9], %s61
      %s63 = sshll.u32 [#allocation8], 4
      %s64 = int_to_ptr.vmem [resolvable:$true] %s63
      %69 = dma.hbm_to_vmem [thread:$0]  %s5, 512, %s64, [#allocation9], 128, 128, 8
    $region25: #{tpu_custom_call.1} parent=1 // pred_fallthru
      _
    // Predicated region
    $region26: #{tpu_custom_call.1} parent=1 // pred_check
      _
    $region27: #{tpu_custom_call.1} parent=1 // pred_check_branch
      %71 = sbr.rel (0) target = $region29
    $region28: #{tpu_custom_call.1} parent=1 // pred_region
      _
    $region29: #{tpu_custom_call.1} parent=1 // pred_fallthru
      _
    // Predicated region
    $region30: #{tpu_custom_call.1} parent=1 // pred_check
      _
    $region31: #{tpu_custom_call.1} parent=1 // pred_check_branch
      %73 = sbr.rel (0) target = $region33
    $region32: #{tpu_custom_call.1} parent=1 // pred_region
      %s75 = ssub.s32 512, 512
      %76 = vsyncadd [#allocation9], %s75
      %s77 = sshll.u32 [#allocation10], 4
      %s78 = int_to_ptr.vmem [resolvable:$true] %s77
      %83 = dma.hbm_to_vmem [thread:$0]  %s7, 512, %s78, [#allocation9], 128, 128, 8
    $region33: #{tpu_custom_call.1} parent=1 // pred_fallthru
      _
    // Predicated region
    $region34: #{tpu_custom_call.1} parent=1 // pred_check
      _
    $region35: #{tpu_custom_call.1} parent=1 // pred_check_branch
      %85 = sbr.rel (0) target = $region37
    $region36: #{tpu_custom_call.1} parent=1 // pred_region
      _
    $region37: #{tpu_custom_call.1} parent=1 // pred_fallthru
      _
    // Predicated region
    $region38: #{tpu_custom_call.1} parent=1 // pred_check
      _
    $region39: #{tpu_custom_call.1} parent=1 // pred_check_branch
      %87 = sbr.rel (0) target = $region41
    $region40: #{tpu_custom_call.1} parent=1 // pred_region
      %88 = dma.done [#allocation3], 256
    $region41: #{tpu_custom_call.1} parent=1 // pred_fallthru
      _
    // Predicated region
    $region42: #{tpu_custom_call.1} parent=1 // pred_check
      _
    $region43: #{tpu_custom_call.1} parent=1 // pred_check_branch
      %90 = sbr.rel (0) target = $region45
    $region44: #{tpu_custom_call.1} parent=1 // pred_region
      %91 = dma.done [#allocation6], 512
    $region45: #{tpu_custom_call.1} parent=1 // pred_fallthru
      _
    // Predicated region
    $region46: #{tpu_custom_call.1} parent=1 // pred_check
      _
    $region47: #{tpu_custom_call.1} parent=1 // pred_check_branch
      %93 = sbr.rel (0) target = $region49
    $region48: #{tpu_custom_call.1} parent=1 // pred_region
      %94 = dma.done [#allocation6], 512
    $region49: #{tpu_custom_call.1} parent=1 // pred_fallthru
      _
    // Predicated region
    $region50: #{tpu_custom_call.1} parent=1 // pred_check
      _
    $region51: #{tpu_custom_call.1} parent=1 // pred_check_branch
      %96 = sbr.rel (0) target = $region53
    $region52: #{tpu_custom_call.1} parent=1 // pred_region
      %97 = dma.done [#allocation9], 512
    $region53: #{tpu_custom_call.1} parent=1 // pred_fallthru
      _
    // Predicated region
    $region54: #{tpu_custom_call.1} parent=1 // pred_check
      _
    $region55: #{tpu_custom_call.1} parent=1 // pred_check_branch
      %99 = sbr.rel (0) target = $region57
    $region56: #{tpu_custom_call.1} parent=1 // pred_region
      %100 = dma.done [#allocation9], 512
    $region57: #{tpu_custom_call.1} parent=1 // pred_fallthru
      _
    %v101 = vld [vmem:[#allocation2] sm:$0xff]
    %v102 = vld [vmem:[#allocation2 + $0x8] sm:$0xff]
    %v103 = vld [vmem:[#allocation5] sm:$0xff]
    %v104 = vld [vmem:[#allocation5 + $0x8] sm:$0xff]
    %v105 = vld [vmem:[#allocation5 + $0x10] sm:$0xff]
    %v106 = vld [vmem:[#allocation5 + $0x18] sm:$0xff]
    %v107 = vld [vmem:[#allocation7] sm:$0xff]
    %v108 = vld [vmem:[#allocation7 + $0x8] sm:$0xff]
    %v109 = vld [vmem:[#allocation7 + $0x10] sm:$0xff]
    %v110 = vld [vmem:[#allocation7 + $0x18] sm:$0xff]
    %v111 = vld [vmem:[#allocation8] sm:$0xff]
    %v112 = vld [vmem:[#allocation8 + $0x8] sm:$0xff]
    %v113 = vld [vmem:[#allocation8 + $0x10] sm:$0xff]
    %v114 = vld [vmem:[#allocation8 + $0x18] sm:$0xff]
    %v115 = vld [vmem:[#allocation10] sm:$0xff]
    %v116 = vld [vmem:[#allocation10 + $0x8] sm:$0xff]
    %v117 = vld [vmem:[#allocation10 + $0x10] sm:$0xff]
    %v118 = vld [vmem:[#allocation10 + $0x18] sm:$0xff]
    %v119 = vld [vmem:[%s2] sm:$0x1]
    %v120 = vld [vmem:[%s4] sm:$0x1]
    %v121 = vld [vmem:[%s6] sm:$0x1]
    %v122 = vld [vmem:[%s8] sm:$0x1]
    %v124 = vlaneseq
    %v125 = vshrl.u32 %v124, 7
    %v126 = vsub.s32 0, %v125
    %v127 = vrot.slane %v119, %v126
    %vm129 = vcmask 261120
    %v131 = vsel %vm129, %v101, 0
    %v134 = vsel %vm129, %v102, 0
    %136 = vmatprep.subr.mxu0 0.0
    %137 = vmatpush1.msra.mxu0 %v103
    %138 = vmatprep.subr.mxu0 0.0
    %139 = vmatpush1.msra.mxu0 %v104
    %140 = vmatprep.subr.mxu0 0.0
    %141 = vmatpush1.msra.mxu0 %v105
    %142 = vmatprep.subr.mxu0 0.0
    %143 = vmatpush1.msra.mxu0 %v106
    %144 = vmatprep.subr.mxu0 0.0
    %145 = vmatpush1.msra.mxu0 0.0
    %146 = vmatprep.subr.mxu0 0.0
    %147 = vmatpush1.msra.mxu0 0.0
    %148 = vmatprep.subr.mxu0 0.0
    %149 = vmatpush1.msra.mxu0 0.0
    %150 = vmatprep.subr.mxu0 0.0
    %151 = vmatpush1.msra.mxu0 0.0
    %152 = vmatprep.subr.mxu0 0.0
    %153 = vmatpush1.msra.mxu0 0.0
    %154 = vmatprep.subr.mxu0 0.0
    %155 = vmatpush1.msra.mxu0 0.0
    %156 = vmatprep.subr.mxu0 0.0
    %157 = vmatpush1.msra.mxu0 0.0
    %158 = vmatprep.subr.mxu0 0.0
    %159 = vmatpush1.msra.mxu0 0.0
    %160 = vmatprep.subr.mxu0 0.0
    %161 = vmatpush1.msra.mxu0 0.0
    %162 = vmatprep.subr.mxu0 0.0
    %163 = vmatpush1.msra.mxu0 0.0
    %164 = vmatprep.subr.mxu0 0.0
    %165 = vmatpush1.msra.mxu0 0.0
    %166 = vmatprep.subr.mxu0 0.0
    %167 = vmatpush1.msra.mxu0 0.0
    %168 = vmatprep.subr.mxu0 0.0
    %169 = vmatpush1.msra.mxu0 0.0
    %170 = vmatprep.subr.mxu0 0.0
    %171 = vmatpush1.msra.mxu0 0.0
    %172 = vmatprep.subr.mxu0 0.0
    %173 = vmatpush1.msra.mxu0 0.0
    %174 = vmatprep.subr.mxu0 0.0
    %175 = vmatpush1.msra.mxu0 0.0
    %176 = vmatprep.subr.mxu0 0.0
    %177 = vmatpush1.msra.mxu0 0.0
    %178 = vmatprep.subr.mxu0 0.0
    %179 = vmatpush1.msra.mxu0 0.0
    %180 = vmatprep.subr.mxu0 0.0
    %181 = vmatpush1.msra.mxu0 0.0
    %182 = vmatprep.subr.mxu0 0.0
    %183 = vmatpush1.msra.mxu0 0.0
    %184 = vmatprep.subr.mxu0 0.0
    %185 = vmatpush1.msra.mxu0 0.0
    %186 = vmatprep.subr.mxu0 0.0
    %187 = vmatpush1.msra.mxu0 0.0
    %188 = vmatprep.subr.mxu0 0.0
    %189 = vmatpush1.msra.mxu0 0.0
    %190 = vmatprep.subr.mxu0 0.0
    %191 = vmatpush1.msra.mxu0 0.0
    %192 = vmatprep.subr.mxu0 0.0
    %193 = vmatpush1.msra.mxu0 0.0
    %194 = vmatprep.subr.mxu0 0.0
    %195 = vmatpush1.msra.mxu0 0.0
    %196 = vmatprep.subr.mxu0 0.0
    %197 = vmatpush1.msra.mxu0 0.0
    %198 = vmatprep.subr.mxu0 0.0
    %199 = vmatpush1.msra.mxu0 0.0
    %200 = vmatprep.mubr.f32.mxu0 0.0
    %201 = vmatmul.mubr.f32.gmra.mrb[0].mxu0 %v131
    %v202 = vpop.f32.mrb[0].mxu0
    %v203 = vadd.f32 %v127, %v202
    %v204 = vpop.f32.mrb[0].mxu0
    %205 = vmatprep.mubr.f32.mxu0 0.0
    %206 = vmatmul.mubr.f32.gmra.mrb[0].mxu0 %v134
    %v207 = vpop.f32.mrb[0].mxu0
    %v208 = vadd.f32 %v127, %v207
    %v209 = vpop.f32.mrb[0].mxu0
    %210 = vdwg.mxu0
    %v212 = vlaneseq
    %v213 = vshrl.u32 %v212, 7
    %v214 = vsub.s32 0, %v213
    %v215 = vrot.slane %v120, %v214
    %217 = vmatprep.subr.mxu0 0.0
    %218 = vmatpush1.msra.mxu0 %v107
    %219 = vmatprep.subr.mxu0 0.0
    %220 = vmatpush1.msra.mxu0 %v108
    %221 = vmatprep.subr.mxu0 0.0
    %222 = vmatpush1.msra.mxu0 %v109
    %223 = vmatprep.subr.mxu0 0.0
    %224 = vmatpush1.msra.mxu0 %v110
    %225 = vmatprep.subr.mxu0 0.0
    %226 = vmatpush1.msra.mxu0 0.0
    %227 = vmatprep.subr.mxu0 0.0
    %228 = vmatpush1.msra.mxu0 0.0
    %229 = vmatprep.subr.mxu0 0.0
    %230 = vmatpush1.msra.mxu0 0.0
    %231 = vmatprep.subr.mxu0 0.0
    %232 = vmatpush1.msra.mxu0 0.0
    %233 = vmatprep.subr.mxu0 0.0
    %234 = vmatpush1.msra.mxu0 0.0
    %235 = vmatprep.subr.mxu0 0.0
    %236 = vmatpush1.msra.mxu0 0.0
    %237 = vmatprep.subr.mxu0 0.0
    %238 = vmatpush1.msra.mxu0 0.0
    %239 = vmatprep.subr.mxu0 0.0
    %240 = vmatpush1.msra.mxu0 0.0
    %241 = vmatprep.subr.mxu0 0.0
    %242 = vmatpush1.msra.mxu0 0.0
    %243 = vmatprep.subr.mxu0 0.0
    %244 = vmatpush1.msra.mxu0 0.0
    %245 = vmatprep.subr.mxu0 0.0
    %246 = vmatpush1.msra.mxu0 0.0
    %247 = vmatprep.subr.mxu0 0.0
    %248 = vmatpush1.msra.mxu0 0.0
    %249 = vmatprep.subr.mxu0 0.0
    %250 = vmatpush1.msra.mxu0 0.0
    %251 = vmatprep.subr.mxu0 0.0
    %252 = vmatpush1.msra.mxu0 0.0
    %253 = vmatprep.subr.mxu0 0.0
    %254 = vmatpush1.msra.mxu0 0.0
    %255 = vmatprep.subr.mxu0 0.0
    %256 = vmatpush1.msra.mxu0 0.0
    %257 = vmatprep.subr.mxu0 0.0
    %258 = vmatpush1.msra.mxu0 0.0
    %259 = vmatprep.subr.mxu0 0.0
    %260 = vmatpush1.msra.mxu0 0.0
    %261 = vmatprep.subr.mxu0 0.0
    %262 = vmatpush1.msra.mxu0 0.0
    %263 = vmatprep.subr.mxu0 0.0
    %264 = vmatpush1.msra.mxu0 0.0
    %265 = vmatprep.subr.mxu0 0.0
    %266 = vmatpush1.msra.mxu0 0.0
    %267 = vmatprep.subr.mxu0 0.0
    %268 = vmatpush1.msra.mxu0 0.0
    %269 = vmatprep.subr.mxu0 0.0
    %270 = vmatpush1.msra.mxu0 0.0
    %271 = vmatprep.subr.mxu0 0.0
    %272 = vmatpush1.msra.mxu0 0.0
    %273 = vmatprep.subr.mxu0 0.0
    %274 = vmatpush1.msra.mxu0 0.0
    %275 = vmatprep.subr.mxu0 0.0
    %276 = vmatpush1.msra.mxu0 0.0
    %277 = vmatprep.subr.mxu0 0.0
    %278 = vmatpush1.msra.mxu0 0.0
    %279 = vmatprep.subr.mxu0 0.0
    %280 = vmatpush1.msra.mxu0 0.0
    %281 = vmatprep.mubr.f32.mxu0 0.0
    %282 = vmatmul.mubr.f32.gmra.mrb[0].mxu0 %v131
    %v283 = vpop.f32.mrb[0].mxu0
    %v284 = vadd.f32 %v215, %v283
    %v285 = vpop.f32.mrb[0].mxu0
    %286 = vmatprep.mubr.f32.mxu0 0.0
    %287 = vmatmul.mubr.f32.gmra.mrb[0].mxu0 %v134
    %v288 = vpop.f32.mrb[0].mxu0
    %v289 = vadd.f32 %v215, %v288
    %v290 = vpop.f32.mrb[0].mxu0
    %291 = vdwg.mxu0
    %v293 = vlaneseq
    %v294 = vshrl.u32 %v293, 7
    %v295 = vsub.s32 0, %v294
    %v296 = vrot.slane %v121, %v295
    %298 = vmatprep.subr.mxu0 0.0
    %299 = vmatpush1.msra.mxu0 %v111
    %300 = vmatprep.subr.mxu0 0.0
    %301 = vmatpush1.msra.mxu0 %v112
    %302 = vmatprep.subr.mxu0 0.0
    %303 = vmatpush1.msra.mxu0 %v113
    %304 = vmatprep.subr.mxu0 0.0
    %305 = vmatpush1.msra.mxu0 %v114
    %306 = vmatprep.subr.mxu0 0.0
    %307 = vmatpush1.msra.mxu0 0.0
    %308 = vmatprep.subr.mxu0 0.0
    %309 = vmatpush1.msra.mxu0 0.0
    %310 = vmatprep.subr.mxu0 0.0
    %311 = vmatpush1.msra.mxu0 0.0
    %312 = vmatprep.subr.mxu0 0.0
    %313 = vmatpush1.msra.mxu0 0.0
    %314 = vmatprep.subr.mxu0 0.0
    %315 = vmatpush1.msra.mxu0 0.0
    %316 = vmatprep.subr.mxu0 0.0
    %317 = vmatpush1.msra.mxu0 0.0
    %318 = vmatprep.subr.mxu0 0.0
    %319 = vmatpush1.msra.mxu0 0.0
    %320 = vmatprep.subr.mxu0 0.0
    %321 = vmatpush1.msra.mxu0 0.0
    %322 = vmatprep.subr.mxu0 0.0
    %323 = vmatpush1.msra.mxu0 0.0
    %324 = vmatprep.subr.mxu0 0.0
    %325 = vmatpush1.msra.mxu0 0.0
    %326 = vmatprep.subr.mxu0 0.0
    %327 = vmatpush1.msra.mxu0 0.0
    %328 = vmatprep.subr.mxu0 0.0
    %329 = vmatpush1.msra.mxu0 0.0
    %330 = vmatprep.subr.mxu0 0.0
    %331 = vmatpush1.msra.mxu0 0.0
    %332 = vmatprep.subr.mxu0 0.0
    %333 = vmatpush1.msra.mxu0 0.0
    %334 = vmatprep.subr.mxu0 0.0
    %335 = vmatpush1.msra.mxu0 0.0
    %336 = vmatprep.subr.mxu0 0.0
    %337 = vmatpush1.msra.mxu0 0.0
    %338 = vmatprep.subr.mxu0 0.0
    %339 = vmatpush1.msra.mxu0 0.0
    %340 = vmatprep.subr.mxu0 0.0
    %341 = vmatpush1.msra.mxu0 0.0
    %342 = vmatprep.subr.mxu0 0.0
    %343 = vmatpush1.msra.mxu0 0.0
    %344 = vmatprep.subr.mxu0 0.0
    %345 = vmatpush1.msra.mxu0 0.0
    %346 = vmatprep.subr.mxu0 0.0
    %347 = vmatpush1.msra.mxu0 0.0
    %348 = vmatprep.subr.mxu0 0.0
    %349 = vmatpush1.msra.mxu0 0.0
    %350 = vmatprep.subr.mxu0 0.0
    %351 = vmatpush1.msra.mxu0 0.0
    %352 = vmatprep.subr.mxu0 0.0
    %353 = vmatpush1.msra.mxu0 0.0
    %354 = vmatprep.subr.mxu0 0.0
    %355 = vmatpush1.msra.mxu0 0.0
    %356 = vmatprep.subr.mxu0 0.0
    %357 = vmatpush1.msra.mxu0 0.0
    %358 = vmatprep.subr.mxu0 0.0
    %359 = vmatpush1.msra.mxu0 0.0
    %360 = vmatprep.subr.mxu0 0.0
    %361 = vmatpush1.msra.mxu0 0.0
    %362 = vmatprep.mubr.f32.mxu0 0.0
    %363 = vmatmul.mubr.f32.gmra.mrb[0].mxu0 %v131
    %v364 = vpop.f32.mrb[0].mxu0
    %v365 = vadd.f32 %v296, %v364
    %v366 = vpop.f32.mrb[0].mxu0
    %367 = vmatprep.mubr.f32.mxu0 0.0
    %368 = vmatmul.mubr.f32.gmra.mrb[0].mxu0 %v134
    %v369 = vpop.f32.mrb[0].mxu0
    %v370 = vadd.f32 %v296, %v369
    %v371 = vpop.f32.mrb[0].mxu0
    %372 = vdwg.mxu0
    %vm373 = vcmask 64512
    %v375 = vsel %vm373, %v203, 0
    %v378 = vsel %vm373, %v284, 0
    %380 = vmatprep.subr.mxu0 0.0
    %381 = vmatpush1.xpose.msra.mxu0 %v378
    %382 = vmatprep.subr.mxu0 0.0
    %383 = vmatpush1.xpose.msra.mxu0 0.0
    %384 = vmatprep.subr.mxu0 0.0
    %385 = vmatpush1.xpose.msra.mxu0 0.0
    %386 = vmatprep.subr.mxu0 0.0
    %387 = vmatpush1.xpose.msra.mxu0 0.0
    %388 = vmatprep.subr.mxu0 0.0
    %389 = vmatpush1.xpose.msra.mxu0 0.0
    %390 = vmatprep.subr.mxu0 0.0
    %391 = vmatpush1.xpose.msra.mxu0 0.0
    %392 = vmatprep.subr.mxu0 0.0
    %393 = vmatpush1.xpose.msra.mxu0 0.0
    %394 = vmatprep.subr.mxu0 0.0
    %395 = vmatpush1.xpose.msra.mxu0 0.0
    %396 = vmatprep.subr.mxu0 0.0
    %397 = vmatpush1.xpose.msra.mxu0 0.0
    %398 = vmatprep.subr.mxu0 0.0
    %399 = vmatpush1.xpose.msra.mxu0 0.0
    %400 = vmatprep.subr.mxu0 0.0
    %401 = vmatpush1.xpose.msra.mxu0 0.0
    %402 = vmatprep.subr.mxu0 0.0
    %403 = vmatpush1.xpose.msra.mxu0 0.0
    %404 = vmatprep.subr.mxu0 0.0
    %405 = vmatpush1.xpose.msra.mxu0 0.0
    %406 = vmatprep.subr.mxu0 0.0
    %407 = vmatpush1.xpose.msra.mxu0 0.0
    %408 = vmatprep.subr.mxu0 0.0
    %409 = vmatpush1.xpose.msra.mxu0 0.0
    %410 = vmatprep.subr.mxu0 0.0
    %411 = vmatpush1.xpose.msra.mxu0 0.0
    %412 = vmatprep.subr.mxu0 0.0
    %413 = vmatpush1.xpose.msra.mxu0 0.0
    %414 = vmatprep.subr.mxu0 0.0
    %415 = vmatpush1.xpose.msra.mxu0 0.0
    %416 = vmatprep.subr.mxu0 0.0
    %417 = vmatpush1.xpose.msra.mxu0 0.0
    %418 = vmatprep.subr.mxu0 0.0
    %419 = vmatpush1.xpose.msra.mxu0 0.0
    %420 = vmatprep.subr.mxu0 0.0
    %421 = vmatpush1.xpose.msra.mxu0 0.0
    %422 = vmatprep.subr.mxu0 0.0
    %423 = vmatpush1.xpose.msra.mxu0 0.0
    %424 = vmatprep.subr.mxu0 0.0
    %425 = vmatpush1.xpose.msra.mxu0 0.0
    %426 = vmatprep.subr.mxu0 0.0
    %427 = vmatpush1.xpose.msra.mxu0 0.0
    %428 = vmatprep.subr.mxu0 0.0
    %429 = vmatpush1.xpose.msra.mxu0 0.0
    %430 = vmatprep.subr.mxu0 0.0
    %431 = vmatpush1.xpose.msra.mxu0 0.0
    %432 = vmatprep.subr.mxu0 0.0
    %433 = vmatpush1.xpose.msra.mxu0 0.0
    %434 = vmatprep.subr.mxu0 0.0
    %435 = vmatpush1.xpose.msra.mxu0 0.0
    %436 = vmatprep.subr.mxu0 0.0
    %437 = vmatpush1.xpose.msra.mxu0 0.0
    %438 = vmatprep.subr.mxu0 0.0
    %439 = vmatpush1.xpose.msra.mxu0 0.0
    %440 = vmatprep.subr.mxu0 0.0
    %441 = vmatpush1.xpose.msra.mxu0 0.0
    %442 = vmatprep.subr.mxu0 0.0
    %443 = vmatpush1.xpose.msra.mxu0 0.0
    %444 = vmatprep.mubr.f32.mxu0 0.0
    %445 = vmatmul.mubr.f32.gmra.mrb[0].mxu0 %v375
    %v446 = vpop.f32.mrb[0].mxu0
    %v447 = vadd.f32 0.0, %v446
    %v448 = vpop.f32.mrb[0].mxu0
    %449 = vdwg.mxu0
    %v451 = vsel %vm373, %v208, 0
    %v454 = vsel %vm373, %v289, 0
    %456 = vmatprep.subr.mxu0 0.0
    %457 = vmatpush1.xpose.msra.mxu0 %v454
    %458 = vmatprep.subr.mxu0 0.0
    %459 = vmatpush1.xpose.msra.mxu0 0.0
    %460 = vmatprep.subr.mxu0 0.0
    %461 = vmatpush1.xpose.msra.mxu0 0.0
    %462 = vmatprep.subr.mxu0 0.0
    %463 = vmatpush1.xpose.msra.mxu0 0.0
    %464 = vmatprep.subr.mxu0 0.0
    %465 = vmatpush1.xpose.msra.mxu0 0.0
    %466 = vmatprep.subr.mxu0 0.0
    %467 = vmatpush1.xpose.msra.mxu0 0.0
    %468 = vmatprep.subr.mxu0 0.0
    %469 = vmatpush1.xpose.msra.mxu0 0.0
    %470 = vmatprep.subr.mxu0 0.0
    %471 = vmatpush1.xpose.msra.mxu0 0.0
    %472 = vmatprep.subr.mxu0 0.0
    %473 = vmatpush1.xpose.msra.mxu0 0.0
    %474 = vmatprep.subr.mxu0 0.0
    %475 = vmatpush1.xpose.msra.mxu0 0.0
    %476 = vmatprep.subr.mxu0 0.0
    %477 = vmatpush1.xpose.msra.mxu0 0.0
    %478 = vmatprep.subr.mxu0 0.0
    %479 = vmatpush1.xpose.msra.mxu0 0.0
    %480 = vmatprep.subr.mxu0 0.0
    %481 = vmatpush1.xpose.msra.mxu0 0.0
    %482 = vmatprep.subr.mxu0 0.0
    %483 = vmatpush1.xpose.msra.mxu0 0.0
    %484 = vmatprep.subr.mxu0 0.0
    %485 = vmatpush1.xpose.msra.mxu0 0.0
    %486 = vmatprep.subr.mxu0 0.0
    %487 = vmatpush1.xpose.msra.mxu0 0.0
    %488 = vmatprep.subr.mxu0 0.0
    %489 = vmatpush1.xpose.msra.mxu0 0.0
    %490 = vmatprep.subr.mxu0 0.0
    %491 = vmatpush1.xpose.msra.mxu0 0.0
    %492 = vmatprep.subr.mxu0 0.0
    %493 = vmatpush1.xpose.msra.mxu0 0.0
    %494 = vmatprep.subr.mxu0 0.0
    %495 = vmatpush1.xpose.msra.mxu0 0.0
    %496 = vmatprep.subr.mxu0 0.0
    %497 = vmatpush1.xpose.msra.mxu0 0.0
    %498 = vmatprep.subr.mxu0 0.0
    %499 = vmatpush1.xpose.msra.mxu0 0.0
    %500 = vmatprep.subr.mxu0 0.0
    %501 = vmatpush1.xpose.msra.mxu0 0.0
    %502 = vmatprep.subr.mxu0 0.0
    %503 = vmatpush1.xpose.msra.mxu0 0.0
    %504 = vmatprep.subr.mxu0 0.0
    %505 = vmatpush1.xpose.msra.mxu0 0.0
    %506 = vmatprep.subr.mxu0 0.0
    %507 = vmatpush1.xpose.msra.mxu0 0.0
    %508 = vmatprep.subr.mxu0 0.0
    %509 = vmatpush1.xpose.msra.mxu0 0.0
    %510 = vmatprep.subr.mxu0 0.0
    %511 = vmatpush1.xpose.msra.mxu0 0.0
    %512 = vmatprep.subr.mxu0 0.0
    %513 = vmatpush1.xpose.msra.mxu0 0.0
    %514 = vmatprep.subr.mxu0 0.0
    %515 = vmatpush1.xpose.msra.mxu0 0.0
    %516 = vmatprep.subr.mxu0 0.0
    %517 = vmatpush1.xpose.msra.mxu0 0.0
    %518 = vmatprep.subr.mxu0 0.0
    %519 = vmatpush1.xpose.msra.mxu0 0.0
    %520 = vmatprep.mubr.f32.mxu0 0.0
    %521 = vmatmul.mubr.f32.gmra.mrb[0].mxu0 %v451
    %v522 = vpop.f32.mrb[0].mxu0
    %v523 = vadd.f32 0.0, %v522
    %v524 = vpop.f32.mrb[0].mxu0
    %525 = vdwg.mxu0
    %v526 = vsel %vm373, %v447, -inf
    %527 = vmax.xlane.f32.xlu0 %v526
    %v528 = vpop.xlane.xlu0 %527
    %v529 = vsel %vm373, %v523, -inf
    %530 = vmax.xlane.f32.xlu0 %v529
    %v531 = vpop.xlane.xlu0 %530
    %v532 = vsub.f32 %v447, %v528
    %v533 = vsub.f32 %v523, %v531
    %v534 = vmul.f32 %v532, 1.442695
    %v535 = vpow.pop %v534
    %v536 = vmul.f32 %v533, 1.442695
    %v537 = vpow.pop %v536
    %v538 = vsel %vm373, %v535, 0.0
    %539 = vadd.xlane.f32.xlu0 %v538
    %v540 = vpop.xlane.xlu0 %539
    %v541 = vsel %vm373, %v537, 0.0
    %542 = vadd.xlane.f32.xlu0 %v541
    %v543 = vpop.xlane.xlu0 %542
    %v544 = vrcp.pop %v540
    %v545 = vrcp.pop %v543
    %v546 = vmul.f32 %v535, %v544
    %v547 = vmul.f32 %v537, %v545
    %v549 = vsel %vm373, %v546, 0
    %551 = vmatprep.subr.mxu0 0.0
    %552 = vmatpush1.msra.mxu0 %v365
    %553 = vmatprep.subr.mxu0 0.0
    %554 = vmatpush1.msra.mxu0 0.0
    %555 = vmatprep.subr.mxu0 0.0
    %556 = vmatpush1.msra.mxu0 0.0
    %557 = vmatprep.subr.mxu0 0.0
    %558 = vmatpush1.msra.mxu0 0.0
    %559 = vmatprep.subr.mxu0 0.0
    %560 = vmatpush1.msra.mxu0 0.0
    %561 = vmatprep.subr.mxu0 0.0
    %562 = vmatpush1.msra.mxu0 0.0
    %563 = vmatprep.subr.mxu0 0.0
    %564 = vmatpush1.msra.mxu0 0.0
    %565 = vmatprep.subr.mxu0 0.0
    %566 = vmatpush1.msra.mxu0 0.0
    %567 = vmatprep.subr.mxu0 0.0
    %568 = vmatpush1.msra.mxu0 0.0
    %569 = vmatprep.subr.mxu0 0.0
    %570 = vmatpush1.msra.mxu0 0.0
    %571 = vmatprep.subr.mxu0 0.0
    %572 = vmatpush1.msra.mxu0 0.0
    %573 = vmatprep.subr.mxu0 0.0
    %574 = vmatpush1.msra.mxu0 0.0
    %575 = vmatprep.subr.mxu0 0.0
    %576 = vmatpush1.msra.mxu0 0.0
    %577 = vmatprep.subr.mxu0 0.0
    %578 = vmatpush1.msra.mxu0 0.0
    %579 = vmatprep.subr.mxu0 0.0
    %580 = vmatpush1.msra.mxu0 0.0
    %581 = vmatprep.subr.mxu0 0.0
    %582 = vmatpush1.msra.mxu0 0.0
    %583 = vmatprep.subr.mxu0 0.0
    %584 = vmatpush1.msra.mxu0 0.0
    %585 = vmatprep.subr.mxu0 0.0
    %586 = vmatpush1.msra.mxu0 0.0
    %587 = vmatprep.subr.mxu0 0.0
    %588 = vmatpush1.msra.mxu0 0.0
    %589 = vmatprep.subr.mxu0 0.0
    %590 = vmatpush1.msra.mxu0 0.0
    %591 = vmatprep.subr.mxu0 0.0
    %592 = vmatpush1.msra.mxu0 0.0
    %593 = vmatprep.subr.mxu0 0.0
    %594 = vmatpush1.msra.mxu0 0.0
    %595 = vmatprep.subr.mxu0 0.0
    %596 = vmatpush1.msra.mxu0 0.0
    %597 = vmatprep.subr.mxu0 0.0
    %598 = vmatpush1.msra.mxu0 0.0
    %599 = vmatprep.subr.mxu0 0.0
    %600 = vmatpush1.msra.mxu0 0.0
    %601 = vmatprep.subr.mxu0 0.0
    %602 = vmatpush1.msra.mxu0 0.0
    %603 = vmatprep.subr.mxu0 0.0
    %604 = vmatpush1.msra.mxu0 0.0
    %605 = vmatprep.subr.mxu0 0.0
    %606 = vmatpush1.msra.mxu0 0.0
    %607 = vmatprep.subr.mxu0 0.0
    %608 = vmatpush1.msra.mxu0 0.0
    %609 = vmatprep.subr.mxu0 0.0
    %610 = vmatpush1.msra.mxu0 0.0
    %611 = vmatprep.subr.mxu0 0.0
    %612 = vmatpush1.msra.mxu0 0.0
    %613 = vmatprep.subr.mxu0 0.0
    %614 = vmatpush1.msra.mxu0 0.0
    %615 = vmatprep.mubr.f32.mxu0 0.0
    %616 = vmatmul.mubr.f32.gmra.mrb[0].mxu0 %v549
    %v617 = vpop.f32.mrb[0].mxu0
    %v618 = vadd.f32 0.0, %v617
    %v619 = vpop.f32.mrb[0].mxu0
    %620 = vdwg.mxu0
    %v622 = vsel %vm373, %v547, 0
    %624 = vmatprep.subr.mxu0 0.0
    %625 = vmatpush1.msra.mxu0 %v370
    %626 = vmatprep.subr.mxu0 0.0
    %627 = vmatpush1.msra.mxu0 0.0
    %628 = vmatprep.subr.mxu0 0.0
    %629 = vmatpush1.msra.mxu0 0.0
    %630 = vmatprep.subr.mxu0 0.0
    %631 = vmatpush1.msra.mxu0 0.0
    %632 = vmatprep.subr.mxu0 0.0
    %633 = vmatpush1.msra.mxu0 0.0
    %634 = vmatprep.subr.mxu0 0.0
    %635 = vmatpush1.msra.mxu0 0.0
    %636 = vmatprep.subr.mxu0 0.0
    %637 = vmatpush1.msra.mxu0 0.0
    %638 = vmatprep.subr.mxu0 0.0
    %639 = vmatpush1.msra.mxu0 0.0
    %640 = vmatprep.subr.mxu0 0.0
    %641 = vmatpush1.msra.mxu0 0.0
    %642 = vmatprep.subr.mxu0 0.0
    %643 = vmatpush1.msra.mxu0 0.0
    %644 = vmatprep.subr.mxu0 0.0
    %645 = vmatpush1.msra.mxu0 0.0
    %646 = vmatprep.subr.mxu0 0.0
    %647 = vmatpush1.msra.mxu0 0.0
    %648 = vmatprep.subr.mxu0 0.0
    %649 = vmatpush1.msra.mxu0 0.0
    %650 = vmatprep.subr.mxu0 0.0
    %651 = vmatpush1.msra.mxu0 0.0
    %652 = vmatprep.subr.mxu0 0.0
    %653 = vmatpush1.msra.mxu0 0.0
    %654 = vmatprep.subr.mxu0 0.0
    %655 = vmatpush1.msra.mxu0 0.0
    %656 = vmatprep.subr.mxu0 0.0
    %657 = vmatpush1.msra.mxu0 0.0
    %658 = vmatprep.subr.mxu0 0.0
    %659 = vmatpush1.msra.mxu0 0.0
    %660 = vmatprep.subr.mxu0 0.0
    %661 = vmatpush1.msra.mxu0 0.0
    %662 = vmatprep.subr.mxu0 0.0
    %663 = vmatpush1.msra.mxu0 0.0
    %664 = vmatprep.subr.mxu0 0.0
    %665 = vmatpush1.msra.mxu0 0.0
    %666 = vmatprep.subr.mxu0 0.0
    %667 = vmatpush1.msra.mxu0 0.0
    %668 = vmatprep.subr.mxu0 0.0
    %669 = vmatpush1.msra.mxu0 0.0
    %670 = vmatprep.subr.mxu0 0.0
    %671 = vmatpush1.msra.mxu0 0.0
    %672 = vmatprep.subr.mxu0 0.0
    %673 = vmatpush1.msra.mxu0 0.0
    %674 = vmatprep.subr.mxu0 0.0
    %675 = vmatpush1.msra.mxu0 0.0
    %676 = vmatprep.subr.mxu0 0.0
    %677 = vmatpush1.msra.mxu0 0.0
    %678 = vmatprep.subr.mxu0 0.0
    %679 = vmatpush1.msra.mxu0 0.0
    %680 = vmatprep.subr.mxu0 0.0
    %681 = vmatpush1.msra.mxu0 0.0
    %682 = vmatprep.subr.mxu0 0.0
    %683 = vmatpush1.msra.mxu0 0.0
    %684 = vmatprep.subr.mxu0 0.0
    %685 = vmatpush1.msra.mxu0 0.0
    %686 = vmatprep.subr.mxu0 0.0
    %687 = vmatpush1.msra.mxu0 0.0
    %688 = vmatprep.mubr.f32.mxu0 0.0
    %689 = vmatmul.mubr.f32.gmra.mrb[0].mxu0 %v622
    %v690 = vpop.f32.mrb[0].mxu0
    %v691 = vadd.f32 0.0, %v690
    %v692 = vpop.f32.mrb[0].mxu0
    %693 = vdwg.mxu0
    %694 = vrot.lane.b32.xlu0 %v203, 120
    %v695 = vpop.permute.xlu0 %694
    %696 = vrot.lane.b32.xlu0 %v284, 120
    %v697 = vpop.permute.xlu0 %696
    %v698 = vsel %vm373, %v695, 0
    %v700 = vsel %vm373, %v697, 0
    %702 = vmatprep.subr.mxu0 0.0
    %703 = vmatpush1.xpose.msra.mxu0 %v700
    %704 = vmatprep.subr.mxu0 0.0
    %705 = vmatpush1.xpose.msra.mxu0 0.0
    %706 = vmatprep.subr.mxu0 0.0
    %707 = vmatpush1.xpose.msra.mxu0 0.0
    %708 = vmatprep.subr.mxu0 0.0
    %709 = vmatpush1.xpose.msra.mxu0 0.0
    %710 = vmatprep.subr.mxu0 0.0
    %711 = vmatpush1.xpose.msra.mxu0 0.0
    %712 = vmatprep.subr.mxu0 0.0
    %713 = vmatpush1.xpose.msra.mxu0 0.0
    %714 = vmatprep.subr.mxu0 0.0
    %715 = vmatpush1.xpose.msra.mxu0 0.0
    %716 = vmatprep.subr.mxu0 0.0
    %717 = vmatpush1.xpose.msra.mxu0 0.0
    %718 = vmatprep.subr.mxu0 0.0
    %719 = vmatpush1.xpose.msra.mxu0 0.0
    %720 = vmatprep.subr.mxu0 0.0
    %721 = vmatpush1.xpose.msra.mxu0 0.0
    %722 = vmatprep.subr.mxu0 0.0
    %723 = vmatpush1.xpose.msra.mxu0 0.0
    %724 = vmatprep.subr.mxu0 0.0
    %725 = vmatpush1.xpose.msra.mxu0 0.0
    %726 = vmatprep.subr.mxu0 0.0
    %727 = vmatpush1.xpose.msra.mxu0 0.0
    %728 = vmatprep.subr.mxu0 0.0
    %729 = vmatpush1.xpose.msra.mxu0 0.0
    %730 = vmatprep.subr.mxu0 0.0
    %731 = vmatpush1.xpose.msra.mxu0 0.0
    %732 = vmatprep.subr.mxu0 0.0
    %733 = vmatpush1.xpose.msra.mxu0 0.0
    %734 = vmatprep.subr.mxu0 0.0
    %735 = vmatpush1.xpose.msra.mxu0 0.0
    %736 = vmatprep.subr.mxu0 0.0
    %737 = vmatpush1.xpose.msra.mxu0 0.0
    %738 = vmatprep.subr.mxu0 0.0
    %739 = vmatpush1.xpose.msra.mxu0 0.0
    %740 = vmatprep.subr.mxu0 0.0
    %741 = vmatpush1.xpose.msra.mxu0 0.0
    %742 = vmatprep.subr.mxu0 0.0
    %743 = vmatpush1.xpose.msra.mxu0 0.0
    %744 = vmatprep.subr.mxu0 0.0
    %745 = vmatpush1.xpose.msra.mxu0 0.0
    %746 = vmatprep.subr.mxu0 0.0
    %747 = vmatpush1.xpose.msra.mxu0 0.0
    %748 = vmatprep.subr.mxu0 0.0
    %749 = vmatpush1.xpose.msra.mxu0 0.0
    %750 = vmatprep.subr.mxu0 0.0
    %751 = vmatpush1.xpose.msra.mxu0 0.0
    %752 = vmatprep.subr.mxu0 0.0
    %753 = vmatpush1.xpose.msra.mxu0 0.0
    %754 = vmatprep.subr.mxu0 0.0
    %755 = vmatpush1.xpose.msra.mxu0 0.0
    %756 = vmatprep.subr.mxu0 0.0
    %757 = vmatpush1.xpose.msra.mxu0 0.0
    %758 = vmatprep.subr.mxu0 0.0
    %759 = vmatpush1.xpose.msra.mxu0 0.0
    %760 = vmatprep.subr.mxu0 0.0
    %761 = vmatpush1.xpose.msra.mxu0 0.0
    %762 = vmatprep.subr.mxu0 0.0
    %763 = vmatpush1.xpose.msra.mxu0 0.0
    %764 = vmatprep.subr.mxu0 0.0
    %765 = vmatpush1.xpose.msra.mxu0 0.0
    %766 = vmatprep.mubr.f32.mxu0 0.0
    %767 = vmatmul.mubr.f32.gmra.mrb[0].mxu0 %v698
    %v768 = vpop.f32.mrb[0].mxu0
    %v769 = vadd.f32 0.0, %v768
    %v770 = vpop.f32.mrb[0].mxu0
    %771 = vdwg.mxu0
    %772 = vrot.lane.b32.xlu0 %v208, 120
    %v773 = vpop.permute.xlu0 %772
    %774 = vrot.lane.b32.xlu0 %v289, 120
    %v775 = vpop.permute.xlu0 %774
    %v776 = vsel %vm373, %v773, 0
    %v778 = vsel %vm373, %v775, 0
    %780 = vmatprep.subr.mxu0 0.0
    %781 = vmatpush1.xpose.msra.mxu0 %v778
    %782 = vmatprep.subr.mxu0 0.0
    %783 = vmatpush1.xpose.msra.mxu0 0.0
    %784 = vmatprep.subr.mxu0 0.0
    %785 = vmatpush1.xpose.msra.mxu0 0.0
    %786 = vmatprep.subr.mxu0 0.0
    %787 = vmatpush1.xpose.msra.mxu0 0.0
    %788 = vmatprep.subr.mxu0 0.0
    %789 = vmatpush1.xpose.msra.mxu0 0.0
    %790 = vmatprep.subr.mxu0 0.0
    %791 = vmatpush1.xpose.msra.mxu0 0.0
    %792 = vmatprep.subr.mxu0 0.0
    %793 = vmatpush1.xpose.msra.mxu0 0.0
    %794 = vmatprep.subr.mxu0 0.0
    %795 = vmatpush1.xpose.msra.mxu0 0.0
    %796 = vmatprep.subr.mxu0 0.0
    %797 = vmatpush1.xpose.msra.mxu0 0.0
    %798 = vmatprep.subr.mxu0 0.0
    %799 = vmatpush1.xpose.msra.mxu0 0.0
    %800 = vmatprep.subr.mxu0 0.0
    %801 = vmatpush1.xpose.msra.mxu0 0.0
    %802 = vmatprep.subr.mxu0 0.0
    %803 = vmatpush1.xpose.msra.mxu0 0.0
    %804 = vmatprep.subr.mxu0 0.0
    %805 = vmatpush1.xpose.msra.mxu0 0.0
    %806 = vmatprep.subr.mxu0 0.0
    %807 = vmatpush1.xpose.msra.mxu0 0.0
    %808 = vmatprep.subr.mxu0 0.0
    %809 = vmatpush1.xpose.msra.mxu0 0.0
    %810 = vmatprep.subr.mxu0 0.0
    %811 = vmatpush1.xpose.msra.mxu0 0.0
    %812 = vmatprep.subr.mxu0 0.0
    %813 = vmatpush1.xpose.msra.mxu0 0.0
    %814 = vmatprep.subr.mxu0 0.0
    %815 = vmatpush1.xpose.msra.mxu0 0.0
    %816 = vmatprep.subr.mxu0 0.0
    %817 = vmatpush1.xpose.msra.mxu0 0.0
    %818 = vmatprep.subr.mxu0 0.0
    %819 = vmatpush1.xpose.msra.mxu0 0.0
    %820 = vmatprep.subr.mxu0 0.0
    %821 = vmatpush1.xpose.msra.mxu0 0.0
    %822 = vmatprep.subr.mxu0 0.0
    %823 = vmatpush1.xpose.msra.mxu0 0.0
    %824 = vmatprep.subr.mxu0 0.0
    %825 = vmatpush1.xpose.msra.mxu0 0.0
    %826 = vmatprep.subr.mxu0 0.0
    %827 = vmatpush1.xpose.msra.mxu0 0.0
    %828 = vmatprep.subr.mxu0 0.0
    %829 = vmatpush1.xpose.msra.mxu0 0.0
    %830 = vmatprep.subr.mxu0 0.0
    %831 = vmatpush1.xpose.msra.mxu0 0.0
    %832 = vmatprep.subr.mxu0 0.0
    %833 = vmatpush1.xpose.msra.mxu0 0.0
    %834 = vmatprep.subr.mxu0 0.0
    %835 = vmatpush1.xpose.msra.mxu0 0.0
    %836 = vmatprep.subr.mxu0 0.0
    %837 = vmatpush1.xpose.msra.mxu0 0.0
    %838 = vmatprep.subr.mxu0 0.0
    %839 = vmatpush1.xpose.msra.mxu0 0.0
    %840 = vmatprep.subr.mxu0 0.0
    %841 = vmatpush1.xpose.msra.mxu0 0.0
    %842 = vmatprep.subr.mxu0 0.0
    %843 = vmatpush1.xpose.msra.mxu0 0.0
    %844 = vmatprep.mubr.f32.mxu0 0.0
    %845 = vmatmul.mubr.f32.gmra.mrb[0].mxu0 %v776
    %v846 = vpop.f32.mrb[0].mxu0
    %v847 = vadd.f32 0.0, %v846
    %v848 = vpop.f32.mrb[0].mxu0
    %849 = vdwg.mxu0
    %v850 = vsel %vm373, %v769, -inf
    %851 = vmax.xlane.f32.xlu0 %v850
    %v852 = vpop.xlane.xlu0 %851
    %v853 = vsel %vm373, %v847, -inf
    %854 = vmax.xlane.f32.xlu0 %v853
    %v855 = vpop.xlane.xlu0 %854
    %v856 = vsub.f32 %v769, %v852
    %v857 = vsub.f32 %v847, %v855
    %v858 = vmul.f32 %v856, 1.442695
    %v859 = vpow.pop %v858
    %v860 = vmul.f32 %v857, 1.442695
    %v861 = vpow.pop %v860
    %v862 = vsel %vm373, %v859, 0.0
    %863 = vadd.xlane.f32.xlu0 %v862
    %v864 = vpop.xlane.xlu0 %863
    %v865 = vsel %vm373, %v861, 0.0
    %866 = vadd.xlane.f32.xlu0 %v865
    %v867 = vpop.xlane.xlu0 %866
    %v868 = vrcp.pop %v864
    %v869 = vrcp.pop %v867
    %v870 = vmul.f32 %v859, %v868
    %v871 = vmul.f32 %v861, %v869
    %873 = vrot.lane.b32.xlu0 %v365, 120
    %v874 = vpop.permute.xlu0 %873
    %v877 = vsel %vm373, %v870, 0
    %879 = vmatprep.subr.mxu0 0.0
    %880 = vmatpush1.msra.mxu0 %v874
    %881 = vmatprep.subr.mxu0 0.0
    %882 = vmatpush1.msra.mxu0 0.0
    %883 = vmatprep.subr.mxu0 0.0
    %884 = vmatpush1.msra.mxu0 0.0
    %885 = vmatprep.subr.mxu0 0.0
    %886 = vmatpush1.msra.mxu0 0.0
    %887 = vmatprep.subr.mxu0 0.0
    %888 = vmatpush1.msra.mxu0 0.0
    %889 = vmatprep.subr.mxu0 0.0
    %890 = vmatpush1.msra.mxu0 0.0
    %891 = vmatprep.subr.mxu0 0.0
    %892 = vmatpush1.msra.mxu0 0.0
    %893 = vmatprep.subr.mxu0 0.0
    %894 = vmatpush1.msra.mxu0 0.0
    %895 = vmatprep.subr.mxu0 0.0
    %896 = vmatpush1.msra.mxu0 0.0
    %897 = vmatprep.subr.mxu0 0.0
    %898 = vmatpush1.msra.mxu0 0.0
    %899 = vmatprep.subr.mxu0 0.0
    %900 = vmatpush1.msra.mxu0 0.0
    %901 = vmatprep.subr.mxu0 0.0
    %902 = vmatpush1.msra.mxu0 0.0
    %903 = vmatprep.subr.mxu0 0.0
    %904 = vmatpush1.msra.mxu0 0.0
    %905 = vmatprep.subr.mxu0 0.0
    %906 = vmatpush1.msra.mxu0 0.0
    %907 = vmatprep.subr.mxu0 0.0
    %908 = vmatpush1.msra.mxu0 0.0
    %909 = vmatprep.subr.mxu0 0.0
    %910 = vmatpush1.msra.mxu0 0.0
    %911 = vmatprep.subr.mxu0 0.0
    %912 = vmatpush1.msra.mxu0 0.0
    %913 = vmatprep.subr.mxu0 0.0
    %914 = vmatpush1.msra.mxu0 0.0
    %915 = vmatprep.subr.mxu0 0.0
    %916 = vmatpush1.msra.mxu0 0.0
    %917 = vmatprep.subr.mxu0 0.0
    %918 = vmatpush1.msra.mxu0 0.0
    %919 = vmatprep.subr.mxu0 0.0
    %920 = vmatpush1.msra.mxu0 0.0
    %921 = vmatprep.subr.mxu0 0.0
    %922 = vmatpush1.msra.mxu0 0.0
    %923 = vmatprep.subr.mxu0 0.0
    %924 = vmatpush1.msra.mxu0 0.0
    %925 = vmatprep.subr.mxu0 0.0
    %926 = vmatpush1.msra.mxu0 0.0
    %927 = vmatprep.subr.mxu0 0.0
    %928 = vmatpush1.msra.mxu0 0.0
    %929 = vmatprep.subr.mxu0 0.0
    %930 = vmatpush1.msra.mxu0 0.0
    %931 = vmatprep.subr.mxu0 0.0
    %932 = vmatpush1.msra.mxu0 0.0
    %933 = vmatprep.subr.mxu0 0.0
    %934 = vmatpush1.msra.mxu0 0.0
    %935 = vmatprep.subr.mxu0 0.0
    %936 = vmatpush1.msra.mxu0 0.0
    %937 = vmatprep.subr.mxu0 0.0
    %938 = vmatpush1.msra.mxu0 0.0
    %939 = vmatprep.subr.mxu0 0.0
    %940 = vmatpush1.msra.mxu0 0.0
    %941 = vmatprep.subr.mxu0 0.0
    %942 = vmatpush1.msra.mxu0 0.0
    %943 = vmatprep.mubr.f32.mxu0 0.0
    %944 = vmatmul.mubr.f32.gmra.mrb[0].mxu0 %v877
    %v945 = vpop.f32.mrb[0].mxu0
    %v946 = vadd.f32 0.0, %v945
    %v947 = vpop.f32.mrb[0].mxu0
    %948 = vdwg.mxu0
    %950 = vrot.lane.b32.xlu0 %v370, 120
    %v951 = vpop.permute.xlu0 %950
    %v954 = vsel %vm373, %v871, 0
    %956 = vmatprep.subr.mxu0 0.0
    %957 = vmatpush1.msra.mxu0 %v951
    %958 = vmatprep.subr.mxu0 0.0
    %959 = vmatpush1.msra.mxu0 0.0
    %960 = vmatprep.subr.mxu0 0.0
    %961 = vmatpush1.msra.mxu0 0.0
    %962 = vmatprep.subr.mxu0 0.0
    %963 = vmatpush1.msra.mxu0 0.0
    %964 = vmatprep.subr.mxu0 0.0
    %965 = vmatpush1.msra.mxu0 0.0
    %966 = vmatprep.subr.mxu0 0.0
    %967 = vmatpush1.msra.mxu0 0.0
    %968 = vmatprep.subr.mxu0 0.0
    %969 = vmatpush1.msra.mxu0 0.0
    %970 = vmatprep.subr.mxu0 0.0
    %971 = vmatpush1.msra.mxu0 0.0
    %972 = vmatprep.subr.mxu0 0.0
    %973 = vmatpush1.msra.mxu0 0.0
    %974 = vmatprep.subr.mxu0 0.0
    %975 = vmatpush1.msra.mxu0 0.0
    %976 = vmatprep.subr.mxu0 0.0
    %977 = vmatpush1.msra.mxu0 0.0
    %978 = vmatprep.subr.mxu0 0.0
    %979 = vmatpush1.msra.mxu0 0.0
    %980 = vmatprep.subr.mxu0 0.0
    %981 = vmatpush1.msra.mxu0 0.0
    %982 = vmatprep.subr.mxu0 0.0
    %983 = vmatpush1.msra.mxu0 0.0
    %984 = vmatprep.subr.mxu0 0.0
    %985 = vmatpush1.msra.mxu0 0.0
    %986 = vmatprep.subr.mxu0 0.0
    %987 = vmatpush1.msra.mxu0 0.0
    %988 = vmatprep.subr.mxu0 0.0
    %989 = vmatpush1.msra.mxu0 0.0
    %990 = vmatprep.subr.mxu0 0.0
    %991 = vmatpush1.msra.mxu0 0.0
    %992 = vmatprep.subr.mxu0 0.0
    %993 = vmatpush1.msra.mxu0 0.0
    %994 = vmatprep.subr.mxu0 0.0
    %995 = vmatpush1.msra.mxu0 0.0
    %996 = vmatprep.subr.mxu0 0.0
    %997 = vmatpush1.msra.mxu0 0.0
    %998 = vmatprep.subr.mxu0 0.0
    %999 = vmatpush1.msra.mxu0 0.0
    %1000 = vmatprep.subr.mxu0 0.0
    %1001 = vmatpush1.msra.mxu0 0.0
    %1002 = vmatprep.subr.mxu0 0.0
    %1003 = vmatpush1.msra.mxu0 0.0
    %1004 = vmatprep.subr.mxu0 0.0
    %1005 = vmatpush1.msra.mxu0 0.0
    %1006 = vmatprep.subr.mxu0 0.0
    %1007 = vmatpush1.msra.mxu0 0.0
    %1008 = vmatprep.subr.mxu0 0.0
    %1009 = vmatpush1.msra.mxu0 0.0
    %1010 = vmatprep.subr.mxu0 0.0
    %1011 = vmatpush1.msra.mxu0 0.0
    %1012 = vmatprep.subr.mxu0 0.0
    %1013 = vmatpush1.msra.mxu0 0.0
    %1014 = vmatprep.subr.mxu0 0.0
    %1015 = vmatpush1.msra.mxu0 0.0
    %1016 = vmatprep.subr.mxu0 0.0
    %1017 = vmatpush1.msra.mxu0 0.0
    %1018 = vmatprep.subr.mxu0 0.0
    %1019 = vmatpush1.msra.mxu0 0.0
    %1020 = vmatprep.mubr.f32.mxu0 0.0
    %1021 = vmatmul.mubr.f32.gmra.mrb[0].mxu0 %v954
    %v1022 = vpop.f32.mrb[0].mxu0
    %v1023 = vadd.f32 0.0, %v1022
    %v1024 = vpop.f32.mrb[0].mxu0
    %1025 = vdwg.mxu0
    %v1027 = vsel %vm373, %v946, 0
    %v1030 = vsel %vm373, %v1023, 0
    %1032 = vmatprep.subr.mxu0 0.0
    %1033 = vmatpush1.msra.mxu0 %v116
    %1034 = vmatprep.subr.mxu0 0.0
    %1035 = vmatpush1.msra.mxu0 0.0
    %1036 = vmatprep.subr.mxu0 0.0
    %1037 = vmatpush1.msra.mxu0 0.0
    %1038 = vmatprep.subr.mxu0 0.0
    %1039 = vmatpush1.msra.mxu0 0.0
    %1040 = vmatprep.subr.mxu0 0.0
    %1041 = vmatpush1.msra.mxu0 0.0
    %1042 = vmatprep.subr.mxu0 0.0
    %1043 = vmatpush1.msra.mxu0 0.0
    %1044 = vmatprep.subr.mxu0 0.0
    %1045 = vmatpush1.msra.mxu0 0.0
    %1046 = vmatprep.subr.mxu0 0.0
    %1047 = vmatpush1.msra.mxu0 0.0
    %1048 = vmatprep.subr.mxu0 0.0
    %1049 = vmatpush1.msra.mxu0 0.0
    %1050 = vmatprep.subr.mxu0 0.0
    %1051 = vmatpush1.msra.mxu0 0.0
    %1052 = vmatprep.subr.mxu0 0.0
    %1053 = vmatpush1.msra.mxu0 0.0
    %1054 = vmatprep.subr.mxu0 0.0
    %1055 = vmatpush1.msra.mxu0 0.0
    %1056 = vmatprep.subr.mxu0 0.0
    %1057 = vmatpush1.msra.mxu0 0.0
    %1058 = vmatprep.subr.mxu0 0.0
    %1059 = vmatpush1.msra.mxu0 0.0
    %1060 = vmatprep.subr.mxu0 0.0
    %1061 = vmatpush1.msra.mxu0 0.0
    %1062 = vmatprep.subr.mxu0 0.0
    %1063 = vmatpush1.msra.mxu0 0.0
    %1064 = vmatprep.subr.mxu0 0.0
    %1065 = vmatpush1.msra.mxu0 0.0
    %1066 = vmatprep.subr.mxu0 0.0
    %1067 = vmatpush1.msra.mxu0 0.0
    %1068 = vmatprep.subr.mxu0 0.0
    %1069 = vmatpush1.msra.mxu0 0.0
    %1070 = vmatprep.subr.mxu0 0.0
    %1071 = vmatpush1.msra.mxu0 0.0
    %1072 = vmatprep.subr.mxu0 0.0
    %1073 = vmatpush1.msra.mxu0 0.0
    %1074 = vmatprep.subr.mxu0 0.0
    %1075 = vmatpush1.msra.mxu0 0.0
    %1076 = vmatprep.subr.mxu0 0.0
    %1077 = vmatpush1.msra.mxu0 0.0
    %1078 = vmatprep.subr.mxu0 0.0
    %1079 = vmatpush1.msra.mxu0 0.0
    %1080 = vmatprep.subr.mxu0 0.0
    %1081 = vmatpush1.msra.mxu0 0.0
    %1082 = vmatprep.subr.mxu0 0.0
    %1083 = vmatpush1.msra.mxu0 0.0
    %1084 = vmatprep.subr.mxu0 0.0
    %1085 = vmatpush1.msra.mxu0 0.0
    %1086 = vmatprep.subr.mxu0 0.0
    %1087 = vmatpush1.msra.mxu0 0.0
    %1088 = vmatprep.subr.mxu0 0.0
    %1089 = vmatpush1.msra.mxu0 0.0
    %1090 = vmatprep.subr.mxu0 0.0
    %1091 = vmatpush1.msra.mxu0 0.0
    %1092 = vmatprep.subr.mxu0 0.0
    %1093 = vmatpush1.msra.mxu0 0.0
    %1094 = vmatprep.subr.mxu0 0.0
    %1095 = vmatpush1.msra.mxu0 0.0
    %1096 = vmatprep.mubr.f32.mxu0 0.0
    %1097 = vmatmul.mubr.f32.gmra.mrb[0].mxu0 %v1027
    %v1098 = vpop.f32.mrb[0].mxu0
    %v1099 = vadd.f32 0.0, %v1098
    %v1100 = vpop.f32.mrb[0].mxu0
    %1101 = vmatprep.mubr.f32.mxu0 0.0
    %1102 = vmatmul.mubr.f32.gmra.mrb[0].mxu0 %v1030
    %v1103 = vpop.f32.mrb[0].mxu0
    %v1104 = vadd.f32 0.0, %v1103
    %v1105 = vpop.f32.mrb[0].mxu0
    %1106 = vdwg.mxu0
    %v1108 = vsel %vm373, %v618, 0
    %v1111 = vsel %vm373, %v691, 0
    %1113 = vmatprep.subr.mxu0 0.0
    %1114 = vmatpush1.msra.mxu0 %v115
    %1115 = vmatprep.subr.mxu0 0.0
    %1116 = vmatpush1.msra.mxu0 0.0
    %1117 = vmatprep.subr.mxu0 0.0
    %1118 = vmatpush1.msra.mxu0 0.0
    %1119 = vmatprep.subr.mxu0 0.0
    %1120 = vmatpush1.msra.mxu0 0.0
    %1121 = vmatprep.subr.mxu0 0.0
    %1122 = vmatpush1.msra.mxu0 0.0
    %1123 = vmatprep.subr.mxu0 0.0
    %1124 = vmatpush1.msra.mxu0 0.0
    %1125 = vmatprep.subr.mxu0 0.0
    %1126 = vmatpush1.msra.mxu0 0.0
    %1127 = vmatprep.subr.mxu0 0.0
    %1128 = vmatpush1.msra.mxu0 0.0
    %1129 = vmatprep.subr.mxu0 0.0
    %1130 = vmatpush1.msra.mxu0 0.0
    %1131 = vmatprep.subr.mxu0 0.0
    %1132 = vmatpush1.msra.mxu0 0.0
    %1133 = vmatprep.subr.mxu0 0.0
    %1134 = vmatpush1.msra.mxu0 0.0
    %1135 = vmatprep.subr.mxu0 0.0
    %1136 = vmatpush1.msra.mxu0 0.0
    %1137 = vmatprep.subr.mxu0 0.0
    %1138 = vmatpush1.msra.mxu0 0.0
    %1139 = vmatprep.subr.mxu0 0.0
    %1140 = vmatpush1.msra.mxu0 0.0
    %1141 = vmatprep.subr.mxu0 0.0
    %1142 = vmatpush1.msra.mxu0 0.0
    %1143 = vmatprep.subr.mxu0 0.0
    %1144 = vmatpush1.msra.mxu0 0.0
    %1145 = vmatprep.subr.mxu0 0.0
    %1146 = vmatpush1.msra.mxu0 0.0
    %1147 = vmatprep.subr.mxu0 0.0
    %1148 = vmatpush1.msra.mxu0 0.0
    %1149 = vmatprep.subr.mxu0 0.0
    %1150 = vmatpush1.msra.mxu0 0.0
    %1151 = vmatprep.subr.mxu0 0.0
    %1152 = vmatpush1.msra.mxu0 0.0
    %1153 = vmatprep.subr.mxu0 0.0
    %1154 = vmatpush1.msra.mxu0 0.0
    %1155 = vmatprep.subr.mxu0 0.0
    %1156 = vmatpush1.msra.mxu0 0.0
    %1157 = vmatprep.subr.mxu0 0.0
    %1158 = vmatpush1.msra.mxu0 0.0
    %1159 = vmatprep.subr.mxu0 0.0
    %1160 = vmatpush1.msra.mxu0 0.0
    %1161 = vmatprep.subr.mxu0 0.0
    %1162 = vmatpush1.msra.mxu0 0.0
    %1163 = vmatprep.subr.mxu0 0.0
    %1164 = vmatpush1.msra.mxu0 0.0
    %1165 = vmatprep.subr.mxu0 0.0
    %1166 = vmatpush1.msra.mxu0 0.0
    %1167 = vmatprep.subr.mxu0 0.0
    %1168 = vmatpush1.msra.mxu0 0.0
    %1169 = vmatprep.subr.mxu0 0.0
    %1170 = vmatpush1.msra.mxu0 0.0
    %1171 = vmatprep.subr.mxu0 0.0
    %1172 = vmatpush1.msra.mxu0 0.0
    %1173 = vmatprep.subr.mxu0 0.0
    %1174 = vmatpush1.msra.mxu0 0.0
    %1175 = vmatprep.subr.mxu0 0.0
    %1176 = vmatpush1.msra.mxu0 0.0
    %1177 = vmatprep.mubr.f32.mxu0 0.0
    %1178 = vmatmul.mubr.f32.gmra.mrb[0].mxu0 %v1108
    %v1179 = vpop.f32.mrb[0].mxu0
    %v1180 = vadd.f32 %v1099, %v1179
    %v1181 = vpop.f32.mrb[0].mxu0
    %1182 = vmatprep.mubr.f32.mxu0 0.0
    %1183 = vmatmul.mubr.f32.gmra.mrb[0].mxu0 %v1111
    %v1184 = vpop.f32.mrb[0].mxu0
    %v1185 = vadd.f32 %v1104, %v1184
    %v1186 = vpop.f32.mrb[0].mxu0
    %1187 = vdwg.mxu0
    %1188 = vrot.lane.b32.xlu0 %v203, 112
    %v1189 = vpop.permute.xlu0 %1188
    %1190 = vrot.lane.b32.xlu0 %v284, 112
    %v1191 = vpop.permute.xlu0 %1190
    %v1192 = vsel %vm373, %v1189, 0
    %v1194 = vsel %vm373, %v1191, 0
    %1196 = vmatprep.subr.mxu0 0.0
    %1197 = vmatpush1.xpose.msra.mxu0 %v1194
    %1198 = vmatprep.subr.mxu0 0.0
    %1199 = vmatpush1.xpose.msra.mxu0 0.0
    %1200 = vmatprep.subr.mxu0 0.0
    %1201 = vmatpush1.xpose.msra.mxu0 0.0
    %1202 = vmatprep.subr.mxu0 0.0
    %1203 = vmatpush1.xpose.msra.mxu0 0.0
    %1204 = vmatprep.subr.mxu0 0.0
    %1205 = vmatpush1.xpose.msra.mxu0 0.0
    %1206 = vmatprep.subr.mxu0 0.0
    %1207 = vmatpush1.xpose.msra.mxu0 0.0
    %1208 = vmatprep.subr.mxu0 0.0
    %1209 = vmatpush1.xpose.msra.mxu0 0.0
    %1210 = vmatprep.subr.mxu0 0.0
    %1211 = vmatpush1.xpose.msra.mxu0 0.0
    %1212 = vmatprep.subr.mxu0 0.0
    %1213 = vmatpush1.xpose.msra.mxu0 0.0
    %1214 = vmatprep.subr.mxu0 0.0
    %1215 = vmatpush1.xpose.msra.mxu0 0.0
    %1216 = vmatprep.subr.mxu0 0.0
    %1217 = vmatpush1.xpose.msra.mxu0 0.0
    %1218 = vmatprep.subr.mxu0 0.0
    %1219 = vmatpush1.xpose.msra.mxu0 0.0
    %1220 = vmatprep.subr.mxu0 0.0
    %1221 = vmatpush1.xpose.msra.mxu0 0.0
    %1222 = vmatprep.subr.mxu0 0.0
    %1223 = vmatpush1.xpose.msra.mxu0 0.0
    %1224 = vmatprep.subr.mxu0 0.0
    %1225 = vmatpush1.xpose.msra.mxu0 0.0
    %1226 = vmatprep.subr.mxu0 0.0
    %1227 = vmatpush1.xpose.msra.mxu0 0.0
    %1228 = vmatprep.subr.mxu0 0.0
    %1229 = vmatpush1.xpose.msra.mxu0 0.0
    %1230 = vmatprep.subr.mxu0 0.0
    %1231 = vmatpush1.xpose.msra.mxu0 0.0
    %1232 = vmatprep.subr.mxu0 0.0
    %1233 = vmatpush1.xpose.msra.mxu0 0.0
    %1234 = vmatprep.subr.mxu0 0.0
    %1235 = vmatpush1.xpose.msra.mxu0 0.0
    %1236 = vmatprep.subr.mxu0 0.0
    %1237 = vmatpush1.xpose.msra.mxu0 0.0
    %1238 = vmatprep.subr.mxu0 0.0
    %1239 = vmatpush1.xpose.msra.mxu0 0.0
    %1240 = vmatprep.subr.mxu0 0.0
    %1241 = vmatpush1.xpose.msra.mxu0 0.0
    %1242 = vmatprep.subr.mxu0 0.0
    %1243 = vmatpush1.xpose.msra.mxu0 0.0
    %1244 = vmatprep.subr.mxu0 0.0
    %1245 = vmatpush1.xpose.msra.mxu0 0.0
    %1246 = vmatprep.subr.mxu0 0.0
    %1247 = vmatpush1.xpose.msra.mxu0 0.0
    %1248 = vmatprep.subr.mxu0 0.0
    %1249 = vmatpush1.xpose.msra.mxu0 0.0
    %1250 = vmatprep.subr.mxu0 0.0
    %1251 = vmatpush1.xpose.msra.mxu0 0.0
    %1252 = vmatprep.subr.mxu0 0.0
    %1253 = vmatpush1.xpose.msra.mxu0 0.0
    %1254 = vmatprep.subr.mxu0 0.0
    %1255 = vmatpush1.xpose.msra.mxu0 0.0
    %1256 = vmatprep.subr.mxu0 0.0
    %1257 = vmatpush1.xpose.msra.mxu0 0.0
    %1258 = vmatprep.subr.mxu0 0.0
    %1259 = vmatpush1.xpose.msra.mxu0 0.0
    %1260 = vmatprep.mubr.f32.mxu0 0.0
    %1261 = vmatmul.mubr.f32.gmra.mrb[0].mxu0 %v1192
    %v1262 = vpop.f32.mrb[0].mxu0
    %v1263 = vadd.f32 0.0, %v1262
    %v1264 = vpop.f32.mrb[0].mxu0
    %1265 = vdwg.mxu0
    %1266 = vrot.lane.b32.xlu0 %v208, 112
    %v1267 = vpop.permute.xlu0 %1266
    %1268 = vrot.lane.b32.xlu0 %v289, 112
    %v1269 = vpop.permute.xlu0 %1268
    %v1270 = vsel %vm373, %v1267, 0
    %v1272 = vsel %vm373, %v1269, 0
    %1274 = vmatprep.subr.mxu0 0.0
    %1275 = vmatpush1.xpose.msra.mxu0 %v1272
    %1276 = vmatprep.subr.mxu0 0.0
    %1277 = vmatpush1.xpose.msra.mxu0 0.0
    %1278 = vmatprep.subr.mxu0 0.0
    %1279 = vmatpush1.xpose.msra.mxu0 0.0
    %1280 = vmatprep.subr.mxu0 0.0
    %1281 = vmatpush1.xpose.msra.mxu0 0.0
    %1282 = vmatprep.subr.mxu0 0.0
    %1283 = vmatpush1.xpose.msra.mxu0 0.0
    %1284 = vmatprep.subr.mxu0 0.0
    %1285 = vmatpush1.xpose.msra.mxu0 0.0
    %1286 = vmatprep.subr.mxu0 0.0
    %1287 = vmatpush1.xpose.msra.mxu0 0.0
    %1288 = vmatprep.subr.mxu0 0.0
    %1289 = vmatpush1.xpose.msra.mxu0 0.0
    %1290 = vmatprep.subr.mxu0 0.0
    %1291 = vmatpush1.xpose.msra.mxu0 0.0
    %1292 = vmatprep.subr.mxu0 0.0
    %1293 = vmatpush1.xpose.msra.mxu0 0.0
    %1294 = vmatprep.subr.mxu0 0.0
    %1295 = vmatpush1.xpose.msra.mxu0 0.0
    %1296 = vmatprep.subr.mxu0 0.0
    %1297 = vmatpush1.xpose.msra.mxu0 0.0
    %1298 = vmatprep.subr.mxu0 0.0
    %1299 = vmatpush1.xpose.msra.mxu0 0.0
    %1300 = vmatprep.subr.mxu0 0.0
    %1301 = vmatpush1.xpose.msra.mxu0 0.0
    %1302 = vmatprep.subr.mxu0 0.0
    %1303 = vmatpush1.xpose.msra.mxu0 0.0
    %1304 = vmatprep.subr.mxu0 0.0
    %1305 = vmatpush1.xpose.msra.mxu0 0.0
    %1306 = vmatprep.subr.mxu0 0.0
    %1307 = vmatpush1.xpose.msra.mxu0 0.0
    %1308 = vmatprep.subr.mxu0 0.0
    %1309 = vmatpush1.xpose.msra.mxu0 0.0
    %1310 = vmatprep.subr.mxu0 0.0
    %1311 = vmatpush1.xpose.msra.mxu0 0.0
    %1312 = vmatprep.subr.mxu0 0.0
    %1313 = vmatpush1.xpose.msra.mxu0 0.0
    %1314 = vmatprep.subr.mxu0 0.0
    %1315 = vmatpush1.xpose.msra.mxu0 0.0
    %1316 = vmatprep.subr.mxu0 0.0
    %1317 = vmatpush1.xpose.msra.mxu0 0.0
    %1318 = vmatprep.subr.mxu0 0.0
    %1319 = vmatpush1.xpose.msra.mxu0 0.0
    %1320 = vmatprep.subr.mxu0 0.0
    %1321 = vmatpush1.xpose.msra.mxu0 0.0
    %1322 = vmatprep.subr.mxu0 0.0
    %1323 = vmatpush1.xpose.msra.mxu0 0.0
    %1324 = vmatprep.subr.mxu0 0.0
    %1325 = vmatpush1.xpose.msra.mxu0 0.0
    %1326 = vmatprep.subr.mxu0 0.0
    %1327 = vmatpush1.xpose.msra.mxu0 0.0
    %1328 = vmatprep.subr.mxu0 0.0
    %1329 = vmatpush1.xpose.msra.mxu0 0.0
    %1330 = vmatprep.subr.mxu0 0.0
    %1331 = vmatpush1.xpose.msra.mxu0 0.0
    %1332 = vmatprep.subr.mxu0 0.0
    %1333 = vmatpush1.xpose.msra.mxu0 0.0
    %1334 = vmatprep.subr.mxu0 0.0
    %1335 = vmatpush1.xpose.msra.mxu0 0.0
    %1336 = vmatprep.subr.mxu0 0.0
    %1337 = vmatpush1.xpose.msra.mxu0 0.0
    %1338 = vmatprep.mubr.f32.mxu0 0.0
    %1339 = vmatmul.mubr.f32.gmra.mrb[0].mxu0 %v1270
    %v1340 = vpop.f32.mrb[0].mxu0
    %v1341 = vadd.f32 0.0, %v1340
    %v1342 = vpop.f32.mrb[0].mxu0
    %1343 = vdwg.mxu0
    %v1344 = vsel %vm373, %v1263, -inf
    %1345 = vmax.xlane.f32.xlu0 %v1344
    %v1346 = vpop.xlane.xlu0 %1345
    %v1347 = vsel %vm373, %v1341, -inf
    %1348 = vmax.xlane.f32.xlu0 %v1347
    %v1349 = vpop.xlane.xlu0 %1348
    %v1350 = vsub.f32 %v1263, %v1346
    %v1351 = vsub.f32 %v1341, %v1349
    %v1352 = vmul.f32 %v1350, 1.442695
    %v1353 = vpow.pop %v1352
    %v1354 = vmul.f32 %v1351, 1.442695
    %v1355 = vpow.pop %v1354
    %v1356 = vsel %vm373, %v1353, 0.0
    %1357 = vadd.xlane.f32.xlu0 %v1356
    %v1358 = vpop.xlane.xlu0 %1357
    %v1359 = vsel %vm373, %v1355, 0.0
    %1360 = vadd.xlane.f32.xlu0 %v1359
    %v1361 = vpop.xlane.xlu0 %1360
    %v1362 = vrcp.pop %v1358
    %v1363 = vrcp.pop %v1361
    %v1364 = vmul.f32 %v1353, %v1362
    %v1365 = vmul.f32 %v1355, %v1363
    %1366 = vrot.lane.b32.xlu0 %v365, 112
    %v1367 = vpop.permute.xlu0 %1366
    %v1370 = vsel %vm373, %v1364, 0
    %1372 = vmatprep.subr.mxu0 0.0
    %1373 = vmatpush1.msra.mxu0 %v1367
    %1374 = vmatprep.subr.mxu0 0.0
    %1375 = vmatpush1.msra.mxu0 0.0
    %1376 = vmatprep.subr.mxu0 0.0
    %1377 = vmatpush1.msra.mxu0 0.0
    %1378 = vmatprep.subr.mxu0 0.0
    %1379 = vmatpush1.msra.mxu0 0.0
    %1380 = vmatprep.subr.mxu0 0.0
    %1381 = vmatpush1.msra.mxu0 0.0
    %1382 = vmatprep.subr.mxu0 0.0
    %1383 = vmatpush1.msra.mxu0 0.0
    %1384 = vmatprep.subr.mxu0 0.0
    %1385 = vmatpush1.msra.mxu0 0.0
    %1386 = vmatprep.subr.mxu0 0.0
    %1387 = vmatpush1.msra.mxu0 0.0
    %1388 = vmatprep.subr.mxu0 0.0
    %1389 = vmatpush1.msra.mxu0 0.0
    %1390 = vmatprep.subr.mxu0 0.0
    %1391 = vmatpush1.msra.mxu0 0.0
    %1392 = vmatprep.subr.mxu0 0.0
    %1393 = vmatpush1.msra.mxu0 0.0
    %1394 = vmatprep.subr.mxu0 0.0
    %1395 = vmatpush1.msra.mxu0 0.0
    %1396 = vmatprep.subr.mxu0 0.0
    %1397 = vmatpush1.msra.mxu0 0.0
    %1398 = vmatprep.subr.mxu0 0.0
    %1399 = vmatpush1.msra.mxu0 0.0
    %1400 = vmatprep.subr.mxu0 0.0
    %1401 = vmatpush1.msra.mxu0 0.0
    %1402 = vmatprep.subr.mxu0 0.0
    %1403 = vmatpush1.msra.mxu0 0.0
    %1404 = vmatprep.subr.mxu0 0.0
    %1405 = vmatpush1.msra.mxu0 0.0
    %1406 = vmatprep.subr.mxu0 0.0
    %1407 = vmatpush1.msra.mxu0 0.0
    %1408 = vmatprep.subr.mxu0 0.0
    %1409 = vmatpush1.msra.mxu0 0.0
    %1410 = vmatprep.subr.mxu0 0.0
    %1411 = vmatpush1.msra.mxu0 0.0
    %1412 = vmatprep.subr.mxu0 0.0
    %1413 = vmatpush1.msra.mxu0 0.0
    %1414 = vmatprep.subr.mxu0 0.0
    %1415 = vmatpush1.msra.mxu0 0.0
    %1416 = vmatprep.subr.mxu0 0.0
    %1417 = vmatpush1.msra.mxu0 0.0
    %1418 = vmatprep.subr.mxu0 0.0
    %1419 = vmatpush1.msra.mxu0 0.0
    %1420 = vmatprep.subr.mxu0 0.0
    %1421 = vmatpush1.msra.mxu0 0.0
    %1422 = vmatprep.subr.mxu0 0.0
    %1423 = vmatpush1.msra.mxu0 0.0
    %1424 = vmatprep.subr.mxu0 0.0
    %1425 = vmatpush1.msra.mxu0 0.0
    %1426 = vmatprep.subr.mxu0 0.0
    %1427 = vmatpush1.msra.mxu0 0.0
    %1428 = vmatprep.subr.mxu0 0.0
    %1429 = vmatpush1.msra.mxu0 0.0
    %1430 = vmatprep.subr.mxu0 0.0
    %1431 = vmatpush1.msra.mxu0 0.0
    %1432 = vmatprep.subr.mxu0 0.0
    %1433 = vmatpush1.msra.mxu0 0.0
    %1434 = vmatprep.subr.mxu0 0.0
    %1435 = vmatpush1.msra.mxu0 0.0
    %1436 = vmatprep.mubr.f32.mxu0 0.0
    %1437 = vmatmul.mubr.f32.gmra.mrb[0].mxu0 %v1370
    %v1438 = vpop.f32.mrb[0].mxu0
    %v1439 = vadd.f32 0.0, %v1438
    %v1440 = vpop.f32.mrb[0].mxu0
    %1441 = vdwg.mxu0
    %1442 = vrot.lane.b32.xlu0 %v370, 112
    %v1443 = vpop.permute.xlu0 %1442
    %v1446 = vsel %vm373, %v1365, 0
    %1448 = vmatprep.subr.mxu0 0.0
    %1449 = vmatpush1.msra.mxu0 %v1443
    %1450 = vmatprep.subr.mxu0 0.0
    %1451 = vmatpush1.msra.mxu0 0.0
    %1452 = vmatprep.subr.mxu0 0.0
    %1453 = vmatpush1.msra.mxu0 0.0
    %1454 = vmatprep.subr.mxu0 0.0
    %1455 = vmatpush1.msra.mxu0 0.0
    %1456 = vmatprep.subr.mxu0 0.0
    %1457 = vmatpush1.msra.mxu0 0.0
    %1458 = vmatprep.subr.mxu0 0.0
    %1459 = vmatpush1.msra.mxu0 0.0
    %1460 = vmatprep.subr.mxu0 0.0
    %1461 = vmatpush1.msra.mxu0 0.0
    %1462 = vmatprep.subr.mxu0 0.0
    %1463 = vmatpush1.msra.mxu0 0.0
    %1464 = vmatprep.subr.mxu0 0.0
    %1465 = vmatpush1.msra.mxu0 0.0
    %1466 = vmatprep.subr.mxu0 0.0
    %1467 = vmatpush1.msra.mxu0 0.0
    %1468 = vmatprep.subr.mxu0 0.0
    %1469 = vmatpush1.msra.mxu0 0.0
    %1470 = vmatprep.subr.mxu0 0.0
    %1471 = vmatpush1.msra.mxu0 0.0
    %1472 = vmatprep.subr.mxu0 0.0
    %1473 = vmatpush1.msra.mxu0 0.0
    %1474 = vmatprep.subr.mxu0 0.0
    %1475 = vmatpush1.msra.mxu0 0.0
    %1476 = vmatprep.subr.mxu0 0.0
    %1477 = vmatpush1.msra.mxu0 0.0
    %1478 = vmatprep.subr.mxu0 0.0
    %1479 = vmatpush1.msra.mxu0 0.0
    %1480 = vmatprep.subr.mxu0 0.0
    %1481 = vmatpush1.msra.mxu0 0.0
    %1482 = vmatprep.subr.mxu0 0.0
    %1483 = vmatpush1.msra.mxu0 0.0
    %1484 = vmatprep.subr.mxu0 0.0
    %1485 = vmatpush1.msra.mxu0 0.0
    %1486 = vmatprep.subr.mxu0 0.0
    %1487 = vmatpush1.msra.mxu0 0.0
    %1488 = vmatprep.subr.mxu0 0.0
    %1489 = vmatpush1.msra.mxu0 0.0
    %1490 = vmatprep.subr.mxu0 0.0
    %1491 = vmatpush1.msra.mxu0 0.0
    %1492 = vmatprep.subr.mxu0 0.0
    %1493 = vmatpush1.msra.mxu0 0.0
    %1494 = vmatprep.subr.mxu0 0.0
    %1495 = vmatpush1.msra.mxu0 0.0
    %1496 = vmatprep.subr.mxu0 0.0
    %1497 = vmatpush1.msra.mxu0 0.0
    %1498 = vmatprep.subr.mxu0 0.0
    %1499 = vmatpush1.msra.mxu0 0.0
    %1500 = vmatprep.subr.mxu0 0.0
    %1501 = vmatpush1.msra.mxu0 0.0
    %1502 = vmatprep.subr.mxu0 0.0
    %1503 = vmatpush1.msra.mxu0 0.0
    %1504 = vmatprep.subr.mxu0 0.0
    %1505 = vmatpush1.msra.mxu0 0.0
    %1506 = vmatprep.subr.mxu0 0.0
    %1507 = vmatpush1.msra.mxu0 0.0
    %1508 = vmatprep.subr.mxu0 0.0
    %1509 = vmatpush1.msra.mxu0 0.0
    %1510 = vmatprep.subr.mxu0 0.0
    %1511 = vmatpush1.msra.mxu0 0.0
    %1512 = vmatprep.mubr.f32.mxu0 0.0
    %1513 = vmatmul.mubr.f32.gmra.mrb[0].mxu0 %v1446
    %v1514 = vpop.f32.mrb[0].mxu0
    %v1515 = vadd.f32 0.0, %v1514
    %v1516 = vpop.f32.mrb[0].mxu0
    %1517 = vdwg.mxu0
    %v1519 = vsel %vm373, %v1439, 0
    %v1522 = vsel %vm373, %v1515, 0
    %1524 = vmatprep.subr.mxu0 0.0
    %1525 = vmatpush1.msra.mxu0 %v117
    %1526 = vmatprep.subr.mxu0 0.0
    %1527 = vmatpush1.msra.mxu0 0.0
    %1528 = vmatprep.subr.mxu0 0.0
    %1529 = vmatpush1.msra.mxu0 0.0
    %1530 = vmatprep.subr.mxu0 0.0
    %1531 = vmatpush1.msra.mxu0 0.0
    %1532 = vmatprep.subr.mxu0 0.0
    %1533 = vmatpush1.msra.mxu0 0.0
    %1534 = vmatprep.subr.mxu0 0.0
    %1535 = vmatpush1.msra.mxu0 0.0
    %1536 = vmatprep.subr.mxu0 0.0
    %1537 = vmatpush1.msra.mxu0 0.0
    %1538 = vmatprep.subr.mxu0 0.0
    %1539 = vmatpush1.msra.mxu0 0.0
    %1540 = vmatprep.subr.mxu0 0.0
    %1541 = vmatpush1.msra.mxu0 0.0
    %1542 = vmatprep.subr.mxu0 0.0
    %1543 = vmatpush1.msra.mxu0 0.0
    %1544 = vmatprep.subr.mxu0 0.0
    %1545 = vmatpush1.msra.mxu0 0.0
    %1546 = vmatprep.subr.mxu0 0.0
    %1547 = vmatpush1.msra.mxu0 0.0
    %1548 = vmatprep.subr.mxu0 0.0
    %1549 = vmatpush1.msra.mxu0 0.0
    %1550 = vmatprep.subr.mxu0 0.0
    %1551 = vmatpush1.msra.mxu0 0.0
    %1552 = vmatprep.subr.mxu0 0.0
    %1553 = vmatpush1.msra.mxu0 0.0
    %1554 = vmatprep.subr.mxu0 0.0
    %1555 = vmatpush1.msra.mxu0 0.0
    %1556 = vmatprep.subr.mxu0 0.0
    %1557 = vmatpush1.msra.mxu0 0.0
    %1558 = vmatprep.subr.mxu0 0.0
    %1559 = vmatpush1.msra.mxu0 0.0
    %1560 = vmatprep.subr.mxu0 0.0
    %1561 = vmatpush1.msra.mxu0 0.0
    %1562 = vmatprep.subr.mxu0 0.0
    %1563 = vmatpush1.msra.mxu0 0.0
    %1564 = vmatprep.subr.mxu0 0.0
    %1565 = vmatpush1.msra.mxu0 0.0
    %1566 = vmatprep.subr.mxu0 0.0
    %1567 = vmatpush1.msra.mxu0 0.0
    %1568 = vmatprep.subr.mxu0 0.0
    %1569 = vmatpush1.msra.mxu0 0.0
    %1570 = vmatprep.subr.mxu0 0.0
    %1571 = vmatpush1.msra.mxu0 0.0
    %1572 = vmatprep.subr.mxu0 0.0
    %1573 = vmatpush1.msra.mxu0 0.0
    %1574 = vmatprep.subr.mxu0 0.0
    %1575 = vmatpush1.msra.mxu0 0.0
    %1576 = vmatprep.subr.mxu0 0.0
    %1577 = vmatpush1.msra.mxu0 0.0
    %1578 = vmatprep.subr.mxu0 0.0
    %1579 = vmatpush1.msra.mxu0 0.0
    %1580 = vmatprep.subr.mxu0 0.0
    %1581 = vmatpush1.msra.mxu0 0.0
    %1582 = vmatprep.subr.mxu0 0.0
    %1583 = vmatpush1.msra.mxu0 0.0
    %1584 = vmatprep.subr.mxu0 0.0
    %1585 = vmatpush1.msra.mxu0 0.0
    %1586 = vmatprep.subr.mxu0 0.0
    %1587 = vmatpush1.msra.mxu0 0.0
    %1588 = vmatprep.mubr.f32.mxu0 0.0
    %1589 = vmatmul.mubr.f32.gmra.mrb[0].mxu0 %v1519
    %v1590 = vpop.f32.mrb[0].mxu0
    %v1591 = vadd.f32 0.0, %v1590
    %v1592 = vpop.f32.mrb[0].mxu0
    %1593 = vmatprep.mubr.f32.mxu0 0.0
    %1594 = vmatmul.mubr.f32.gmra.mrb[0].mxu0 %v1522
    %v1595 = vpop.f32.mrb[0].mxu0
    %v1596 = vadd.f32 0.0, %v1595
    %v1597 = vpop.f32.mrb[0].mxu0
    %1598 = vdwg.mxu0
    %v1599 = vadd.f32 %v1180, %v1591
    %v1600 = vadd.f32 %v1185, %v1596
    %1601 = vrot.lane.b32.xlu0 %v203, 104
    %v1602 = vpop.permute.xlu0 %1601
    %1603 = vrot.lane.b32.xlu0 %v284, 104
    %v1604 = vpop.permute.xlu0 %1603
    %v1605 = vsel %vm373, %v1602, 0
    %v1607 = vsel %vm373, %v1604, 0
    %1609 = vmatprep.subr.mxu0 0.0
    %1610 = vmatpush1.xpose.msra.mxu0 %v1607
    %1611 = vmatprep.subr.mxu0 0.0
    %1612 = vmatpush1.xpose.msra.mxu0 0.0
    %1613 = vmatprep.subr.mxu0 0.0
    %1614 = vmatpush1.xpose.msra.mxu0 0.0
    %1615 = vmatprep.subr.mxu0 0.0
    %1616 = vmatpush1.xpose.msra.mxu0 0.0
    %1617 = vmatprep.subr.mxu0 0.0
    %1618 = vmatpush1.xpose.msra.mxu0 0.0
    %1619 = vmatprep.subr.mxu0 0.0
    %1620 = vmatpush1.xpose.msra.mxu0 0.0
    %1621 = vmatprep.subr.mxu0 0.0
    %1622 = vmatpush1.xpose.msra.mxu0 0.0
    %1623 = vmatprep.subr.mxu0 0.0
    %1624 = vmatpush1.xpose.msra.mxu0 0.0
    %1625 = vmatprep.subr.mxu0 0.0
    %1626 = vmatpush1.xpose.msra.mxu0 0.0
    %1627 = vmatprep.subr.mxu0 0.0
    %1628 = vmatpush1.xpose.msra.mxu0 0.0
    %1629 = vmatprep.subr.mxu0 0.0
    %1630 = vmatpush1.xpose.msra.mxu0 0.0
    %1631 = vmatprep.subr.mxu0 0.0
    %1632 = vmatpush1.xpose.msra.mxu0 0.0
    %1633 = vmatprep.subr.mxu0 0.0
    %1634 = vmatpush1.xpose.msra.mxu0 0.0
    %1635 = vmatprep.subr.mxu0 0.0
    %1636 = vmatpush1.xpose.msra.mxu0 0.0
    %1637 = vmatprep.subr.mxu0 0.0
    %1638 = vmatpush1.xpose.msra.mxu0 0.0
    %1639 = vmatprep.subr.mxu0 0.0
    %1640 = vmatpush1.xpose.msra.mxu0 0.0
    %1641 = vmatprep.subr.mxu0 0.0
    %1642 = vmatpush1.xpose.msra.mxu0 0.0
    %1643 = vmatprep.subr.mxu0 0.0
    %1644 = vmatpush1.xpose.msra.mxu0 0.0
    %1645 = vmatprep.subr.mxu0 0.0
    %1646 = vmatpush1.xpose.msra.mxu0 0.0
    %1647 = vmatprep.subr.mxu0 0.0
    %1648 = vmatpush1.xpose.msra.mxu0 0.0
    %1649 = vmatprep.subr.mxu0 0.0
    %1650 = vmatpush1.xpose.msra.mxu0 0.0
    %1651 = vmatprep.subr.mxu0 0.0
    %1652 = vmatpush1.xpose.msra.mxu0 0.0
    %1653 = vmatprep.subr.mxu0 0.0
    %1654 = vmatpush1.xpose.msra.mxu0 0.0
    %1655 = vmatprep.subr.mxu0 0.0
    %1656 = vmatpush1.xpose.msra.mxu0 0.0
    %1657 = vmatprep.subr.mxu0 0.0
    %1658 = vmatpush1.xpose.msra.mxu0 0.0
    %1659 = vmatprep.subr.mxu0 0.0
    %1660 = vmatpush1.xpose.msra.mxu0 0.0
    %1661 = vmatprep.subr.mxu0 0.0
    %1662 = vmatpush1.xpose.msra.mxu0 0.0
    %1663 = vmatprep.subr.mxu0 0.0
    %1664 = vmatpush1.xpose.msra.mxu0 0.0
    %1665 = vmatprep.subr.mxu0 0.0
    %1666 = vmatpush1.xpose.msra.mxu0 0.0
    %1667 = vmatprep.subr.mxu0 0.0
    %1668 = vmatpush1.xpose.msra.mxu0 0.0
    %1669 = vmatprep.subr.mxu0 0.0
    %1670 = vmatpush1.xpose.msra.mxu0 0.0
    %1671 = vmatprep.subr.mxu0 0.0
    %1672 = vmatpush1.xpose.msra.mxu0 0.0
    %1673 = vmatprep.mubr.f32.mxu0 0.0
    %1674 = vmatmul.mubr.f32.gmra.mrb[0].mxu0 %v1605
    %v1675 = vpop.f32.mrb[0].mxu0
    %v1676 = vadd.f32 0.0, %v1675
    %v1677 = vpop.f32.mrb[0].mxu0
    %1678 = vdwg.mxu0
    %1679 = vrot.lane.b32.xlu0 %v208, 104
    %v1680 = vpop.permute.xlu0 %1679
    %1681 = vrot.lane.b32.xlu0 %v289, 104
    %v1682 = vpop.permute.xlu0 %1681
    %v1683 = vsel %vm373, %v1680, 0
    %v1685 = vsel %vm373, %v1682, 0
    %1687 = vmatprep.subr.mxu0 0.0
    %1688 = vmatpush1.xpose.msra.mxu0 %v1685
    %1689 = vmatprep.subr.mxu0 0.0
    %1690 = vmatpush1.xpose.msra.mxu0 0.0
    %1691 = vmatprep.subr.mxu0 0.0
    %1692 = vmatpush1.xpose.msra.mxu0 0.0
    %1693 = vmatprep.subr.mxu0 0.0
    %1694 = vmatpush1.xpose.msra.mxu0 0.0
    %1695 = vmatprep.subr.mxu0 0.0
    %1696 = vmatpush1.xpose.msra.mxu0 0.0
    %1697 = vmatprep.subr.mxu0 0.0
    %1698 = vmatpush1.xpose.msra.mxu0 0.0
    %1699 = vmatprep.subr.mxu0 0.0
    %1700 = vmatpush1.xpose.msra.mxu0 0.0
    %1701 = vmatprep.subr.mxu0 0.0
    %1702 = vmatpush1.xpose.msra.mxu0 0.0
    %1703 = vmatprep.subr.mxu0 0.0
    %1704 = vmatpush1.xpose.msra.mxu0 0.0
    %1705 = vmatprep.subr.mxu0 0.0
    %1706 = vmatpush1.xpose.msra.mxu0 0.0
    %1707 = vmatprep.subr.mxu0 0.0
    %1708 = vmatpush1.xpose.msra.mxu0 0.0
    %1709 = vmatprep.subr.mxu0 0.0
    %1710 = vmatpush1.xpose.msra.mxu0 0.0
    %1711 = vmatprep.subr.mxu0 0.0
    %1712 = vmatpush1.xpose.msra.mxu0 0.0
    %1713 = vmatprep.subr.mxu0 0.0
    %1714 = vmatpush1.xpose.msra.mxu0 0.0
    %1715 = vmatprep.subr.mxu0 0.0
    %1716 = vmatpush1.xpose.msra.mxu0 0.0
    %1717 = vmatprep.subr.mxu0 0.0
    %1718 = vmatpush1.xpose.msra.mxu0 0.0
    %1719 = vmatprep.subr.mxu0 0.0
    %1720 = vmatpush1.xpose.msra.mxu0 0.0
    %1721 = vmatprep.subr.mxu0 0.0
    %1722 = vmatpush1.xpose.msra.mxu0 0.0
    %1723 = vmatprep.subr.mxu0 0.0
    %1724 = vmatpush1.xpose.msra.mxu0 0.0
    %1725 = vmatprep.subr.mxu0 0.0
    %1726 = vmatpush1.xpose.msra.mxu0 0.0
    %1727 = vmatprep.subr.mxu0 0.0
    %1728 = vmatpush1.xpose.msra.mxu0 0.0
    %1729 = vmatprep.subr.mxu0 0.0
    %1730 = vmatpush1.xpose.msra.mxu0 0.0
    %1731 = vmatprep.subr.mxu0 0.0
    %1732 = vmatpush1.xpose.msra.mxu0 0.0
    %1733 = vmatprep.subr.mxu0 0.0
    %1734 = vmatpush1.xpose.msra.mxu0 0.0
    %1735 = vmatprep.subr.mxu0 0.0
    %1736 = vmatpush1.xpose.msra.mxu0 0.0
    %1737 = vmatprep.subr.mxu0 0.0
    %1738 = vmatpush1.xpose.msra.mxu0 0.0
    %1739 = vmatprep.subr.mxu0 0.0
    %1740 = vmatpush1.xpose.msra.mxu0 0.0
    %1741 = vmatprep.subr.mxu0 0.0
    %1742 = vmatpush1.xpose.msra.mxu0 0.0
    %1743 = vmatprep.subr.mxu0 0.0
    %1744 = vmatpush1.xpose.msra.mxu0 0.0
    %1745 = vmatprep.subr.mxu0 0.0
    %1746 = vmatpush1.xpose.msra.mxu0 0.0
    %1747 = vmatprep.subr.mxu0 0.0
    %1748 = vmatpush1.xpose.msra.mxu0 0.0
    %1749 = vmatprep.subr.mxu0 0.0
    %1750 = vmatpush1.xpose.msra.mxu0 0.0
    %1751 = vmatprep.mubr.f32.mxu0 0.0
    %1752 = vmatmul.mubr.f32.gmra.mrb[0].mxu0 %v1683
    %v1753 = vpop.f32.mrb[0].mxu0
    %v1754 = vadd.f32 0.0, %v1753
    %v1755 = vpop.f32.mrb[0].mxu0
    %1756 = vdwg.mxu0
    %v1757 = vsel %vm373, %v1676, -inf
    %1758 = vmax.xlane.f32.xlu0 %v1757
    %v1759 = vpop.xlane.xlu0 %1758
    %v1760 = vsel %vm373, %v1754, -inf
    %1761 = vmax.xlane.f32.xlu0 %v1760
    %v1762 = vpop.xlane.xlu0 %1761
    %v1763 = vsub.f32 %v1676, %v1759
    %v1764 = vsub.f32 %v1754, %v1762
    %v1765 = vmul.f32 %v1763, 1.442695
    %v1766 = vpow.pop %v1765
    %v1767 = vmul.f32 %v1764, 1.442695
    %v1768 = vpow.pop %v1767
    %v1769 = vsel %vm373, %v1766, 0.0
    %1770 = vadd.xlane.f32.xlu0 %v1769
    %v1771 = vpop.xlane.xlu0 %1770
    %v1772 = vsel %vm373, %v1768, 0.0
    %1773 = vadd.xlane.f32.xlu0 %v1772
    %v1774 = vpop.xlane.xlu0 %1773
    %v1775 = vrcp.pop %v1771
    %v1776 = vrcp.pop %v1774
    %v1777 = vmul.f32 %v1766, %v1775
    %v1778 = vmul.f32 %v1768, %v1776
    %1779 = vrot.lane.b32.xlu0 %v365, 104
    %v1780 = vpop.permute.xlu0 %1779
    %v1783 = vsel %vm373, %v1777, 0
    %1785 = vmatprep.subr.mxu0 0.0
    %1786 = vmatpush1.msra.mxu0 %v1780
    %1787 = vmatprep.subr.mxu0 0.0
    %1788 = vmatpush1.msra.mxu0 0.0
    %1789 = vmatprep.subr.mxu0 0.0
    %1790 = vmatpush1.msra.mxu0 0.0
    %1791 = vmatprep.subr.mxu0 0.0
    %1792 = vmatpush1.msra.mxu0 0.0
    %1793 = vmatprep.subr.mxu0 0.0
    %1794 = vmatpush1.msra.mxu0 0.0
    %1795 = vmatprep.subr.mxu0 0.0
    %1796 = vmatpush1.msra.mxu0 0.0
    %1797 = vmatprep.subr.mxu0 0.0
    %1798 = vmatpush1.msra.mxu0 0.0
    %1799 = vmatprep.subr.mxu0 0.0
    %1800 = vmatpush1.msra.mxu0 0.0
    %1801 = vmatprep.subr.mxu0 0.0
    %1802 = vmatpush1.msra.mxu0 0.0
    %1803 = vmatprep.subr.mxu0 0.0
    %1804 = vmatpush1.msra.mxu0 0.0
    %1805 = vmatprep.subr.mxu0 0.0
    %1806 = vmatpush1.msra.mxu0 0.0
    %1807 = vmatprep.subr.mxu0 0.0
    %1808 = vmatpush1.msra.mxu0 0.0
    %1809 = vmatprep.subr.mxu0 0.0
    %1810 = vmatpush1.msra.mxu0 0.0
    %1811 = vmatprep.subr.mxu0 0.0
    %1812 = vmatpush1.msra.mxu0 0.0
    %1813 = vmatprep.subr.mxu0 0.0
    %1814 = vmatpush1.msra.mxu0 0.0
    %1815 = vmatprep.subr.mxu0 0.0
    %1816 = vmatpush1.msra.mxu0 0.0
    %1817 = vmatprep.subr.mxu0 0.0
    %1818 = vmatpush1.msra.mxu0 0.0
    %1819 = vmatprep.subr.mxu0 0.0
    %1820 = vmatpush1.msra.mxu0 0.0
    %1821 = vmatprep.subr.mxu0 0.0
    %1822 = vmatpush1.msra.mxu0 0.0
    %1823 = vmatprep.subr.mxu0 0.0
    %1824 = vmatpush1.msra.mxu0 0.0
    %1825 = vmatprep.subr.mxu0 0.0
    %1826 = vmatpush1.msra.mxu0 0.0
    %1827 = vmatprep.subr.mxu0 0.0
    %1828 = vmatpush1.msra.mxu0 0.0
    %1829 = vmatprep.subr.mxu0 0.0
    %1830 = vmatpush1.msra.mxu0 0.0
    %1831 = vmatprep.subr.mxu0 0.0
    %1832 = vmatpush1.msra.mxu0 0.0
    %1833 = vmatprep.subr.mxu0 0.0
    %1834 = vmatpush1.msra.mxu0 0.0
    %1835 = vmatprep.subr.mxu0 0.0
    %1836 = vmatpush1.msra.mxu0 0.0
    %1837 = vmatprep.subr.mxu0 0.0
    %1838 = vmatpush1.msra.mxu0 0.0
    %1839 = vmatprep.subr.mxu0 0.0
    %1840 = vmatpush1.msra.mxu0 0.0
    %1841 = vmatprep.subr.mxu0 0.0
    %1842 = vmatpush1.msra.mxu0 0.0
    %1843 = vmatprep.subr.mxu0 0.0
    %1844 = vmatpush1.msra.mxu0 0.0
    %1845 = vmatprep.subr.mxu0 0.0
    %1846 = vmatpush1.msra.mxu0 0.0
    %1847 = vmatprep.subr.mxu0 0.0
    %1848 = vmatpush1.msra.mxu0 0.0
    %1849 = vmatprep.mubr.f32.mxu0 0.0
    %1850 = vmatmul.mubr.f32.gmra.mrb[0].mxu0 %v1783
    %v1851 = vpop.f32.mrb[0].mxu0
    %v1852 = vadd.f32 0.0, %v1851
    %v1853 = vpop.f32.mrb[0].mxu0
    %1854 = vdwg.mxu0
    %1855 = vrot.lane.b32.xlu0 %v370, 104
    %v1856 = vpop.permute.xlu0 %1855
    %v1859 = vsel %vm373, %v1778, 0
    %1861 = vmatprep.subr.mxu0 0.0
    %1862 = vmatpush1.msra.mxu0 %v1856
    %1863 = vmatprep.subr.mxu0 0.0
    %1864 = vmatpush1.msra.mxu0 0.0
    %1865 = vmatprep.subr.mxu0 0.0
    %1866 = vmatpush1.msra.mxu0 0.0
    %1867 = vmatprep.subr.mxu0 0.0
    %1868 = vmatpush1.msra.mxu0 0.0
    %1869 = vmatprep.subr.mxu0 0.0
    %1870 = vmatpush1.msra.mxu0 0.0
    %1871 = vmatprep.subr.mxu0 0.0
    %1872 = vmatpush1.msra.mxu0 0.0
    %1873 = vmatprep.subr.mxu0 0.0
    %1874 = vmatpush1.msra.mxu0 0.0
    %1875 = vmatprep.subr.mxu0 0.0
    %1876 = vmatpush1.msra.mxu0 0.0
    %1877 = vmatprep.subr.mxu0 0.0
    %1878 = vmatpush1.msra.mxu0 0.0
    %1879 = vmatprep.subr.mxu0 0.0
    %1880 = vmatpush1.msra.mxu0 0.0
    %1881 = vmatprep.subr.mxu0 0.0
    %1882 = vmatpush1.msra.mxu0 0.0
    %1883 = vmatprep.subr.mxu0 0.0
    %1884 = vmatpush1.msra.mxu0 0.0
    %1885 = vmatprep.subr.mxu0 0.0
    %1886 = vmatpush1.msra.mxu0 0.0
    %1887 = vmatprep.subr.mxu0 0.0
    %1888 = vmatpush1.msra.mxu0 0.0
    %1889 = vmatprep.subr.mxu0 0.0
    %1890 = vmatpush1.msra.mxu0 0.0
    %1891 = vmatprep.subr.mxu0 0.0
    %1892 = vmatpush1.msra.mxu0 0.0
    %1893 = vmatprep.subr.mxu0 0.0
    %1894 = vmatpush1.msra.mxu0 0.0
    %1895 = vmatprep.subr.mxu0 0.0
    %1896 = vmatpush1.msra.mxu0 0.0
    %1897 = vmatprep.subr.mxu0 0.0
    %1898 = vmatpush1.msra.mxu0 0.0
    %1899 = vmatprep.subr.mxu0 0.0
    %1900 = vmatpush1.msra.mxu0 0.0
    %1901 = vmatprep.subr.mxu0 0.0
    %1902 = vmatpush1.msra.mxu0 0.0
    %1903 = vmatprep.subr.mxu0 0.0
    %1904 = vmatpush1.msra.mxu0 0.0
    %1905 = vmatprep.subr.mxu0 0.0
    %1906 = vmatpush1.msra.mxu0 0.0
    %1907 = vmatprep.subr.mxu0 0.0
    %1908 = vmatpush1.msra.mxu0 0.0
    %1909 = vmatprep.subr.mxu0 0.0
    %1910 = vmatpush1.msra.mxu0 0.0
    %1911 = vmatprep.subr.mxu0 0.0
    %1912 = vmatpush1.msra.mxu0 0.0
    %1913 = vmatprep.subr.mxu0 0.0
    %1914 = vmatpush1.msra.mxu0 0.0
    %1915 = vmatprep.subr.mxu0 0.0
    %1916 = vmatpush1.msra.mxu0 0.0
    %1917 = vmatprep.subr.mxu0 0.0
    %1918 = vmatpush1.msra.mxu0 0.0
    %1919 = vmatprep.subr.mxu0 0.0
    %1920 = vmatpush1.msra.mxu0 0.0
    %1921 = vmatprep.subr.mxu0 0.0
    %1922 = vmatpush1.msra.mxu0 0.0
    %1923 = vmatprep.subr.mxu0 0.0
    %1924 = vmatpush1.msra.mxu0 0.0
    %1925 = vmatprep.mubr.f32.mxu0 0.0
    %1926 = vmatmul.mubr.f32.gmra.mrb[0].mxu0 %v1859
    %v1927 = vpop.f32.mrb[0].mxu0
    %v1928 = vadd.f32 0.0, %v1927
    %v1929 = vpop.f32.mrb[0].mxu0
    %1930 = vdwg.mxu0
    %v1932 = vsel %vm373, %v1852, 0
    %v1935 = vsel %vm373, %v1928, 0
    %1937 = vmatprep.subr.mxu0 0.0
    %1938 = vmatpush1.msra.mxu0 %v118
    %1939 = vmatprep.subr.mxu0 0.0
    %1940 = vmatpush1.msra.mxu0 0.0
    %1941 = vmatprep.subr.mxu0 0.0
    %1942 = vmatpush1.msra.mxu0 0.0
    %1943 = vmatprep.subr.mxu0 0.0
    %1944 = vmatpush1.msra.mxu0 0.0
    %1945 = vmatprep.subr.mxu0 0.0
    %1946 = vmatpush1.msra.mxu0 0.0
    %1947 = vmatprep.subr.mxu0 0.0
    %1948 = vmatpush1.msra.mxu0 0.0
    %1949 = vmatprep.subr.mxu0 0.0
    %1950 = vmatpush1.msra.mxu0 0.0
    %1951 = vmatprep.subr.mxu0 0.0
    %1952 = vmatpush1.msra.mxu0 0.0
    %1953 = vmatprep.subr.mxu0 0.0
    %1954 = vmatpush1.msra.mxu0 0.0
    %1955 = vmatprep.subr.mxu0 0.0
    %1956 = vmatpush1.msra.mxu0 0.0
    %1957 = vmatprep.subr.mxu0 0.0
    %1958 = vmatpush1.msra.mxu0 0.0
    %1959 = vmatprep.subr.mxu0 0.0
    %1960 = vmatpush1.msra.mxu0 0.0
    %1961 = vmatprep.subr.mxu0 0.0
    %1962 = vmatpush1.msra.mxu0 0.0
    %1963 = vmatprep.subr.mxu0 0.0
    %1964 = vmatpush1.msra.mxu0 0.0
    %1965 = vmatprep.subr.mxu0 0.0
    %1966 = vmatpush1.msra.mxu0 0.0
    %1967 = vmatprep.subr.mxu0 0.0
    %1968 = vmatpush1.msra.mxu0 0.0
    %1969 = vmatprep.subr.mxu0 0.0
    %1970 = vmatpush1.msra.mxu0 0.0
    %1971 = vmatprep.subr.mxu0 0.0
    %1972 = vmatpush1.msra.mxu0 0.0
    %1973 = vmatprep.subr.mxu0 0.0
    %1974 = vmatpush1.msra.mxu0 0.0
    %1975 = vmatprep.subr.mxu0 0.0
    %1976 = vmatpush1.msra.mxu0 0.0
    %1977 = vmatprep.subr.mxu0 0.0
    %1978 = vmatpush1.msra.mxu0 0.0
    %1979 = vmatprep.subr.mxu0 0.0
    %1980 = vmatpush1.msra.mxu0 0.0
    %1981 = vmatprep.subr.mxu0 0.0
    %1982 = vmatpush1.msra.mxu0 0.0
    %1983 = vmatprep.subr.mxu0 0.0
    %1984 = vmatpush1.msra.mxu0 0.0
    %1985 = vmatprep.subr.mxu0 0.0
    %1986 = vmatpush1.msra.mxu0 0.0
    %1987 = vmatprep.subr.mxu0 0.0
    %1988 = vmatpush1.msra.mxu0 0.0
    %1989 = vmatprep.subr.mxu0 0.0
    %1990 = vmatpush1.msra.mxu0 0.0
    %1991 = vmatprep.subr.mxu0 0.0
    %1992 = vmatpush1.msra.mxu0 0.0
    %1993 = vmatprep.subr.mxu0 0.0
    %1994 = vmatpush1.msra.mxu0 0.0
    %1995 = vmatprep.subr.mxu0 0.0
    %1996 = vmatpush1.msra.mxu0 0.0
    %1997 = vmatprep.subr.mxu0 0.0
    %1998 = vmatpush1.msra.mxu0 0.0
    %1999 = vmatprep.subr.mxu0 0.0
    %2000 = vmatpush1.msra.mxu0 0.0
    %2001 = vmatprep.mubr.f32.mxu0 0.0
    %2002 = vmatmul.mubr.f32.gmra.mrb[0].mxu0 %v1932
    %v2003 = vpop.f32.mrb[0].mxu0
    %v2004 = vadd.f32 0.0, %v2003
    %v2005 = vpop.f32.mrb[0].mxu0
    %2006 = vmatprep.mubr.f32.mxu0 0.0
    %2007 = vmatmul.mubr.f32.gmra.mrb[0].mxu0 %v1935
    %v2008 = vpop.f32.mrb[0].mxu0
    %v2009 = vadd.f32 0.0, %v2008
    %v2010 = vpop.f32.mrb[0].mxu0
    %2011 = vdwg.mxu0
    %v2012 = vadd.f32 %v1599, %v2004
    %v2013 = vadd.f32 %v1600, %v2009
    %v2015 = vlaneseq
    %v2016 = vshrl.u32 %v2015, 7
    %v2017 = vsub.s32 0, %v2016
    %v2018 = vrot.slane %v122, %v2017
    %v2020 = vadd.f32 %v2012, %v2018
    %v2021 = vadd.f32 %v2013, %v2018
    %2022 = vst.msk [vmem:[#allocation11] sm:$0xff] %vm129, %v2020
    %2023 = vst.msk [vmem:[#allocation11 + $0x8] sm:$0xff] %vm129, %v2021
    // Predicated region
    $region58: #{tpu_custom_call.1} parent=1 // pred_check
      _
    $region59: #{tpu_custom_call.1} parent=1 // pred_check_branch
      %2025 = sbr.rel (0) target = $region61
    $region60: #{tpu_custom_call.1} parent=1 // pred_region
      %s2027 = ssub.s32 256, 256
      %2028 = vsyncadd [#allocation4], %s2027
      %s2029 = sshll.u32 [#allocation11], 4
      %s2030 = int_to_ptr.vmem [resolvable:$true] %s2029
      %2035 = dma.vmem_to_hbm [thread:$0]  %s2030, 256, %s9, [#allocation4], 128, 128, 8
    $region61: #{tpu_custom_call.1} parent=1 // pred_fallthru
      _
    // Predicated region
    $region62: #{tpu_custom_call.1} parent=1 // pred_check
      _
    $region63: #{tpu_custom_call.1} parent=1 // pred_check_branch
      %2037 = sbr.rel (0) target = $region65
    $region64: #{tpu_custom_call.1} parent=1 // pred_region
      %2038 = dma.done [#allocation4], 256
    $region65: #{tpu_custom_call.1} parent=1 // pred_fallthru
      _
    %2039 = vsyncpa [#allocation3], 1
    %2040 = vsyncpa [#allocation6], 1
    %2041 = vsyncpa [#allocation9], 1
    %2042 = vsyncpa [#allocation4], 1

// kernel: tpu_custom_call.1
$region0: #{tpu_custom_call.1}
  #allocation0 [shape = 'u32[]', space=smem, size = 0x4, offset = 0x4, fixed_abs, tag = 'smem constant byte address 0x4 - core index']
  #allocation1 [shape = 'u32[144,128]{1,0:T(1,128)}', space=vmem, size = 0x12000, scoped, tag = 'internal scratch']
  %s0 = inlined_call_operand.hbm [shape: f32[2,8,32], index: 0, kind: input, shape index: {}]
  %s1 = inlined_call_operand.hbm [shape: f32[32,32], index: 1, kind: input, shape index: {}]
  %s2 = inlined_call_operand.vmem [shape: f32[1,32], index: 2, kind: input, shape index: {}]
  %s3 = inlined_call_operand.hbm [shape: f32[32,32], index: 3, kind: input, shape index: {}]
  %s4 = inlined_call_operand.vmem [shape: f32[1,32], index: 4, kind: input, shape index: {}]
  %s5 = inlined_call_operand.hbm [shape: f32[32,32], index: 5, kind: input, shape index: {}]
  %s6 = inlined_call_operand.vmem [shape: f32[1,32], index: 6, kind: input, shape index: {}]
  %s7 = inlined_call_operand.hbm [shape: f32[32,32], index: 7, kind: input, shape index: {}]
  %s8 = inlined_call_operand.vmem [shape: f32[1,32], index: 8, kind: input, shape index: {}]
  %s9 = inlined_call_operand.hbm [shape: f32[2,8,32], index: 9, kind: output, shape index: {}]
  %s10 = sld [smem:[#allocation0]]
  $region66: #{tpu_custom_call.1} parent=0
    _
  %s12 = ssub.s32 1, %s10
  %s13 = scalar_select 0, %s12, %s10
  $region1: #{tpu_custom_call.1} parent=0
    #allocation2 [shape = 'u8[8192]{0}', space=vmem, size = 0x2000, scoped, tag = 'input window, operand 0, single buffered']
    #allocation3 [shape = 's32[1]{0}', space=sflag, size = 0x4, scoped, tag = 'scoped memory for tpu_custom_call.1']
    #allocation4 [shape = 's32[1]{0}', space=sflag, size = 0x4, scoped, tag = 'scoped memory for tpu_custom_call.1']
    #allocation5 [shape = 'u8[16384]{0}', space=vmem, size = 0x4000, scoped, tag = 'input window, operand 1, single buffered']
    #allocation6 [shape = 's32[1]{0}', space=sflag, size = 0x4, scoped, tag = 'scoped memory for tpu_custom_call.1']
    #allocation7 [shape = 'u8[16384]{0}', space=vmem, size = 0x4000, scoped, tag = 'input window, operand 3, single buffered']
    #allocation8 [shape = 'u8[16384]{0}', space=vmem, size = 0x4000, scoped, tag = 'input window, operand 5, single buffered']
    #allocation9 [shape = 's32[1]{0}', space=sflag, size = 0x4, scoped, tag = 'scoped memory for tpu_custom_call.1']
    #allocation10 [shape = 'u8[16384]{0}', space=vmem, size = 0x4000, scoped, tag = 'input window, operand 7, single buffered']
    #allocation11 [shape = 'u8[8192]{0}', space=vmem, size = 0x2000, scoped, tag = 'output window, operand 0, single buffered']
    %14 = vsyncpa [#allocation3], 0
    %15 = vsyncpa [#allocation6], 0
    %16 = vsyncpa [#allocation9], 0
    %17 = vsyncpa [#allocation4], 0
    // Predicated region
    $region2: #{tpu_custom_call.1} parent=1 // pred_check
      _
    $region3: #{tpu_custom_call.1} parent=1 // pred_check_branch
      %19 = sbr.rel (0) target = $region5
    $region4: #{tpu_custom_call.1} parent=1 // pred_region
      %s21 = ssub.s32 256, 256
      %22 = vsyncadd [#allocation3], %s21
      %s23 = sshll.u32 [#allocation2], 4
      %s24 = int_to_ptr.vmem [resolvable:$true] %s23
      %29 = dma.hbm_to_vmem [thread:$0]  %s0, 256, %s24, [#allocation3], 128, 128, 8
    $region5: #{tpu_custom_call.1} parent=1 // pred_fallthru
      _
    // Predicated region
    $region6: #{tpu_custom_call.1} parent=1 // pred_check
      _
    $region7: #{tpu_custom_call.1} parent=1 // pred_check_branch
      %31 = sbr.rel (0) target = $region9
    $region8: #{tpu_custom_call.1} parent=1 // pred_region
      %s33 = ssub.s32 512, 512
      %34 = vsyncadd [#allocation6], %s33
      %s35 = sshll.u32 [#allocation5], 4
      %s36 = int_to_ptr.vmem [resolvable:$true] %s35
      %41 = dma.hbm_to_vmem [thread:$0]  %s1, 512, %s36, [#allocation6], 128, 128, 8
    $region9: #{tpu_custom_call.1} parent=1 // pred_fallthru
      _
    // Predicated region
    $region10: #{tpu_custom_call.1} parent=1 // pred_check
      _
    $region11: #{tpu_custom_call.1} parent=1 // pred_check_branch
      %43 = sbr.rel (0) target = $region13
    $region12: #{tpu_custom_call.1} parent=1 // pred_region
      _
    $region13: #{tpu_custom_call.1} parent=1 // pred_fallthru
      _
    // Predicated region
    $region14: #{tpu_custom_call.1} parent=1 // pred_check
      _
    $region15: #{tpu_custom_call.1} parent=1 // pred_check_branch
      %45 = sbr.rel (0) target = $region17
    $region16: #{tpu_custom_call.1} parent=1 // pred_region
      %s47 = ssub.s32 512, 512
      %48 = vsyncadd [#allocation6], %s47
      %s49 = sshll.u32 [#allocation7], 4
      %s50 = int_to_ptr.vmem [resolvable:$true] %s49
      %55 = dma.hbm_to_vmem [thread:$0]  %s3, 512, %s50, [#allocation6], 128, 128, 8
    $region17: #{tpu_custom_call.1} parent=1 // pred_fallthru
      _
    // Predicated region
    $region18: #{tpu_custom_call.1} parent=1 // pred_check
      _
    $region19: #{tpu_custom_call.1} parent=1 // pred_check_branch
      %57 = sbr.rel (0) target = $region21
    $region20: #{tpu_custom_call.1} parent=1 // pred_region
      _
    $region21: #{tpu_custom_call.1} parent=1 // pred_fallthru
      _
    // Predicated region
    $region22: #{tpu_custom_call.1} parent=1 // pred_check
      _
    $region23: #{tpu_custom_call.1} parent=1 // pred_check_branch
      %59 = sbr.rel (0) target = $region25
    $region24: #{tpu_custom_call.1} parent=1 // pred_region
      %s61 = ssub.s32 512, 512
      %62 = vsyncadd [#allocation9], %s61
      %s63 = sshll.u32 [#allocation8], 4
      %s64 = int_to_ptr.vmem [resolvable:$true] %s63
      %69 = dma.hbm_to_vmem [thread:$0]  %s5, 512, %s64, [#allocation9], 128, 128, 8
    $region25: #{tpu_custom_call.1} parent=1 // pred_fallthru
      _
    // Predicated region
    $region26: #{tpu_custom_call.1} parent=1 // pred_check
      _
    $region27: #{tpu_custom_call.1} parent=1 // pred_check_branch
      %71 = sbr.rel (0) target = $region29
    $region28: #{tpu_custom_call.1} parent=1 // pred_region
      _
    $region29: #{tpu_custom_call.1} parent=1 // pred_fallthru
      _
    // Predicated region
    $region30: #{tpu_custom_call.1} parent=1 // pred_check
      _
    $region31: #{tpu_custom_call.1} parent=1 // pred_check_branch
      %73 = sbr.rel (0) target = $region33
    $region32: #{tpu_custom_call.1} parent=1 // pred_region
      %s75 = ssub.s32 512, 512
      %76 = vsyncadd [#allocation9], %s75
      %s77 = sshll.u32 [#allocation10], 4
      %s78 = int_to_ptr.vmem [resolvable:$true] %s77
      %83 = dma.hbm_to_vmem [thread:$0]  %s7, 512, %s78, [#allocation9], 128, 128, 8
    $region33: #{tpu_custom_call.1} parent=1 // pred_fallthru
      _
    // Predicated region
    $region34: #{tpu_custom_call.1} parent=1 // pred_check
      _
    $region35: #{tpu_custom_call.1} parent=1 // pred_check_branch
      %85 = sbr.rel (0) target = $region37
    $region36: #{tpu_custom_call.1} parent=1 // pred_region
      _
    $region37: #{tpu_custom_call.1} parent=1 // pred_fallthru
      _
    // Predicated region
    $region38: #{tpu_custom_call.1} parent=1 // pred_check
      _
    $region39: #{tpu_custom_call.1} parent=1 // pred_check_branch
      %87 = sbr.rel (0) target = $region41
    $region40: #{tpu_custom_call.1} parent=1 // pred_region
      %88 = dma.done [#allocation3], 256
    $region41: #{tpu_custom_call.1} parent=1 // pred_fallthru
      _
    // Predicated region
    $region42: #{tpu_custom_call.1} parent=1 // pred_check
      _
    $region43: #{tpu_custom_call.1} parent=1 // pred_check_branch
      %90 = sbr.rel (0) target = $region45
    $region44: #{tpu_custom_call.1} parent=1 // pred_region
      %91 = dma.done [#allocation6], 512
    $region45: #{tpu_custom_call.1} parent=1 // pred_fallthru
      _
    // Predicated region
    $region46: #{tpu_custom_call.1} parent=1 // pred_check
      _
    $region47: #{tpu_custom_call.1} parent=1 // pred_check_branch
      %93 = sbr.rel (0) target = $region49
    $region48: #{tpu_custom_call.1} parent=1 // pred_region
      %94 = dma.done [#allocation6], 512
    $region49: #{tpu_custom_call.1} parent=1 // pred_fallthru
      _
    // Predicated region
    $region50: #{tpu_custom_call.1} parent=1 // pred_check
      _
    $region51: #{tpu_custom_call.1} parent=1 // pred_check_branch
      %96 = sbr.rel (0) target = $region53
    $region52: #{tpu_custom_call.1} parent=1 // pred_region
      %97 = dma.done [#allocation9], 512
    $region53: #{tpu_custom_call.1} parent=1 // pred_fallthru
      _
    // Predicated region
    $region54: #{tpu_custom_call.1} parent=1 // pred_check
      _
    $region55: #{tpu_custom_call.1} parent=1 // pred_check_branch
      %99 = sbr.rel (0) target = $region57
    $region56: #{tpu_custom_call.1} parent=1 // pred_region
      %100 = dma.done [#allocation9], 512
    $region57: #{tpu_custom_call.1} parent=1 // pred_fallthru
      _
    %v101 = vld [vmem:[#allocation2] sm:$0xff]
    %v102 = vld [vmem:[#allocation2 + $0x8] sm:$0xff]
    %v103 = vld [vmem:[#allocation5] sm:$0xff]
    %v104 = vld [vmem:[#allocation5 + $0x8] sm:$0xff]
    %v105 = vld [vmem:[#allocation5 + $0x10] sm:$0xff]
    %v106 = vld [vmem:[#allocation5 + $0x18] sm:$0xff]
    %v107 = vld [vmem:[#allocation7] sm:$0xff]
    %v108 = vld [vmem:[#allocation7 + $0x8] sm:$0xff]
    %v109 = vld [vmem:[#allocation7 + $0x10] sm:$0xff]
    %v110 = vld [vmem:[#allocation7 + $0x18] sm:$0xff]
    %v111 = vld [vmem:[#allocation8] sm:$0xff]
    %v112 = vld [vmem:[#allocation8 + $0x8] sm:$0xff]
    %v113 = vld [vmem:[#allocation8 + $0x10] sm:$0xff]
    %v114 = vld [vmem:[#allocation8 + $0x18] sm:$0xff]
    %v115 = vld [vmem:[#allocation10] sm:$0xff]
    %v116 = vld [vmem:[#allocation10 + $0x8] sm:$0xff]
    %v117 = vld [vmem:[#allocation10 + $0x10] sm:$0xff]
    %v118 = vld [vmem:[#allocation10 + $0x18] sm:$0xff]
    %v119 = vld [vmem:[%s2] sm:$0x1]
    %v120 = vld [vmem:[%s4] sm:$0x1]
    %v121 = vld [vmem:[%s6] sm:$0x1]
    %v122 = vld [vmem:[%s8] sm:$0x1]
    %v124 = vlaneseq
    %v125 = vshrl.u32 %v124, 7
    %v126 = vsub.s32 0, %v125
    %v127 = vrot.slane %v119, %v126
    %vm129 = vcmask 261120
    %v131 = vsel %vm129, %v101, 0
    %v134 = vsel %vm129, %v102, 0
    %136 = vmatprep.subr.mxu0 0.0
    %137 = vmatpush1.msra.mxu0 %v103
    %138 = vmatprep.subr.mxu0 0.0
    %139 = vmatpush1.msra.mxu0 %v104
    %140 = vmatprep.subr.mxu0 0.0
    %141 = vmatpush1.msra.mxu0 %v105
    %142 = vmatprep.subr.mxu0 0.0
    %143 = vmatpush1.msra.mxu0 %v106
    %144 = vmatprep.subr.mxu0 0.0
    %145 = vmatpush1.msra.mxu0 0.0
    %146 = vmatprep.subr.mxu0 0.0
    %147 = vmatpush1.msra.mxu0 0.0
    %148 = vmatprep.subr.mxu0 0.0
    %149 = vmatpush1.msra.mxu0 0.0
    %150 = vmatprep.subr.mxu0 0.0
    %151 = vmatpush1.msra.mxu0 0.0
    %152 = vmatprep.subr.mxu0 0.0
    %153 = vmatpush1.msra.mxu0 0.0
    %154 = vmatprep.subr.mxu0 0.0
    %155 = vmatpush1.msra.mxu0 0.0
    %156 = vmatprep.subr.mxu0 0.0
    %157 = vmatpush1.msra.mxu0 0.0
    %158 = vmatprep.subr.mxu0 0.0
    %159 = vmatpush1.msra.mxu0 0.0
    %160 = vmatprep.subr.mxu0 0.0
    %161 = vmatpush1.msra.mxu0 0.0
    %162 = vmatprep.subr.mxu0 0.0
    %163 = vmatpush1.msra.mxu0 0.0
    %164 = vmatprep.subr.mxu0 0.0
    %165 = vmatpush1.msra.mxu0 0.0
    %166 = vmatprep.subr.mxu0 0.0
    %167 = vmatpush1.msra.mxu0 0.0
    %168 = vmatprep.subr.mxu0 0.0
    %169 = vmatpush1.msra.mxu0 0.0
    %170 = vmatprep.subr.mxu0 0.0
    %171 = vmatpush1.msra.mxu0 0.0
    %172 = vmatprep.subr.mxu0 0.0
    %173 = vmatpush1.msra.mxu0 0.0
    %174 = vmatprep.subr.mxu0 0.0
    %175 = vmatpush1.msra.mxu0 0.0
    %176 = vmatprep.subr.mxu0 0.0
    %177 = vmatpush1.msra.mxu0 0.0
    %178 = vmatprep.subr.mxu0 0.0
    %179 = vmatpush1.msra.mxu0 0.0
    %180 = vmatprep.subr.mxu0 0.0
    %181 = vmatpush1.msra.mxu0 0.0
    %182 = vmatprep.subr.mxu0 0.0
    %183 = vmatpush1.msra.mxu0 0.0
    %184 = vmatprep.subr.mxu0 0.0
    %185 = vmatpush1.msra.mxu0 0.0
    %186 = vmatprep.subr.mxu0 0.0
    %187 = vmatpush1.msra.mxu0 0.0
    %188 = vmatprep.subr.mxu0 0.0
    %189 = vmatpush1.msra.mxu0 0.0
    %190 = vmatprep.subr.mxu0 0.0
    %191 = vmatpush1.msra.mxu0 0.0
    %192 = vmatprep.subr.mxu0 0.0
    %193 = vmatpush1.msra.mxu0 0.0
    %194 = vmatprep.subr.mxu0 0.0
    %195 = vmatpush1.msra.mxu0 0.0
    %196 = vmatprep.subr.mxu0 0.0
    %197 = vmatpush1.msra.mxu0 0.0
    %198 = vmatprep.subr.mxu0 0.0
    %199 = vmatpush1.msra.mxu0 0.0
    %200 = vmatprep.mubr.f32.mxu0 0.0
    %201 = vmatmul.mubr.f32.gmra.mrb[0].mxu0 %v131
    %v202 = vpop.f32.mrb[0].mxu0
    %v203 = vadd.f32 %v127, %v202
    %v204 = vpop.f32.mrb[0].mxu0
    %205 = vmatprep.mubr.f32.mxu0 0.0
    %206 = vmatmul.mubr.f32.gmra.mrb[0].mxu0 %v134
    %v207 = vpop.f32.mrb[0].mxu0
    %v208 = vadd.f32 %v127, %v207
    %v209 = vpop.f32.mrb[0].mxu0
    %210 = vdwg.mxu0
    %v212 = vlaneseq
    %v213 = vshrl.u32 %v212, 7
    %v214 = vsub.s32 0, %v213
    %v215 = vrot.slane %v120, %v214
    %217 = vmatprep.subr.mxu0 0.0
    %218 = vmatpush1.msra.mxu0 %v107
    %219 = vmatprep.subr.mxu0 0.0
    %220 = vmatpush1.msra.mxu0 %v108
    %221 = vmatprep.subr.mxu0 0.0
    %222 = vmatpush1.msra.mxu0 %v109
    %223 = vmatprep.subr.mxu0 0.0
    %224 = vmatpush1.msra.mxu0 %v110
    %225 = vmatprep.subr.mxu0 0.0
    %226 = vmatpush1.msra.mxu0 0.0
    %227 = vmatprep.subr.mxu0 0.0
    %228 = vmatpush1.msra.mxu0 0.0
    %229 = vmatprep.subr.mxu0 0.0
    %230 = vmatpush1.msra.mxu0 0.0
    %231 = vmatprep.subr.mxu0 0.0
    %232 = vmatpush1.msra.mxu0 0.0
    %233 = vmatprep.subr.mxu0 0.0
    %234 = vmatpush1.msra.mxu0 0.0
    %235 = vmatprep.subr.mxu0 0.0
    %236 = vmatpush1.msra.mxu0 0.0
    %237 = vmatprep.subr.mxu0 0.0
    %238 = vmatpush1.msra.mxu0 0.0
    %239 = vmatprep.subr.mxu0 0.0
    %240 = vmatpush1.msra.mxu0 0.0
    %241 = vmatprep.subr.mxu0 0.0
    %242 = vmatpush1.msra.mxu0 0.0
    %243 = vmatprep.subr.mxu0 0.0
    %244 = vmatpush1.msra.mxu0 0.0
    %245 = vmatprep.subr.mxu0 0.0
    %246 = vmatpush1.msra.mxu0 0.0
    %247 = vmatprep.subr.mxu0 0.0
    %248 = vmatpush1.msra.mxu0 0.0
    %249 = vmatprep.subr.mxu0 0.0
    %250 = vmatpush1.msra.mxu0 0.0
    %251 = vmatprep.subr.mxu0 0.0
    %252 = vmatpush1.msra.mxu0 0.0
    %253 = vmatprep.subr.mxu0 0.0
    %254 = vmatpush1.msra.mxu0 0.0
    %255 = vmatprep.subr.mxu0 0.0
    %256 = vmatpush1.msra.mxu0 0.0
    %257 = vmatprep.subr.mxu0 0.0
    %258 = vmatpush1.msra.mxu0 0.0
    %259 = vmatprep.subr.mxu0 0.0
    %260 = vmatpush1.msra.mxu0 0.0
    %261 = vmatprep.subr.mxu0 0.0
    %262 = vmatpush1.msra.mxu0 0.0
    %263 = vmatprep.subr.mxu0 0.0
    %264 = vmatpush1.msra.mxu0 0.0
    %265 = vmatprep.subr.mxu0 0.0
    %266 = vmatpush1.msra.mxu0 0.0
    %267 = vmatprep.subr.mxu0 0.0
    %268 = vmatpush1.msra.mxu0 0.0
    %269 = vmatprep.subr.mxu0 0.0
    %270 = vmatpush1.msra.mxu0 0.0
    %271 = vmatprep.subr.mxu0 0.0
    %272 = vmatpush1.msra.mxu0 0.0
    %273 = vmatprep.subr.mxu0 0.0
    %274 = vmatpush1.msra.mxu0 0.0
    %275 = vmatprep.subr.mxu0 0.0
    %276 = vmatpush1.msra.mxu0 0.0
    %277 = vmatprep.subr.mxu0 0.0
    %278 = vmatpush1.msra.mxu0 0.0
    %279 = vmatprep.subr.mxu0 0.0
    %280 = vmatpush1.msra.mxu0 0.0
    %281 = vmatprep.mubr.f32.mxu0 0.0
    %282 = vmatmul.mubr.f32.gmra.mrb[0].mxu0 %v131
    %v283 = vpop.f32.mrb[0].mxu0
    %v284 = vadd.f32 %v215, %v283
    %v285 = vpop.f32.mrb[0].mxu0
    %286 = vmatprep.mubr.f32.mxu0 0.0
    %287 = vmatmul.mubr.f32.gmra.mrb[0].mxu0 %v134
    %v288 = vpop.f32.mrb[0].mxu0
    %v289 = vadd.f32 %v215, %v288
    %v290 = vpop.f32.mrb[0].mxu0
    %291 = vdwg.mxu0
    %v293 = vlaneseq
    %v294 = vshrl.u32 %v293, 7
    %v295 = vsub.s32 0, %v294
    %v296 = vrot.slane %v121, %v295
    %298 = vmatprep.subr.mxu0 0.0
    %299 = vmatpush1.msra.mxu0 %v111
    %300 = vmatprep.subr.mxu0 0.0
    %301 = vmatpush1.msra.mxu0 %v112
    %302 = vmatprep.subr.mxu0 0.0
    %303 = vmatpush1.msra.mxu0 %v113
    %304 = vmatprep.subr.mxu0 0.0
    %305 = vmatpush1.msra.mxu0 %v114
    %306 = vmatprep.subr.mxu0 0.0
    %307 = vmatpush1.msra.mxu0 0.0
    %308 = vmatprep.subr.mxu0 0.0
    %309 = vmatpush1.msra.mxu0 0.0
    %310 = vmatprep.subr.mxu0 0.0
    %311 = vmatpush1.msra.mxu0 0.0
    %312 = vmatprep.subr.mxu0 0.0
    %313 = vmatpush1.msra.mxu0 0.0
    %314 = vmatprep.subr.mxu0 0.0
    %315 = vmatpush1.msra.mxu0 0.0
    %316 = vmatprep.subr.mxu0 0.0
    %317 = vmatpush1.msra.mxu0 0.0
    %318 = vmatprep.subr.mxu0 0.0
    %319 = vmatpush1.msra.mxu0 0.0
    %320 = vmatprep.subr.mxu0 0.0
    %321 = vmatpush1.msra.mxu0 0.0
    %322 = vmatprep.subr.mxu0 0.0
    %323 = vmatpush1.msra.mxu0 0.0
    %324 = vmatprep.subr.mxu0 0.0
    %325 = vmatpush1.msra.mxu0 0.0
    %326 = vmatprep.subr.mxu0 0.0
    %327 = vmatpush1.msra.mxu0 0.0
    %328 = vmatprep.subr.mxu0 0.0
    %329 = vmatpush1.msra.mxu0 0.0
    %330 = vmatprep.subr.mxu0 0.0
    %331 = vmatpush1.msra.mxu0 0.0
    %332 = vmatprep.subr.mxu0 0.0
    %333 = vmatpush1.msra.mxu0 0.0
    %334 = vmatprep.subr.mxu0 0.0
    %335 = vmatpush1.msra.mxu0 0.0
    %336 = vmatprep.subr.mxu0 0.0
    %337 = vmatpush1.msra.mxu0 0.0
    %338 = vmatprep.subr.mxu0 0.0
    %339 = vmatpush1.msra.mxu0 0.0
    %340 = vmatprep.subr.mxu0 0.0
    %341 = vmatpush1.msra.mxu0 0.0
    %342 = vmatprep.subr.mxu0 0.0
    %343 = vmatpush1.msra.mxu0 0.0
    %344 = vmatprep.subr.mxu0 0.0
    %345 = vmatpush1.msra.mxu0 0.0
    %346 = vmatprep.subr.mxu0 0.0
    %347 = vmatpush1.msra.mxu0 0.0
    %348 = vmatprep.subr.mxu0 0.0
    %349 = vmatpush1.msra.mxu0 0.0
    %350 = vmatprep.subr.mxu0 0.0
    %351 = vmatpush1.msra.mxu0 0.0
    %352 = vmatprep.subr.mxu0 0.0
    %353 = vmatpush1.msra.mxu0 0.0
    %354 = vmatprep.subr.mxu0 0.0
    %355 = vmatpush1.msra.mxu0 0.0
    %356 = vmatprep.subr.mxu0 0.0
    %357 = vmatpush1.msra.mxu0 0.0
    %358 = vmatprep.subr.mxu0 0.0
    %359 = vmatpush1.msra.mxu0 0.0
    %360 = vmatprep.subr.mxu0 0.0
    %361 = vmatpush1.msra.mxu0 0.0
    %362 = vmatprep.mubr.f32.mxu0 0.0
    %363 = vmatmul.mubr.f32.gmra.mrb[0].mxu0 %v131
    %v364 = vpop.f32.mrb[0].mxu0
    %v365 = vadd.f32 %v296, %v364
    %v366 = vpop.f32.mrb[0].mxu0
    %367 = vmatprep.mubr.f32.mxu0 0.0
    %368 = vmatmul.mubr.f32.gmra.mrb[0].mxu0 %v134
    %v369 = vpop.f32.mrb[0].mxu0
    %v370 = vadd.f32 %v296, %v369
    %v371 = vpop.f32.mrb[0].mxu0
    %372 = vdwg.mxu0
    %vm373 = vcmask 64512
    %v375 = vsel %vm373, %v203, 0
    %v378 = vsel %vm373, %v284, 0
    %380 = vmatprep.subr.mxu0 0.0
    %381 = vmatpush1.xpose.msra.mxu0 %v378
    %382 = vmatprep.subr.mxu0 0.0
    %383 = vmatpush1.xpose.msra.mxu0 0.0
    %384 = vmatprep.subr.mxu0 0.0
    %385 = vmatpush1.xpose.msra.mxu0 0.0
    %386 = vmatprep.subr.mxu0 0.0
    %387 = vmatpush1.xpose.msra.mxu0 0.0
    %388 = vmatprep.subr.mxu0 0.0
    %389 = vmatpush1.xpose.msra.mxu0 0.0
    %390 = vmatprep.subr.mxu0 0.0
    %391 = vmatpush1.xpose.msra.mxu0 0.0
    %392 = vmatprep.subr.mxu0 0.0
    %393 = vmatpush1.xpose.msra.mxu0 0.0
    %394 = vmatprep.subr.mxu0 0.0
    %395 = vmatpush1.xpose.msra.mxu0 0.0
    %396 = vmatprep.subr.mxu0 0.0
    %397 = vmatpush1.xpose.msra.mxu0 0.0
    %398 = vmatprep.subr.mxu0 0.0
    %399 = vmatpush1.xpose.msra.mxu0 0.0
    %400 = vmatprep.subr.mxu0 0.0
    %401 = vmatpush1.xpose.msra.mxu0 0.0
    %402 = vmatprep.subr.mxu0 0.0
    %403 = vmatpush1.xpose.msra.mxu0 0.0
    %404 = vmatprep.subr.mxu0 0.0
    %405 = vmatpush1.xpose.msra.mxu0 0.0
    %406 = vmatprep.subr.mxu0 0.0
    %407 = vmatpush1.xpose.msra.mxu0 0.0
    %408 = vmatprep.subr.mxu0 0.0
    %409 = vmatpush1.xpose.msra.mxu0 0.0
    %410 = vmatprep.subr.mxu0 0.0
    %411 = vmatpush1.xpose.msra.mxu0 0.0
    %412 = vmatprep.subr.mxu0 0.0
    %413 = vmatpush1.xpose.msra.mxu0 0.0
    %414 = vmatprep.subr.mxu0 0.0
    %415 = vmatpush1.xpose.msra.mxu0 0.0
    %416 = vmatprep.subr.mxu0 0.0
    %417 = vmatpush1.xpose.msra.mxu0 0.0
    %418 = vmatprep.subr.mxu0 0.0
    %419 = vmatpush1.xpose.msra.mxu0 0.0
    %420 = vmatprep.subr.mxu0 0.0
    %421 = vmatpush1.xpose.msra.mxu0 0.0
    %422 = vmatprep.subr.mxu0 0.0
    %423 = vmatpush1.xpose.msra.mxu0 0.0
    %424 = vmatprep.subr.mxu0 0.0
    %425 = vmatpush1.xpose.msra.mxu0 0.0
    %426 = vmatprep.subr.mxu0 0.0
    %427 = vmatpush1.xpose.msra.mxu0 0.0
    %428 = vmatprep.subr.mxu0 0.0
    %429 = vmatpush1.xpose.msra.mxu0 0.0
    %430 = vmatprep.subr.mxu0 0.0
    %431 = vmatpush1.xpose.msra.mxu0 0.0
    %432 = vmatprep.subr.mxu0 0.0
    %433 = vmatpush1.xpose.msra.mxu0 0.0
    %434 = vmatprep.subr.mxu0 0.0
    %435 = vmatpush1.xpose.msra.mxu0 0.0
    %436 = vmatprep.subr.mxu0 0.0
    %437 = vmatpush1.xpose.msra.mxu0 0.0
    %438 = vmatprep.subr.mxu0 0.0
    %439 = vmatpush1.xpose.msra.mxu0 0.0
    %440 = vmatprep.subr.mxu0 0.0
    %441 = vmatpush1.xpose.msra.mxu0 0.0
    %442 = vmatprep.subr.mxu0 0.0
    %443 = vmatpush1.xpose.msra.mxu0 0.0
    %444 = vmatprep.mubr.f32.mxu0 0.0
    %445 = vmatmul.mubr.f32.gmra.mrb[0].mxu0 %v375
    %v446 = vpop.f32.mrb[0].mxu0
    %v447 = vadd.f32 0.0, %v446
    %v448 = vpop.f32.mrb[0].mxu0
    %449 = vdwg.mxu0
    %v451 = vsel %vm373, %v208, 0
    %v454 = vsel %vm373, %v289, 0
    %456 = vmatprep.subr.mxu0 0.0
    %457 = vmatpush1.xpose.msra.mxu0 %v454
    %458 = vmatprep.subr.mxu0 0.0
    %459 = vmatpush1.xpose.msra.mxu0 0.0
    %460 = vmatprep.subr.mxu0 0.0
    %461 = vmatpush1.xpose.msra.mxu0 0.0
    %462 = vmatprep.subr.mxu0 0.0
    %463 = vmatpush1.xpose.msra.mxu0 0.0
    %464 = vmatprep.subr.mxu0 0.0
    %465 = vmatpush1.xpose.msra.mxu0 0.0
    %466 = vmatprep.subr.mxu0 0.0
    %467 = vmatpush1.xpose.msra.mxu0 0.0
    %468 = vmatprep.subr.mxu0 0.0
    %469 = vmatpush1.xpose.msra.mxu0 0.0
    %470 = vmatprep.subr.mxu0 0.0
    %471 = vmatpush1.xpose.msra.mxu0 0.0
    %472 = vmatprep.subr.mxu0 0.0
    %473 = vmatpush1.xpose.msra.mxu0 0.0
    %474 = vmatprep.subr.mxu0 0.0
    %475 = vmatpush1.xpose.msra.mxu0 0.0
    %476 = vmatprep.subr.mxu0 0.0
    %477 = vmatpush1.xpose.msra.mxu0 0.0
    %478 = vmatprep.subr.mxu0 0.0
    %479 = vmatpush1.xpose.msra.mxu0 0.0
    %480 = vmatprep.subr.mxu0 0.0
    %481 = vmatpush1.xpose.msra.mxu0 0.0
    %482 = vmatprep.subr.mxu0 0.0
    %483 = vmatpush1.xpose.msra.mxu0 0.0
    %484 = vmatprep.subr.mxu0 0.0
    %485 = vmatpush1.xpose.msra.mxu0 0.0
    %486 = vmatprep.subr.mxu0 0.0
    %487 = vmatpush1.xpose.msra.mxu0 0.0
    %488 = vmatprep.subr.mxu0 0.0
    %489 = vmatpush1.xpose.msra.mxu0 0.0
    %490 = vmatprep.subr.mxu0 0.0
    %491 = vmatpush1.xpose.msra.mxu0 0.0
    %492 = vmatprep.subr.mxu0 0.0
    %493 = vmatpush1.xpose.msra.mxu0 0.0
    %494 = vmatprep.subr.mxu0 0.0
    %495 = vmatpush1.xpose.msra.mxu0 0.0
    %496 = vmatprep.subr.mxu0 0.0
    %497 = vmatpush1.xpose.msra.mxu0 0.0
    %498 = vmatprep.subr.mxu0 0.0
    %499 = vmatpush1.xpose.msra.mxu0 0.0
    %500 = vmatprep.subr.mxu0 0.0
    %501 = vmatpush1.xpose.msra.mxu0 0.0
    %502 = vmatprep.subr.mxu0 0.0
    %503 = vmatpush1.xpose.msra.mxu0 0.0
    %504 = vmatprep.subr.mxu0 0.0
    %505 = vmatpush1.xpose.msra.mxu0 0.0
    %506 = vmatprep.subr.mxu0 0.0
    %507 = vmatpush1.xpose.msra.mxu0 0.0
    %508 = vmatprep.subr.mxu0 0.0
    %509 = vmatpush1.xpose.msra.mxu0 0.0
    %510 = vmatprep.subr.mxu0 0.0
    %511 = vmatpush1.xpose.msra.mxu0 0.0
    %512 = vmatprep.subr.mxu0 0.0
    %513 = vmatpush1.xpose.msra.mxu0 0.0
    %514 = vmatprep.subr.mxu0 0.0
    %515 = vmatpush1.xpose.msra.mxu0 0.0
    %516 = vmatprep.subr.mxu0 0.0
    %517 = vmatpush1.xpose.msra.mxu0 0.0
    %518 = vmatprep.subr.mxu0 0.0
    %519 = vmatpush1.xpose.msra.mxu0 0.0
    %520 = vmatprep.mubr.f32.mxu0 0.0
    %521 = vmatmul.mubr.f32.gmra.mrb[0].mxu0 %v451
    %v522 = vpop.f32.mrb[0].mxu0
    %v523 = vadd.f32 0.0, %v522
    %v524 = vpop.f32.mrb[0].mxu0
    %525 = vdwg.mxu0
    %v526 = vsel %vm373, %v447, -inf
    %527 = vmax.xlane.f32.xlu0 %v526
    %v528 = vpop.xlane.xlu0 %527
    %v529 = vsel %vm373, %v523, -inf
    %530 = vmax.xlane.f32.xlu0 %v529
    %v531 = vpop.xlane.xlu0 %530
    %v532 = vsub.f32 %v447, %v528
    %v533 = vsub.f32 %v523, %v531
    %v534 = vmul.f32 %v532, 1.442695
    %v535 = vpow.pop %v534
    %v536 = vmul.f32 %v533, 1.442695
    %v537 = vpow.pop %v536
    %v538 = vsel %vm373, %v535, 0.0
    %539 = vadd.xlane.f32.xlu0 %v538
    %v540 = vpop.xlane.xlu0 %539
    %v541 = vsel %vm373, %v537, 0.0
    %542 = vadd.xlane.f32.xlu0 %v541
    %v543 = vpop.xlane.xlu0 %542
    %v544 = vrcp.pop %v540
    %v545 = vrcp.pop %v543
    %v546 = vmul.f32 %v535, %v544
    %v547 = vmul.f32 %v537, %v545
    %v549 = vsel %vm373, %v546, 0
    %551 = vmatprep.subr.mxu0 0.0
    %552 = vmatpush1.msra.mxu0 %v365
    %553 = vmatprep.subr.mxu0 0.0
    %554 = vmatpush1.msra.mxu0 0.0
    %555 = vmatprep.subr.mxu0 0.0
    %556 = vmatpush1.msra.mxu0 0.0
    %557 = vmatprep.subr.mxu0 0.0
    %558 = vmatpush1.msra.mxu0 0.0
    %559 = vmatprep.subr.mxu0 0.0
    %560 = vmatpush1.msra.mxu0 0.0
    %561 = vmatprep.subr.mxu0 0.0
    %562 = vmatpush1.msra.mxu0 0.0
    %563 = vmatprep.subr.mxu0 0.0
    %564 = vmatpush1.msra.mxu0 0.0
    %565 = vmatprep.subr.mxu0 0.0
    %566 = vmatpush1.msra.mxu0 0.0
    %567 = vmatprep.subr.mxu0 0.0
    %568 = vmatpush1.msra.mxu0 0.0
    %569 = vmatprep.subr.mxu0 0.0
    %570 = vmatpush1.msra.mxu0 0.0
    %571 = vmatprep.subr.mxu0 0.0
    %572 = vmatpush1.msra.mxu0 0.0
    %573 = vmatprep.subr.mxu0 0.0
    %574 = vmatpush1.msra.mxu0 0.0
    %575 = vmatprep.subr.mxu0 0.0
    %576 = vmatpush1.msra.mxu0 0.0
    %577 = vmatprep.subr.mxu0 0.0
    %578 = vmatpush1.msra.mxu0 0.0
    %579 = vmatprep.subr.mxu0 0.0
    %580 = vmatpush1.msra.mxu0 0.0
    %581 = vmatprep.subr.mxu0 0.0
    %582 = vmatpush1.msra.mxu0 0.0
    %583 = vmatprep.subr.mxu0 0.0
    %584 = vmatpush1.msra.mxu0 0.0
    %585 = vmatprep.subr.mxu0 0.0
    %586 = vmatpush1.msra.mxu0 0.0
    %587 = vmatprep.subr.mxu0 0.0
    %588 = vmatpush1.msra.mxu0 0.0
    %589 = vmatprep.subr.mxu0 0.0
    %590 = vmatpush1.msra.mxu0 0.0
    %591 = vmatprep.subr.mxu0 0.0
    %592 = vmatpush1.msra.mxu0 0.0
    %593 = vmatprep.subr.mxu0 0.0
    %594 = vmatpush1.msra.mxu0 0.0
    %595 = vmatprep.subr.mxu0 0.0
    %596 = vmatpush1.msra.mxu0 0.0
    %597 = vmatprep.subr.mxu0 0.0
    %598 = vmatpush1.msra.mxu0 0.0
    %599 = vmatprep.subr.mxu0 0.0
    %600 = vmatpush1.msra.mxu0 0.0
    %601 = vmatprep.subr.mxu0 0.0
    %602 = vmatpush1.msra.mxu0 0.0
    %603 = vmatprep.subr.mxu0 0.0
    %604 = vmatpush1.msra.mxu0 0.0
    %605 = vmatprep.subr.mxu0 0.0
    %606 = vmatpush1.msra.mxu0 0.0
    %607 = vmatprep.subr.mxu0 0.0
    %608 = vmatpush1.msra.mxu0 0.0
    %609 = vmatprep.subr.mxu0 0.0
    %610 = vmatpush1.msra.mxu0 0.0
    %611 = vmatprep.subr.mxu0 0.0
    %612 = vmatpush1.msra.mxu0 0.0
    %613 = vmatprep.subr.mxu0 0.0
    %614 = vmatpush1.msra.mxu0 0.0
    %615 = vmatprep.mubr.f32.mxu0 0.0
    %616 = vmatmul.mubr.f32.gmra.mrb[0].mxu0 %v549
    %v617 = vpop.f32.mrb[0].mxu0
    %v618 = vadd.f32 0.0, %v617
    %v619 = vpop.f32.mrb[0].mxu0
    %620 = vdwg.mxu0
    %v622 = vsel %vm373, %v547, 0
    %624 = vmatprep.subr.mxu0 0.0
    %625 = vmatpush1.msra.mxu0 %v370
    %626 = vmatprep.subr.mxu0 0.0
    %627 = vmatpush1.msra.mxu0 0.0
    %628 = vmatprep.subr.mxu0 0.0
    %629 = vmatpush1.msra.mxu0 0.0
    %630 = vmatprep.subr.mxu0 0.0
    %631 = vmatpush1.msra.mxu0 0.0
    %632 = vmatprep.subr.mxu0 0.0
    %633 = vmatpush1.msra.mxu0 0.0
    %634 = vmatprep.subr.mxu0 0.0
    %635 = vmatpush1.msra.mxu0 0.0
    %636 = vmatprep.subr.mxu0 0.0
    %637 = vmatpush1.msra.mxu0 0.0
    %638 = vmatprep.subr.mxu0 0.0
    %639 = vmatpush1.msra.mxu0 0.0
    %640 = vmatprep.subr.mxu0 0.0
    %641 = vmatpush1.msra.mxu0 0.0
    %642 = vmatprep.subr.mxu0 0.0
    %643 = vmatpush1.msra.mxu0 0.0
    %644 = vmatprep.subr.mxu0 0.0
    %645 = vmatpush1.msra.mxu0 0.0
    %646 = vmatprep.subr.mxu0 0.0
    %647 = vmatpush1.msra.mxu0 0.0
    %648 = vmatprep.subr.mxu0 0.0
    %649 = vmatpush1.msra.mxu0 0.0
    %650 = vmatprep.subr.mxu0 0.0
    %651 = vmatpush1.msra.mxu0 0.0
    %652 = vmatprep.subr.mxu0 0.0
    %653 = vmatpush1.msra.mxu0 0.0
    %654 = vmatprep.subr.mxu0 0.0
    %655 = vmatpush1.msra.mxu0 0.0
    %656 = vmatprep.subr.mxu0 0.0
    %657 = vmatpush1.msra.mxu0 0.0
    %658 = vmatprep.subr.mxu0 0.0
    %659 = vmatpush1.msra.mxu0 0.0
    %660 = vmatprep.subr.mxu0 0.0
    %661 = vmatpush1.msra.mxu0 0.0
    %662 = vmatprep.subr.mxu0 0.0
    %663 = vmatpush1.msra.mxu0 0.0
    %664 = vmatprep.subr.mxu0 0.0
    %665 = vmatpush1.msra.mxu0 0.0
    %666 = vmatprep.subr.mxu0 0.0
    %667 = vmatpush1.msra.mxu0 0.0
    %668 = vmatprep.subr.mxu0 0.0
    %669 = vmatpush1.msra.mxu0 0.0
    %670 = vmatprep.subr.mxu0 0.0
    %671 = vmatpush1.msra.mxu0 0.0
    %672 = vmatprep.subr.mxu0 0.0
    %673 = vmatpush1.msra.mxu0 0.0
    %674 = vmatprep.subr.mxu0 0.0
    %675 = vmatpush1.msra.mxu0 0.0
    %676 = vmatprep.subr.mxu0 0.0
    %677 = vmatpush1.msra.mxu0 0.0
    %678 = vmatprep.subr.mxu0 0.0
    %679 = vmatpush1.msra.mxu0 0.0
    %680 = vmatprep.subr.mxu0 0.0
    %681 = vmatpush1.msra.mxu0 0.0
    %682 = vmatprep.subr.mxu0 0.0
    %683 = vmatpush1.msra.mxu0 0.0
    %684 = vmatprep.subr.mxu0 0.0
    %685 = vmatpush1.msra.mxu0 0.0
    %686 = vmatprep.subr.mxu0 0.0
    %687 = vmatpush1.msra.mxu0 0.0
    %688 = vmatprep.mubr.f32.mxu0 0.0
    %689 = vmatmul.mubr.f32.gmra.mrb[0].mxu0 %v622
    %v690 = vpop.f32.mrb[0].mxu0
    %v691 = vadd.f32 0.0, %v690
    %v692 = vpop.f32.mrb[0].mxu0
    %693 = vdwg.mxu0
    %694 = vrot.lane.b32.xlu0 %v203, 120
    %v695 = vpop.permute.xlu0 %694
    %696 = vrot.lane.b32.xlu0 %v284, 120
    %v697 = vpop.permute.xlu0 %696
    %v698 = vsel %vm373, %v695, 0
    %v700 = vsel %vm373, %v697, 0
    %702 = vmatprep.subr.mxu0 0.0
    %703 = vmatpush1.xpose.msra.mxu0 %v700
    %704 = vmatprep.subr.mxu0 0.0
    %705 = vmatpush1.xpose.msra.mxu0 0.0
    %706 = vmatprep.subr.mxu0 0.0
    %707 = vmatpush1.xpose.msra.mxu0 0.0
    %708 = vmatprep.subr.mxu0 0.0
    %709 = vmatpush1.xpose.msra.mxu0 0.0
    %710 = vmatprep.subr.mxu0 0.0
    %711 = vmatpush1.xpose.msra.mxu0 0.0
    %712 = vmatprep.subr.mxu0 0.0
    %713 = vmatpush1.xpose.msra.mxu0 0.0
    %714 = vmatprep.subr.mxu0 0.0
    %715 = vmatpush1.xpose.msra.mxu0 0.0
    %716 = vmatprep.subr.mxu0 0.0
    %717 = vmatpush1.xpose.msra.mxu0 0.0
    %718 = vmatprep.subr.mxu0 0.0
    %719 = vmatpush1.xpose.msra.mxu0 0.0
    %720 = vmatprep.subr.mxu0 0.0
    %721 = vmatpush1.xpose.msra.mxu0 0.0
    %722 = vmatprep.subr.mxu0 0.0
    %723 = vmatpush1.xpose.msra.mxu0 0.0
    %724 = vmatprep.subr.mxu0 0.0
    %725 = vmatpush1.xpose.msra.mxu0 0.0
    %726 = vmatprep.subr.mxu0 0.0
    %727 = vmatpush1.xpose.msra.mxu0 0.0
    %728 = vmatprep.subr.mxu0 0.0
    %729 = vmatpush1.xpose.msra.mxu0 0.0
    %730 = vmatprep.subr.mxu0 0.0
    %731 = vmatpush1.xpose.msra.mxu0 0.0
    %732 = vmatprep.subr.mxu0 0.0
    %733 = vmatpush1.xpose.msra.mxu0 0.0
    %734 = vmatprep.subr.mxu0 0.0
    %735 = vmatpush1.xpose.msra.mxu0 0.0
    %736 = vmatprep.subr.mxu0 0.0
    %737 = vmatpush1.xpose.msra.mxu0 0.0
    %738 = vmatprep.subr.mxu0 0.0
    %739 = vmatpush1.xpose.msra.mxu0 0.0
    %740 = vmatprep.subr.mxu0 0.0
    %741 = vmatpush1.xpose.msra.mxu0 0.0
    %742 = vmatprep.subr.mxu0 0.0
    %743 = vmatpush1.xpose.msra.mxu0 0.0
    %744 = vmatprep.subr.mxu0 0.0
    %745 = vmatpush1.xpose.msra.mxu0 0.0
    %746 = vmatprep.subr.mxu0 0.0
    %747 = vmatpush1.xpose.msra.mxu0 0.0
    %748 = vmatprep.subr.mxu0 0.0
    %749 = vmatpush1.xpose.msra.mxu0 0.0
    %750 = vmatprep.subr.mxu0 0.0
    %751 = vmatpush1.xpose.msra.mxu0 0.0
    %752 = vmatprep.subr.mxu0 0.0
    %753 = vmatpush1.xpose.msra.mxu0 0.0
    %754 = vmatprep.subr.mxu0 0.0
    %755 = vmatpush1.xpose.msra.mxu0 0.0
    %756 = vmatprep.subr.mxu0 0.0
    %757 = vmatpush1.xpose.msra.mxu0 0.0
    %758 = vmatprep.subr.mxu0 0.0
    %759 = vmatpush1.xpose.msra.mxu0 0.0
    %760 = vmatprep.subr.mxu0 0.0
    %761 = vmatpush1.xpose.msra.mxu0 0.0
    %762 = vmatprep.subr.mxu0 0.0
    %763 = vmatpush1.xpose.msra.mxu0 0.0
    %764 = vmatprep.subr.mxu0 0.0
    %765 = vmatpush1.xpose.msra.mxu0 0.0
    %766 = vmatprep.mubr.f32.mxu0 0.0
    %767 = vmatmul.mubr.f32.gmra.mrb[0].mxu0 %v698
    %v768 = vpop.f32.mrb[0].mxu0
    %v769 = vadd.f32 0.0, %v768
    %v770 = vpop.f32.mrb[0].mxu0
    %771 = vdwg.mxu0
    %772 = vrot.lane.b32.xlu0 %v208, 120
    %v773 = vpop.permute.xlu0 %772
    %774 = vrot.lane.b32.xlu0 %v289, 120
    %v775 = vpop.permute.xlu0 %774
    %v776 = vsel %vm373, %v773, 0
    %v778 = vsel %vm373, %v775, 0
    %780 = vmatprep.subr.mxu0 0.0
    %781 = vmatpush1.xpose.msra.mxu0 %v778
    %782 = vmatprep.subr.mxu0 0.0
    %783 = vmatpush1.xpose.msra.mxu0 0.0
    %784 = vmatprep.subr.mxu0 0.0
    %785 = vmatpush1.xpose.msra.mxu0 0.0
    %786 = vmatprep.subr.mxu0 0.0
    %787 = vmatpush1.xpose.msra.mxu0 0.0
    %788 = vmatprep.subr.mxu0 0.0
    %789 = vmatpush1.xpose.msra.mxu0 0.0
    %790 = vmatprep.subr.mxu0 0.0
    %791 = vmatpush1.xpose.msra.mxu0 0.0
    %792 = vmatprep.subr.mxu0 0.0
    %793 = vmatpush1.xpose.msra.mxu0 0.0
    %794 = vmatprep.subr.mxu0 0.0
    %795 = vmatpush1.xpose.msra.mxu0 0.0
    %796 = vmatprep.subr.mxu0 0.0
    %797 = vmatpush1.xpose.msra.mxu0 0.0
    %798 = vmatprep.subr.mxu0 0.0
    %799 = vmatpush1.xpose.msra.mxu0 0.0
    %800 = vmatprep.subr.mxu0 0.0
    %801 = vmatpush1.xpose.msra.mxu0 0.0
    %802 = vmatprep.subr.mxu0 0.0
    %803 = vmatpush1.xpose.msra.mxu0 0.0
    %804 = vmatprep.subr.mxu0 0.0
    %805 = vmatpush1.xpose.msra.mxu0 0.0
    %806 = vmatprep.subr.mxu0 0.0
    %807 = vmatpush1.xpose.msra.mxu0 0.0
    %808 = vmatprep.subr.mxu0 0.0
    %809 = vmatpush1.xpose.msra.mxu0 0.0
    %810 = vmatprep.subr.mxu0 0.0
    %811 = vmatpush1.xpose.msra.mxu0 0.0
    %812 = vmatprep.subr.mxu0 0.0
    %813 = vmatpush1.xpose.msra.mxu0 0.0
    %814 = vmatprep.subr.mxu0 0.0
    %815 = vmatpush1.xpose.msra.mxu0 0.0
    %816 = vmatprep.subr.mxu0 0.0
    %817 = vmatpush1.xpose.msra.mxu0 0.0
    %818 = vmatprep.subr.mxu0 0.0
    %819 = vmatpush1.xpose.msra.mxu0 0.0
    %820 = vmatprep.subr.mxu0 0.0
    %821 = vmatpush1.xpose.msra.mxu0 0.0
    %822 = vmatprep.subr.mxu0 0.0
    %823 = vmatpush1.xpose.msra.mxu0 0.0
    %824 = vmatprep.subr.mxu0 0.0
    %825 = vmatpush1.xpose.msra.mxu0 0.0
    %826 = vmatprep.subr.mxu0 0.0
    %827 = vmatpush1.xpose.msra.mxu0 0.0
    %828 = vmatprep.subr.mxu0 0.0
    %829 = vmatpush1.xpose.msra.mxu0 0.0
    %830 = vmatprep.subr.mxu0 0.0
    %831 = vmatpush1.xpose.msra.mxu0 0.0
    %832 = vmatprep.subr.mxu0 0.0
    %833 = vmatpush1.xpose.msra.mxu0 0.0
    %834 = vmatprep.subr.mxu0 0.0
    %835 = vmatpush1.xpose.msra.mxu0 0.0
    %836 = vmatprep.subr.mxu0 0.0
    %837 = vmatpush1.xpose.msra.mxu0 0.0
    %838 = vmatprep.subr.mxu0 0.0
    %839 = vmatpush1.xpose.msra.mxu0 0.0
    %840 = vmatprep.subr.mxu0 0.0
    %841 = vmatpush1.xpose.msra.mxu0 0.0
    %842 = vmatprep.subr.mxu0 0.0
    %843 = vmatpush1.xpose.msra.mxu0 0.0
    %844 = vmatprep.mubr.f32.mxu0 0.0
    %845 = vmatmul.mubr.f32.gmra.mrb[0].mxu0 %v776
    %v846 = vpop.f32.mrb[0].mxu0
    %v847 = vadd.f32 0.0, %v846
    %v848 = vpop.f32.mrb[0].mxu0
    %849 = vdwg.mxu0
    %v850 = vsel %vm373, %v769, -inf
    %851 = vmax.xlane.f32.xlu0 %v850
    %v852 = vpop.xlane.xlu0 %851
    %v853 = vsel %vm373, %v847, -inf
    %854 = vmax.xlane.f32.xlu0 %v853
    %v855 = vpop.xlane.xlu0 %854
    %v856 = vsub.f32 %v769, %v852
    %v857 = vsub.f32 %v847, %v855
    %v858 = vmul.f32 %v856, 1.442695
    %v859 = vpow.pop %v858
    %v860 = vmul.f32 %v857, 1.442695
    %v861 = vpow.pop %v860
    %v862 = vsel %vm373, %v859, 0.0
    %863 = vadd.xlane.f32.xlu0 %v862
    %v864 = vpop.xlane.xlu0 %863
    %v865 = vsel %vm373, %v861, 0.0
    %866 = vadd.xlane.f32.xlu0 %v865
    %v867 = vpop.xlane.xlu0 %866
    %v868 = vrcp.pop %v864
    %v869 = vrcp.pop %v867
    %v870 = vmul.f32 %v859, %v868
    %v871 = vmul.f32 %v861, %v869
    %873 = vrot.lane.b32.xlu0 %v365, 120
    %v874 = vpop.permute.xlu0 %873
    %v877 = vsel %vm373, %v870, 0
    %879 = vmatprep.subr.mxu0 0.0
    %880 = vmatpush1.msra.mxu0 %v874
    %881 = vmatprep.subr.mxu0 0.0
    %882 = vmatpush1.msra.mxu0 0.0
    %883 = vmatprep.subr.mxu0 0.0
    %884 = vmatpush1.msra.mxu0 0.0
    %885 = vmatprep.subr.mxu0 0.0
    %886 = vmatpush1.msra.mxu0 0.0
    %887 = vmatprep.subr.mxu0 0.0
    %888 = vmatpush1.msra.mxu0 0.0
    %889 = vmatprep.subr.mxu0 0.0
    %890 = vmatpush1.msra.mxu0 0.0
    %891 = vmatprep.subr.mxu0 0.0
    %892 = vmatpush1.msra.mxu0 0.0
    %893 = vmatprep.subr.mxu0 0.0
    %894 = vmatpush1.msra.mxu0 0.0
    %895 = vmatprep.subr.mxu0 0.0
    %896 = vmatpush1.msra.mxu0 0.0
    %897 = vmatprep.subr.mxu0 0.0
    %898 = vmatpush1.msra.mxu0 0.0
    %899 = vmatprep.subr.mxu0 0.0
    %900 = vmatpush1.msra.mxu0 0.0
    %901 = vmatprep.subr.mxu0 0.0
    %902 = vmatpush1.msra.mxu0 0.0
    %903 = vmatprep.subr.mxu0 0.0
    %904 = vmatpush1.msra.mxu0 0.0
    %905 = vmatprep.subr.mxu0 0.0
    %906 = vmatpush1.msra.mxu0 0.0
    %907 = vmatprep.subr.mxu0 0.0
    %908 = vmatpush1.msra.mxu0 0.0
    %909 = vmatprep.subr.mxu0 0.0
    %910 = vmatpush1.msra.mxu0 0.0
    %911 = vmatprep.subr.mxu0 0.0
    %912 = vmatpush1.msra.mxu0 0.0
    %913 = vmatprep.subr.mxu0 0.0
    %914 = vmatpush1.msra.mxu0 0.0
    %915 = vmatprep.subr.mxu0 0.0
    %916 = vmatpush1.msra.mxu0 0.0
    %917 = vmatprep.subr.mxu0 0.0
    %918 = vmatpush1.msra.mxu0 0.0
    %919 = vmatprep.subr.mxu0 0.0
    %920 = vmatpush1.msra.mxu0 0.0
    %921 = vmatprep.subr.mxu0 0.0
    %922 = vmatpush1.msra.mxu0 0.0
    %923 = vmatprep.subr.mxu0 0.0
    %924 = vmatpush1.msra.mxu0 0.0
    %925 = vmatprep.subr.mxu0 0.0
    %926 = vmatpush1.msra.mxu0 0.0
    %927 = vmatprep.subr.mxu0 0.0
    %928 = vmatpush1.msra.mxu0 0.0
    %929 = vmatprep.subr.mxu0 0.0
    %930 = vmatpush1.msra.mxu0 0.0
    %931 = vmatprep.subr.mxu0 0.0
    %932 = vmatpush1.msra.mxu0 0.0
    %933 = vmatprep.subr.mxu0 0.0
    %934 = vmatpush1.msra.mxu0 0.0
    %935 = vmatprep.subr.mxu0 0.0
    %936 = vmatpush1.msra.mxu0 0.0
    %937 = vmatprep.subr.mxu0 0.0
    %938 = vmatpush1.msra.mxu0 0.0
    %939 = vmatprep.subr.mxu0 0.0
    %940 = vmatpush1.msra.mxu0 0.0
    %941 = vmatprep.subr.mxu0 0.0
    %942 = vmatpush1.msra.mxu0 0.0
    %943 = vmatprep.mubr.f32.mxu0 0.0
    %944 = vmatmul.mubr.f32.gmra.mrb[0].mxu0 %v877
    %v945 = vpop.f32.mrb[0].mxu0
    %v946 = vadd.f32 0.0, %v945
    %v947 = vpop.f32.mrb[0].mxu0
    %948 = vdwg.mxu0
    %950 = vrot.lane.b32.xlu0 %v370, 120
    %v951 = vpop.permute.xlu0 %950
    %v954 = vsel %vm373, %v871, 0
    %956 = vmatprep.subr.mxu0 0.0
    %957 = vmatpush1.msra.mxu0 %v951
    %958 = vmatprep.subr.mxu0 0.0
    %959 = vmatpush1.msra.mxu0 0.0
    %960 = vmatprep.subr.mxu0 0.0
    %961 = vmatpush1.msra.mxu0 0.0
    %962 = vmatprep.subr.mxu0 0.0
    %963 = vmatpush1.msra.mxu0 0.0
    %964 = vmatprep.subr.mxu0 0.0
    %965 = vmatpush1.msra.mxu0 0.0
    %966 = vmatprep.subr.mxu0 0.0
    %967 = vmatpush1.msra.mxu0 0.0
    %968 = vmatprep.subr.mxu0 0.0
    %969 = vmatpush1.msra.mxu0 0.0
    %970 = vmatprep.subr.mxu0 0.0
    %971 = vmatpush1.msra.mxu0 0.0
    %972 = vmatprep.subr.mxu0 0.0
    %973 = vmatpush1.msra.mxu0 0.0
    %974 = vmatprep.subr.mxu0 0.0
    %975 = vmatpush1.msra.mxu0 0.0
    %976 = vmatprep.subr.mxu0 0.0
    %977 = vmatpush1.msra.mxu0 0.0
    %978 = vmatprep.subr.mxu0 0.0
    %979 = vmatpush1.msra.mxu0 0.0
    %980 = vmatprep.subr.mxu0 0.0
    %981 = vmatpush1.msra.mxu0 0.0
    %982 = vmatprep.subr.mxu0 0.0
    %983 = vmatpush1.msra.mxu0 0.0
    %984 = vmatprep.subr.mxu0 0.0
    %985 = vmatpush1.msra.mxu0 0.0
    %986 = vmatprep.subr.mxu0 0.0
    %987 = vmatpush1.msra.mxu0 0.0
    %988 = vmatprep.subr.mxu0 0.0
    %989 = vmatpush1.msra.mxu0 0.0
    %990 = vmatprep.subr.mxu0 0.0
    %991 = vmatpush1.msra.mxu0 0.0
    %992 = vmatprep.subr.mxu0 0.0
    %993 = vmatpush1.msra.mxu0 0.0
    %994 = vmatprep.subr.mxu0 0.0
    %995 = vmatpush1.msra.mxu0 0.0
    %996 = vmatprep.subr.mxu0 0.0
    %997 = vmatpush1.msra.mxu0 0.0
    %998 = vmatprep.subr.mxu0 0.0
    %999 = vmatpush1.msra.mxu0 0.0
    %1000 = vmatprep.subr.mxu0 0.0
    %1001 = vmatpush1.msra.mxu0 0.0
    %1002 = vmatprep.subr.mxu0 0.0
    %1003 = vmatpush1.msra.mxu0 0.0
    %1004 = vmatprep.subr.mxu0 0.0
    %1005 = vmatpush1.msra.mxu0 0.0
    %1006 = vmatprep.subr.mxu0 0.0
    %1007 = vmatpush1.msra.mxu0 0.0
    %1008 = vmatprep.subr.mxu0 0.0
    %1009 = vmatpush1.msra.mxu0 0.0
    %1010 = vmatprep.subr.mxu0 0.0
    %1011 = vmatpush1.msra.mxu0 0.0
    %1012 = vmatprep.subr.mxu0 0.0
    %1013 = vmatpush1.msra.mxu0 0.0
    %1014 = vmatprep.subr.mxu0 0.0
    %1015 = vmatpush1.msra.mxu0 0.0
    %1016 = vmatprep.subr.mxu0 0.0
    %1017 = vmatpush1.msra.mxu0 0.0
    %1018 = vmatprep.subr.mxu0 0.0
    %1019 = vmatpush1.msra.mxu0 0.0
    %1020 = vmatprep.mubr.f32.mxu0 0.0
    %1021 = vmatmul.mubr.f32.gmra.mrb[0].mxu0 %v954
    %v1022 = vpop.f32.mrb[0].mxu0
    %v1023 = vadd.f32 0.0, %v1022
    %v1024 = vpop.f32.mrb[0].mxu0
    %1025 = vdwg.mxu0
    %v1027 = vsel %vm373, %v946, 0
    %v1030 = vsel %vm373, %v1023, 0
    %1032 = vmatprep.subr.mxu0 0.0
    %1033 = vmatpush1.msra.mxu0 %v116
    %1034 = vmatprep.subr.mxu0 0.0
    %1035 = vmatpush1.msra.mxu0 0.0
    %1036 = vmatprep.subr.mxu0 0.0
    %1037 = vmatpush1.msra.mxu0 0.0
    %1038 = vmatprep.subr.mxu0 0.0
    %1039 = vmatpush1.msra.mxu0 0.0
    %1040 = vmatprep.subr.mxu0 0.0
    %1041 = vmatpush1.msra.mxu0 0.0
    %1042 = vmatprep.subr.mxu0 0.0
    %1043 = vmatpush1.msra.mxu0 0.0
    %1044 = vmatprep.subr.mxu0 0.0
    %1045 = vmatpush1.msra.mxu0 0.0
    %1046 = vmatprep.subr.mxu0 0.0
    %1047 = vmatpush1.msra.mxu0 0.0
    %1048 = vmatprep.subr.mxu0 0.0
    %1049 = vmatpush1.msra.mxu0 0.0
    %1050 = vmatprep.subr.mxu0 0.0
    %1051 = vmatpush1.msra.mxu0 0.0
    %1052 = vmatprep.subr.mxu0 0.0
    %1053 = vmatpush1.msra.mxu0 0.0
    %1054 = vmatprep.subr.mxu0 0.0
    %1055 = vmatpush1.msra.mxu0 0.0
    %1056 = vmatprep.subr.mxu0 0.0
    %1057 = vmatpush1.msra.mxu0 0.0
    %1058 = vmatprep.subr.mxu0 0.0
    %1059 = vmatpush1.msra.mxu0 0.0
    %1060 = vmatprep.subr.mxu0 0.0
    %1061 = vmatpush1.msra.mxu0 0.0
    %1062 = vmatprep.subr.mxu0 0.0
    %1063 = vmatpush1.msra.mxu0 0.0
    %1064 = vmatprep.subr.mxu0 0.0
    %1065 = vmatpush1.msra.mxu0 0.0
    %1066 = vmatprep.subr.mxu0 0.0
    %1067 = vmatpush1.msra.mxu0 0.0
    %1068 = vmatprep.subr.mxu0 0.0
    %1069 = vmatpush1.msra.mxu0 0.0
    %1070 = vmatprep.subr.mxu0 0.0
    %1071 = vmatpush1.msra.mxu0 0.0
    %1072 = vmatprep.subr.mxu0 0.0
    %1073 = vmatpush1.msra.mxu0 0.0
    %1074 = vmatprep.subr.mxu0 0.0
    %1075 = vmatpush1.msra.mxu0 0.0
    %1076 = vmatprep.subr.mxu0 0.0
    %1077 = vmatpush1.msra.mxu0 0.0
    %1078 = vmatprep.subr.mxu0 0.0
    %1079 = vmatpush1.msra.mxu0 0.0
    %1080 = vmatprep.subr.mxu0 0.0
    %1081 = vmatpush1.msra.mxu0 0.0
    %1082 = vmatprep.subr.mxu0 0.0
    %1083 = vmatpush1.msra.mxu0 0.0
    %1084 = vmatprep.subr.mxu0 0.0
    %1085 = vmatpush1.msra.mxu0 0.0
    %1086 = vmatprep.subr.mxu0 0.0
    %1087 = vmatpush1.msra.mxu0 0.0
    %1088 = vmatprep.subr.mxu0 0.0
    %1089 = vmatpush1.msra.mxu0 0.0
    %1090 = vmatprep.subr.mxu0 0.0
    %1091 = vmatpush1.msra.mxu0 0.0
    %1092 = vmatprep.subr.mxu0 0.0
    %1093 = vmatpush1.msra.mxu0 0.0
    %1094 = vmatprep.subr.mxu0 0.0
    %1095 = vmatpush1.msra.mxu0 0.0
    %1096 = vmatprep.mubr.f32.mxu0 0.0
    %1097 = vmatmul.mubr.f32.gmra.mrb[0].mxu0 %v1027
    %v1098 = vpop.f32.mrb[0].mxu0
    %v1099 = vadd.f32 0.0, %v1098
    %v1100 = vpop.f32.mrb[0].mxu0
    %1101 = vmatprep.mubr.f32.mxu0 0.0
    %1102 = vmatmul.mubr.f32.gmra.mrb[0].mxu0 %v1030
    %v1103 = vpop.f32.mrb[0].mxu0
    %v1104 = vadd.f32 0.0, %v1103
    %v1105 = vpop.f32.mrb[0].mxu0
    %1106 = vdwg.mxu0
    %v1108 = vsel %vm373, %v618, 0
    %v1111 = vsel %vm373, %v691, 0
    %1113 = vmatprep.subr.mxu0 0.0
    %1114 = vmatpush1.msra.mxu0 %v115
    %1115 = vmatprep.subr.mxu0 0.0
    %1116 = vmatpush1.msra.mxu0 0.0
    %1117 = vmatprep.subr.mxu0 0.0
    %1118 = vmatpush1.msra.mxu0 0.0
    %1119 = vmatprep.subr.mxu0 0.0
    %1120 = vmatpush1.msra.mxu0 0.0
    %1121 = vmatprep.subr.mxu0 0.0
    %1122 = vmatpush1.msra.mxu0 0.0
    %1123 = vmatprep.subr.mxu0 0.0
    %1124 = vmatpush1.msra.mxu0 0.0
    %1125 = vmatprep.subr.mxu0 0.0
    %1126 = vmatpush1.msra.mxu0 0.0
    %1127 = vmatprep.subr.mxu0 0.0
    %1128 = vmatpush1.msra.mxu0 0.0
    %1129 = vmatprep.subr.mxu0 0.0
    %1130 = vmatpush1.msra.mxu0 0.0
    %1131 = vmatprep.subr.mxu0 0.0
    %1132 = vmatpush1.msra.mxu0 0.0
    %1133 = vmatprep.subr.mxu0 0.0
    %1134 = vmatpush1.msra.mxu0 0.0
    %1135 = vmatprep.subr.mxu0 0.0
    %1136 = vmatpush1.msra.mxu0 0.0
    %1137 = vmatprep.subr.mxu0 0.0
    %1138 = vmatpush1.msra.mxu0 0.0
    %1139 = vmatprep.subr.mxu0 0.0
    %1140 = vmatpush1.msra.mxu0 0.0
    %1141 = vmatprep.subr.mxu0 0.0
    %1142 = vmatpush1.msra.mxu0 0.0
    %1143 = vmatprep.subr.mxu0 0.0
    %1144 = vmatpush1.msra.mxu0 0.0
    %1145 = vmatprep.subr.mxu0 0.0
    %1146 = vmatpush1.msra.mxu0 0.0
    %1147 = vmatprep.subr.mxu0 0.0
    %1148 = vmatpush1.msra.mxu0 0.0
    %1149 = vmatprep.subr.mxu0 0.0
    %1150 = vmatpush1.msra.mxu0 0.0
    %1151 = vmatprep.subr.mxu0 0.0
    %1152 = vmatpush1.msra.mxu0 0.0
    %1153 = vmatprep.subr.mxu0 0.0
    %1154 = vmatpush1.msra.mxu0 0.0
    %1155 = vmatprep.subr.mxu0 0.0
    %1156 = vmatpush1.msra.mxu0 0.0
    %1157 = vmatprep.subr.mxu0 0.0
    %1158 = vmatpush1.msra.mxu0 0.0
    %1159 = vmatprep.subr.mxu0 0.0
    %1160 = vmatpush1.msra.mxu0 0.0
    %1161 = vmatprep.subr.mxu0 0.0
    %1162 = vmatpush1.msra.mxu0 0.0
    %1163 = vmatprep.subr.mxu0 0.0
    %1164 = vmatpush1.msra.mxu0 0.0
    %1165 = vmatprep.subr.mxu0 0.0
    %1166 = vmatpush1.msra.mxu0 0.0
    %1167 = vmatprep.subr.mxu0 0.0
    %1168 = vmatpush1.msra.mxu0 0.0
    %1169 = vmatprep.subr.mxu0 0.0
    %1170 = vmatpush1.msra.mxu0 0.0
    %1171 = vmatprep.subr.mxu0 0.0
    %1172 = vmatpush1.msra.mxu0 0.0
    %1173 = vmatprep.subr.mxu0 0.0
    %1174 = vmatpush1.msra.mxu0 0.0
    %1175 = vmatprep.subr.mxu0 0.0
    %1176 = vmatpush1.msra.mxu0 0.0
    %1177 = vmatprep.mubr.f32.mxu0 0.0
    %1178 = vmatmul.mubr.f32.gmra.mrb[0].mxu0 %v1108
    %v1179 = vpop.f32.mrb[0].mxu0
    %v1180 = vadd.f32 %v1099, %v1179
    %v1181 = vpop.f32.mrb[0].mxu0
    %1182 = vmatprep.mubr.f32.mxu0 0.0
    %1183 = vmatmul.mubr.f32.gmra.mrb[0].mxu0 %v1111
    %v1184 = vpop.f32.mrb[0].mxu0
    %v1185 = vadd.f32 %v1104, %v1184
    %v1186 = vpop.f32.mrb[0].mxu0
    %1187 = vdwg.mxu0
    %1188 = vrot.lane.b32.xlu0 %v203, 112
    %v1189 = vpop.permute.xlu0 %1188
    %1190 = vrot.lane.b32.xlu0 %v284, 112
    %v1191 = vpop.permute.xlu0 %1190
    %v1192 = vsel %vm373, %v1189, 0
    %v1194 = vsel %vm373, %v1191, 0
    %1196 = vmatprep.subr.mxu0 0.0
    %1197 = vmatpush1.xpose.msra.mxu0 %v1194
    %1198 = vmatprep.subr.mxu0 0.0
    %1199 = vmatpush1.xpose.msra.mxu0 0.0
    %1200 = vmatprep.subr.mxu0 0.0
    %1201 = vmatpush1.xpose.msra.mxu0 0.0
    %1202 = vmatprep.subr.mxu0 0.0
    %1203 = vmatpush1.xpose.msra.mxu0 0.0
    %1204 = vmatprep.subr.mxu0 0.0
    %1205 = vmatpush1.xpose.msra.mxu0 0.0
    %1206 = vmatprep.subr.mxu0 0.0
    %1207 = vmatpush1.xpose.msra.mxu0 0.0
    %1208 = vmatprep.subr.mxu0 0.0
    %1209 = vmatpush1.xpose.msra.mxu0 0.0
    %1210 = vmatprep.subr.mxu0 0.0
    %1211 = vmatpush1.xpose.msra.mxu0 0.0
    %1212 = vmatprep.subr.mxu0 0.0
    %1213 = vmatpush1.xpose.msra.mxu0 0.0
    %1214 = vmatprep.subr.mxu0 0.0
    %1215 = vmatpush1.xpose.msra.mxu0 0.0
    %1216 = vmatprep.subr.mxu0 0.0
    %1217 = vmatpush1.xpose.msra.mxu0 0.0
    %1218 = vmatprep.subr.mxu0 0.0
    %1219 = vmatpush1.xpose.msra.mxu0 0.0
    %1220 = vmatprep.subr.mxu0 0.0
    %1221 = vmatpush1.xpose.msra.mxu0 0.0
    %1222 = vmatprep.subr.mxu0 0.0
    %1223 = vmatpush1.xpose.msra.mxu0 0.0
    %1224 = vmatprep.subr.mxu0 0.0
    %1225 = vmatpush1.xpose.msra.mxu0 0.0
    %1226 = vmatprep.subr.mxu0 0.0
    %1227 = vmatpush1.xpose.msra.mxu0 0.0
    %1228 = vmatprep.subr.mxu0 0.0
    %1229 = vmatpush1.xpose.msra.mxu0 0.0
    %1230 = vmatprep.subr.mxu0 0.0
    %1231 = vmatpush1.xpose.msra.mxu0 0.0
    %1232 = vmatprep.subr.mxu0 0.0
    %1233 = vmatpush1.xpose.msra.mxu0 0.0
    %1234 = vmatprep.subr.mxu0 0.0
    %1235 = vmatpush1.xpose.msra.mxu0 0.0
    %1236 = vmatprep.subr.mxu0 0.0
    %1237 = vmatpush1.xpose.msra.mxu0 0.0
    %1238 = vmatprep.subr.mxu0 0.0
    %1239 = vmatpush1.xpose.msra.mxu0 0.0
    %1240 = vmatprep.subr.mxu0 0.0
    %1241 = vmatpush1.xpose.msra.mxu0 0.0
    %1242 = vmatprep.subr.mxu0 0.0
    %1243 = vmatpush1.xpose.msra.mxu0 0.0
    %1244 = vmatprep.subr.mxu0 0.0
    %1245 = vmatpush1.xpose.msra.mxu0 0.0
    %1246 = vmatprep.subr.mxu0 0.0
    %1247 = vmatpush1.xpose.msra.mxu0 0.0
    %1248 = vmatprep.subr.mxu0 0.0
    %1249 = vmatpush1.xpose.msra.mxu0 0.0
    %1250 = vmatprep.subr.mxu0 0.0
    %1251 = vmatpush1.xpose.msra.mxu0 0.0
    %1252 = vmatprep.subr.mxu0 0.0
    %1253 = vmatpush1.xpose.msra.mxu0 0.0
    %1254 = vmatprep.subr.mxu0 0.0
    %1255 = vmatpush1.xpose.msra.mxu0 0.0
    %1256 = vmatprep.subr.mxu0 0.0
    %1257 = vmatpush1.xpose.msra.mxu0 0.0
    %1258 = vmatprep.subr.mxu0 0.0
    %1259 = vmatpush1.xpose.msra.mxu0 0.0
    %1260 = vmatprep.mubr.f32.mxu0 0.0
    %1261 = vmatmul.mubr.f32.gmra.mrb[0].mxu0 %v1192
    %v1262 = vpop.f32.mrb[0].mxu0
    %v1263 = vadd.f32 0.0, %v1262
    %v1264 = vpop.f32.mrb[0].mxu0
    %1265 = vdwg.mxu0
    %1266 = vrot.lane.b32.xlu0 %v208, 112
    %v1267 = vpop.permute.xlu0 %1266
    %1268 = vrot.lane.b32.xlu0 %v289, 112
    %v1269 = vpop.permute.xlu0 %1268
    %v1270 = vsel %vm373, %v1267, 0
    %v1272 = vsel %vm373, %v1269, 0
    %1274 = vmatprep.subr.mxu0 0.0
    %1275 = vmatpush1.xpose.msra.mxu0 %v1272
    %1276 = vmatprep.subr.mxu0 0.0
    %1277 = vmatpush1.xpose.msra.mxu0 0.0
    %1278 = vmatprep.subr.mxu0 0.0
    %1279 = vmatpush1.xpose.msra.mxu0 0.0
    %1280 = vmatprep.subr.mxu0 0.0
    %1281 = vmatpush1.xpose.msra.mxu0 0.0
    %1282 = vmatprep.subr.mxu0 0.0
    %1283 = vmatpush1.xpose.msra.mxu0 0.0
    %1284 = vmatprep.subr.mxu0 0.0
    %1285 = vmatpush1.xpose.msra.mxu0 0.0
    %1286 = vmatprep.subr.mxu0 0.0
    %1287 = vmatpush1.xpose.msra.mxu0 0.0
    %1288 = vmatprep.subr.mxu0 0.0
    %1289 = vmatpush1.xpose.msra.mxu0 0.0
    %1290 = vmatprep.subr.mxu0 0.0
    %1291 = vmatpush1.xpose.msra.mxu0 0.0
    %1292 = vmatprep.subr.mxu0 0.0
    %1293 = vmatpush1.xpose.msra.mxu0 0.0
    %1294 = vmatprep.subr.mxu0 0.0
    %1295 = vmatpush1.xpose.msra.mxu0 0.0
    %1296 = vmatprep.subr.mxu0 0.0
    %1297 = vmatpush1.xpose.msra.mxu0 0.0
    %1298 = vmatprep.subr.mxu0 0.0
    %1299 = vmatpush1.xpose.msra.mxu0 0.0
    %1300 = vmatprep.subr.mxu0 0.0
    %1301 = vmatpush1.xpose.msra.mxu0 0.0
    %1302 = vmatprep.subr.mxu0 0.0
    %1303 = vmatpush1.xpose.msra.mxu0 0.0
    %1304 = vmatprep.subr.mxu0 0.0
    %1305 = vmatpush1.xpose.msra.mxu0 0.0
    %1306 = vmatprep.subr.mxu0 0.0
    %1307 = vmatpush1.xpose.msra.mxu0 0.0
    %1308 = vmatprep.subr.mxu0 0.0
    %1309 = vmatpush1.xpose.msra.mxu0 0.0
    %1310 = vmatprep.subr.mxu0 0.0
    %1311 = vmatpush1.xpose.msra.mxu0 0.0
    %1312 = vmatprep.subr.mxu0 0.0
    %1313 = vmatpush1.xpose.msra.mxu0 0.0
    %1314 = vmatprep.subr.mxu0 0.0
    %1315 = vmatpush1.xpose.msra.mxu0 0.0
    %1316 = vmatprep.subr.mxu0 0.0
    %1317 = vmatpush1.xpose.msra.mxu0 0.0
    %1318 = vmatprep.subr.mxu0 0.0
    %1319 = vmatpush1.xpose.msra.mxu0 0.0
    %1320 = vmatprep.subr.mxu0 0.0
    %1321 = vmatpush1.xpose.msra.mxu0 0.0
    %1322 = vmatprep.subr.mxu0 0.0
    %1323 = vmatpush1.xpose.msra.mxu0 0.0
    %1324 = vmatprep.subr.mxu0 0.0
    %1325 = vmatpush1.xpose.msra.mxu0 0.0
    %1326 = vmatprep.subr.mxu0 0.0
    %1327 = vmatpush1.xpose.msra.mxu0 0.0
    %1328 = vmatprep.subr.mxu0 0.0
    %1329 = vmatpush1.xpose.msra.mxu0 0.0
    %1330 = vmatprep.subr.mxu0 0.0
    %1331 = vmatpush1.xpose.msra.mxu0 0.0
    %1332 = vmatprep.subr.mxu0 0.0
    %1333 = vmatpush1.xpose.msra.mxu0 0.0
    %1334 = vmatprep.subr.mxu0 0.0
    %1335 = vmatpush1.xpose.msra.mxu0 0.0
    %1336 = vmatprep.subr.mxu0 0.0
    %1337 = vmatpush1.xpose.msra.mxu0 0.0
    %1338 = vmatprep.mubr.f32.mxu0 0.0
    %1339 = vmatmul.mubr.f32.gmra.mrb[0].mxu0 %v1270
    %v1340 = vpop.f32.mrb[0].mxu0
    %v1341 = vadd.f32 0.0, %v1340
    %v1342 = vpop.f32.mrb[0].mxu0
    %1343 = vdwg.mxu0
    %v1344 = vsel %vm373, %v1263, -inf
    %1345 = vmax.xlane.f32.xlu0 %v1344
    %v1346 = vpop.xlane.xlu0 %1345
    %v1347 = vsel %vm373, %v1341, -inf
    %1348 = vmax.xlane.f32.xlu0 %v1347
    %v1349 = vpop.xlane.xlu0 %1348
    %v1350 = vsub.f32 %v1263, %v1346
    %v1351 = vsub.f32 %v1341, %v1349
    %v1352 = vmul.f32 %v1350, 1.442695
    %v1353 = vpow.pop %v1352
    %v1354 = vmul.f32 %v1351, 1.442695
    %v1355 = vpow.pop %v1354
    %v1356 = vsel %vm373, %v1353, 0.0
    %1357 = vadd.xlane.f32.xlu0 %v1356
    %v1358 = vpop.xlane.xlu0 %1357
    %v1359 = vsel %vm373, %v1355, 0.0
    %1360 = vadd.xlane.f32.xlu0 %v1359
    %v1361 = vpop.xlane.xlu0 %1360
    %v1362 = vrcp.pop %v1358
    %v1363 = vrcp.pop %v1361
    %v1364 = vmul.f32 %v1353, %v1362
    %v1365 = vmul.f32 %v1355, %v1363
    %1366 = vrot.lane.b32.xlu0 %v365, 112
    %v1367 = vpop.permute.xlu0 %1366
    %v1370 = vsel %vm373, %v1364, 0
    %1372 = vmatprep.subr.mxu0 0.0
    %1373 = vmatpush1.msra.mxu0 %v1367
    %1374 = vmatprep.subr.mxu0 0.0
    %1375 = vmatpush1.msra.mxu0 0.0
    %1376 = vmatprep.subr.mxu0 0.0
    %1377 = vmatpush1.msra.mxu0 0.0
    %1378 = vmatprep.subr.mxu0 0.0
    %1379 = vmatpush1.msra.mxu0 0.0
    %1380 = vmatprep.subr.mxu0 0.0
    %1381 = vmatpush1.msra.mxu0 0.0
    %1382 = vmatprep.subr.mxu0 0.0
    %1383 = vmatpush1.msra.mxu0 0.0
    %1384 = vmatprep.subr.mxu0 0.0
    %1385 = vmatpush1.msra.mxu0 0.0
    %1386 = vmatprep.subr.mxu0 0.0
    %1387 = vmatpush1.msra.mxu0 0.0
    %1388 = vmatprep.subr.mxu0 0.0
    %1389 = vmatpush1.msra.mxu0 0.0
    %1390 = vmatprep.subr.mxu0 0.0
    %1391 = vmatpush1.msra.mxu0 0.0
    %1392 = vmatprep.subr.mxu0 0.0
    %1393 = vmatpush1.msra.mxu0 0.0
    %1394 = vmatprep.subr.mxu0 0.0
    %1395 = vmatpush1.msra.mxu0 0.0
    %1396 = vmatprep.subr.mxu0 0.0
    %1397 = vmatpush1.msra.mxu0 0.0
    %1398 = vmatprep.subr.mxu0 0.0
    %1399 = vmatpush1.msra.mxu0 0.0
    %1400 = vmatprep.subr.mxu0 0.0
    %1401 = vmatpush1.msra.mxu0 0.0
    %1402 = vmatprep.subr.mxu0 0.0
    %1403 = vmatpush1.msra.mxu0 0.0
    %1404 = vmatprep.subr.mxu0 0.0
    %1405 = vmatpush1.msra.mxu0 0.0
    %1406 = vmatprep.subr.mxu0 0.0
    %1407 = vmatpush1.msra.mxu0 0.0
    %1408 = vmatprep.subr.mxu0 0.0
    %1409 = vmatpush1.msra.mxu0 0.0
    %1410 = vmatprep.subr.mxu0 0.0
    %1411 = vmatpush1.msra.mxu0 0.0
    %1412 = vmatprep.subr.mxu0 0.0
    %1413 = vmatpush1.msra.mxu0 0.0
    %1414 = vmatprep.subr.mxu0 0.0
    %1415 = vmatpush1.msra.mxu0 0.0
    %1416 = vmatprep.subr.mxu0 0.0
    %1417 = vmatpush1.msra.mxu0 0.0
    %1418 = vmatprep.subr.mxu0 0.0
    %1419 = vmatpush1.msra.mxu0 0.0
    %1420 = vmatprep.subr.mxu0 0.0
    %1421 = vmatpush1.msra.mxu0 0.0
    %1422 = vmatprep.subr.mxu0 0.0
    %1423 = vmatpush1.msra.mxu0 0.0
    %1424 = vmatprep.subr.mxu0 0.0
    %1425 = vmatpush1.msra.mxu0 0.0
    %1426 = vmatprep.subr.mxu0 0.0
    %1427 = vmatpush1.msra.mxu0 0.0
    %1428 = vmatprep.subr.mxu0 0.0
    %1429 = vmatpush1.msra.mxu0 0.0
    %1430 = vmatprep.subr.mxu0 0.0
    %1431 = vmatpush1.msra.mxu0 0.0
    %1432 = vmatprep.subr.mxu0 0.0
    %1433 = vmatpush1.msra.mxu0 0.0
    %1434 = vmatprep.subr.mxu0 0.0
    %1435 = vmatpush1.msra.mxu0 0.0
    %1436 = vmatprep.mubr.f32.mxu0 0.0
    %1437 = vmatmul.mubr.f32.gmra.mrb[0].mxu0 %v1370
    %v1438 = vpop.f32.mrb[0].mxu0
    %v1439 = vadd.f32 0.0, %v1438
    %v1440 = vpop.f32.mrb[0].mxu0
    %1441 = vdwg.mxu0
    %1442 = vrot.lane.b32.xlu0 %v370, 112
    %v1443 = vpop.permute.xlu0 %1442
    %v1446 = vsel %vm373, %v1365, 0
    %1448 = vmatprep.subr.mxu0 0.0
    %1449 = vmatpush1.msra.mxu0 %v1443
    %1450 = vmatprep.subr.mxu0 0.0
    %1451 = vmatpush1.msra.mxu0 0.0
    %1452 = vmatprep.subr.mxu0 0.0
    %1453 = vmatpush1.msra.mxu0 0.0
    %1454 = vmatprep.subr.mxu0 0.0
    %1455 = vmatpush1.msra.mxu0 0.0
    %1456 = vmatprep.subr.mxu0 0.0
    %1457 = vmatpush1.msra.mxu0 0.0
    %1458 = vmatprep.subr.mxu0 0.0
    %1459 = vmatpush1.msra.mxu0 0.0
    %1460 = vmatprep.subr.mxu0 0.0
    %1461 = vmatpush1.msra.mxu0 0.0
    %1462 = vmatprep.subr.mxu0 0.0
    %1463 = vmatpush1.msra.mxu0 0.0
    %1464 = vmatprep.subr.mxu0 0.0
    %1465 = vmatpush1.msra.mxu0 0.0
    %1466 = vmatprep.subr.mxu0 0.0
    %1467 = vmatpush1.msra.mxu0 0.0
    %1468 = vmatprep.subr.mxu0 0.0
    %1469 = vmatpush1.msra.mxu0 0.0
    %1470 = vmatprep.subr.mxu0 0.0
    %1471 = vmatpush1.msra.mxu0 0.0
    %1472 = vmatprep.subr.mxu0 0.0
    %1473 = vmatpush1.msra.mxu0 0.0
    %1474 = vmatprep.subr.mxu0 0.0
    %1475 = vmatpush1.msra.mxu0 0.0
    %1476 = vmatprep.subr.mxu0 0.0
    %1477 = vmatpush1.msra.mxu0 0.0
    %1478 = vmatprep.subr.mxu0 0.0
    %1479 = vmatpush1.msra.mxu0 0.0
    %1480 = vmatprep.subr.mxu0 0.0
    %1481 = vmatpush1.msra.mxu0 0.0
    %1482 = vmatprep.subr.mxu0 0.0
    %1483 = vmatpush1.msra.mxu0 0.0
    %1484 = vmatprep.subr.mxu0 0.0
    %1485 = vmatpush1.msra.mxu0 0.0
    %1486 = vmatprep.subr.mxu0 0.0
    %1487 = vmatpush1.msra.mxu0 0.0
    %1488 = vmatprep.subr.mxu0 0.0
    %1489 = vmatpush1.msra.mxu0 0.0
    %1490 = vmatprep.subr.mxu0 0.0
    %1491 = vmatpush1.msra.mxu0 0.0
    %1492 = vmatprep.subr.mxu0 0.0
    %1493 = vmatpush1.msra.mxu0 0.0
    %1494 = vmatprep.subr.mxu0 0.0
    %1495 = vmatpush1.msra.mxu0 0.0
    %1496 = vmatprep.subr.mxu0 0.0
    %1497 = vmatpush1.msra.mxu0 0.0
    %1498 = vmatprep.subr.mxu0 0.0
    %1499 = vmatpush1.msra.mxu0 0.0
    %1500 = vmatprep.subr.mxu0 0.0
    %1501 = vmatpush1.msra.mxu0 0.0
    %1502 = vmatprep.subr.mxu0 0.0
    %1503 = vmatpush1.msra.mxu0 0.0
    %1504 = vmatprep.subr.mxu0 0.0
    %1505 = vmatpush1.msra.mxu0 0.0
    %1506 = vmatprep.subr.mxu0 0.0
    %1507 = vmatpush1.msra.mxu0 0.0
    %1508 = vmatprep.subr.mxu0 0.0
    %1509 = vmatpush1.msra.mxu0 0.0
    %1510 = vmatprep.subr.mxu0 0.0
    %1511 = vmatpush1.msra.mxu0 0.0
    %1512 = vmatprep.mubr.f32.mxu0 0.0
    %1513 = vmatmul.mubr.f32.gmra.mrb[0].mxu0 %v1446
    %v1514 = vpop.f32.mrb[0].mxu0
    %v1515 = vadd.f32 0.0, %v1514
    %v1516 = vpop.f32.mrb[0].mxu0
    %1517 = vdwg.mxu0
    %v1519 = vsel %vm373, %v1439, 0
    %v1522 = vsel %vm373, %v1515, 0
    %1524 = vmatprep.subr.mxu0 0.0
    %1525 = vmatpush1.msra.mxu0 %v117
    %1526 = vmatprep.subr.mxu0 0.0
    %1527 = vmatpush1.msra.mxu0 0.0
    %1528 = vmatprep.subr.mxu0 0.0
    %1529 = vmatpush1.msra.mxu0 0.0
    %1530 = vmatprep.subr.mxu0 0.0
    %1531 = vmatpush1.msra.mxu0 0.0
    %1532 = vmatprep.subr.mxu0 0.0
    %1533 = vmatpush1.msra.mxu0 0.0
    %1534 = vmatprep.subr.mxu0 0.0
    %1535 = vmatpush1.msra.mxu0 0.0
    %1536 = vmatprep.subr.mxu0 0.0
    %1537 = vmatpush1.msra.mxu0 0.0
    %1538 = vmatprep.subr.mxu0 0.0
    %1539 = vmatpush1.msra.mxu0 0.0
    %1540 = vmatprep.subr.mxu0 0.0
    %1541 = vmatpush1.msra.mxu0 0.0
    %1542 = vmatprep.subr.mxu0 0.0
    %1543 = vmatpush1.msra.mxu0 0.0
    %1544 = vmatprep.subr.mxu0 0.0
    %1545 = vmatpush1.msra.mxu0 0.0
    %1546 = vmatprep.subr.mxu0 0.0
    %1547 = vmatpush1.msra.mxu0 0.0
    %1548 = vmatprep.subr.mxu0 0.0
    %1549 = vmatpush1.msra.mxu0 0.0
    %1550 = vmatprep.subr.mxu0 0.0
    %1551 = vmatpush1.msra.mxu0 0.0
    %1552 = vmatprep.subr.mxu0 0.0
    %1553 = vmatpush1.msra.mxu0 0.0
    %1554 = vmatprep.subr.mxu0 0.0
    %1555 = vmatpush1.msra.mxu0 0.0
    %1556 = vmatprep.subr.mxu0 0.0
    %1557 = vmatpush1.msra.mxu0 0.0
    %1558 = vmatprep.subr.mxu0 0.0
    %1559 = vmatpush1.msra.mxu0 0.0
    %1560 = vmatprep.subr.mxu0 0.0
    %1561 = vmatpush1.msra.mxu0 0.0
    %1562 = vmatprep.subr.mxu0 0.0
    %1563 = vmatpush1.msra.mxu0 0.0
    %1564 = vmatprep.subr.mxu0 0.0
    %1565 = vmatpush1.msra.mxu0 0.0
    %1566 = vmatprep.subr.mxu0 0.0
    %1567 = vmatpush1.msra.mxu0 0.0
    %1568 = vmatprep.subr.mxu0 0.0
    %1569 = vmatpush1.msra.mxu0 0.0
    %1570 = vmatprep.subr.mxu0 0.0
    %1571 = vmatpush1.msra.mxu0 0.0
    %1572 = vmatprep.subr.mxu0 0.0
    %1573 = vmatpush1.msra.mxu0 0.0
    %1574 = vmatprep.subr.mxu0 0.0
    %1575 = vmatpush1.msra.mxu0 0.0
    %1576 = vmatprep.subr.mxu0 0.0
    %1577 = vmatpush1.msra.mxu0 0.0
    %1578 = vmatprep.subr.mxu0 0.0
    %1579 = vmatpush1.msra.mxu0 0.0
    %1580 = vmatprep.subr.mxu0 0.0
    %1581 = vmatpush1.msra.mxu0 0.0
    %1582 = vmatprep.subr.mxu0 0.0
    %1583 = vmatpush1.msra.mxu0 0.0
    %1584 = vmatprep.subr.mxu0 0.0
    %1585 = vmatpush1.msra.mxu0 0.0
    %1586 = vmatprep.subr.mxu0 0.0
    %1587 = vmatpush1.msra.mxu0 0.0
    %1588 = vmatprep.mubr.f32.mxu0 0.0
    %1589 = vmatmul.mubr.f32.gmra.mrb[0].mxu0 %v1519
    %v1590 = vpop.f32.mrb[0].mxu0
    %v1591 = vadd.f32 0.0, %v1590
    %v1592 = vpop.f32.mrb[0].mxu0
    %1593 = vmatprep.mubr.f32.mxu0 0.0
    %1594 = vmatmul.mubr.f32.gmra.mrb[0].mxu0 %v1522
    %v1595 = vpop.f32.mrb[0].mxu0
    %v1596 = vadd.f32 0.0, %v1595
    %v1597 = vpop.f32.mrb[0].mxu0
    %1598 = vdwg.mxu0
    %v1599 = vadd.f32 %v1180, %v1591
    %v1600 = vadd.f32 %v1185, %v1596
    %1601 = vrot.lane.b32.xlu0 %v203, 104
    %v1602 = vpop.permute.xlu0 %1601
    %1603 = vrot.lane.b32.xlu0 %v284, 104
    %v1604 = vpop.permute.xlu0 %1603
    %v1605 = vsel %vm373, %v1602, 0
    %v1607 = vsel %vm373, %v1604, 0
    %1609 = vmatprep.subr.mxu0 0.0
    %1610 = vmatpush1.xpose.msra.mxu0 %v1607
    %1611 = vmatprep.subr.mxu0 0.0
    %1612 = vmatpush1.xpose.msra.mxu0 0.0
    %1613 = vmatprep.subr.mxu0 0.0
    %1614 = vmatpush1.xpose.msra.mxu0 0.0
    %1615 = vmatprep.subr.mxu0 0.0
    %1616 = vmatpush1.xpose.msra.mxu0 0.0
    %1617 = vmatprep.subr.mxu0 0.0
    %1618 = vmatpush1.xpose.msra.mxu0 0.0
    %1619 = vmatprep.subr.mxu0 0.0
    %1620 = vmatpush1.xpose.msra.mxu0 0.0
    %1621 = vmatprep.subr.mxu0 0.0
    %1622 = vmatpush1.xpose.msra.mxu0 0.0
    %1623 = vmatprep.subr.mxu0 0.0
    %1624 = vmatpush1.xpose.msra.mxu0 0.0
    %1625 = vmatprep.subr.mxu0 0.0
    %1626 = vmatpush1.xpose.msra.mxu0 0.0
    %1627 = vmatprep.subr.mxu0 0.0
    %1628 = vmatpush1.xpose.msra.mxu0 0.0
    %1629 = vmatprep.subr.mxu0 0.0
    %1630 = vmatpush1.xpose.msra.mxu0 0.0
    %1631 = vmatprep.subr.mxu0 0.0
    %1632 = vmatpush1.xpose.msra.mxu0 0.0
    %1633 = vmatprep.subr.mxu0 0.0
    %1634 = vmatpush1.xpose.msra.mxu0 0.0
    %1635 = vmatprep.subr.mxu0 0.0
    %1636 = vmatpush1.xpose.msra.mxu0 0.0
    %1637 = vmatprep.subr.mxu0 0.0
    %1638 = vmatpush1.xpose.msra.mxu0 0.0
    %1639 = vmatprep.subr.mxu0 0.0
    %1640 = vmatpush1.xpose.msra.mxu0 0.0
    %1641 = vmatprep.subr.mxu0 0.0
    %1642 = vmatpush1.xpose.msra.mxu0 0.0
    %1643 = vmatprep.subr.mxu0 0.0
    %1644 = vmatpush1.xpose.msra.mxu0 0.0
    %1645 = vmatprep.subr.mxu0 0.0
    %1646 = vmatpush1.xpose.msra.mxu0 0.0
    %1647 = vmatprep.subr.mxu0 0.0
    %1648 = vmatpush1.xpose.msra.mxu0 0.0
    %1649 = vmatprep.subr.mxu0 0.0
    %1650 = vmatpush1.xpose.msra.mxu0 0.0
    %1651 = vmatprep.subr.mxu0 0.0
    %1652 = vmatpush1.xpose.msra.mxu0 0.0
    %1653 = vmatprep.subr.mxu0 0.0
    %1654 = vmatpush1.xpose.msra.mxu0 0.0
    %1655 = vmatprep.subr.mxu0 0.0
    %1656 = vmatpush1.xpose.msra.mxu0 0.0
    %1657 = vmatprep.subr.mxu0 0.0
    %1658 = vmatpush1.xpose.msra.mxu0 0.0
    %1659 = vmatprep.subr.mxu0 0.0
    %1660 = vmatpush1.xpose.msra.mxu0 0.0
    %1661 = vmatprep.subr.mxu0 0.0
    %1662 = vmatpush1.xpose.msra.mxu0 0.0
    %1663 = vmatprep.subr.mxu0 0.0
    %1664 = vmatpush1.xpose.msra.mxu0 0.0
    %1665 = vmatprep.subr.mxu0 0.0
    %1666 = vmatpush1.xpose.msra.mxu0 0.0
    %1667 = vmatprep.subr.mxu0 0.0
    %1668 = vmatpush1.xpose.msra.mxu0 0.0
    %1669 = vmatprep.subr.mxu0 0.0
    %1670 = vmatpush1.xpose.msra.mxu0 0.0
    %1671 = vmatprep.subr.mxu0 0.0
    %1672 = vmatpush1.xpose.msra.mxu0 0.0
    %1673 = vmatprep.mubr.f32.mxu0 0.0
    %1674 = vmatmul.mubr.f32.gmra.mrb[0].mxu0 %v1605
    %v1675 = vpop.f32.mrb[0].mxu0
    %v1676 = vadd.f32 0.0, %v1675
    %v1677 = vpop.f32.mrb[0].mxu0
    %1678 = vdwg.mxu0
    %1679 = vrot.lane.b32.xlu0 %v208, 104
    %v1680 = vpop.permute.xlu0 %1679
    %1681 = vrot.lane.b32.xlu0 %v289, 104
    %v1682 = vpop.permute.xlu0 %1681
    %v1683 = vsel %vm373, %v1680, 0
    %v1685 = vsel %vm373, %v1682, 0
    %1687 = vmatprep.subr.mxu0 0.0
    %1688 = vmatpush1.xpose.msra.mxu0 %v1685
    %1689 = vmatprep.subr.mxu0 0.0
    %1690 = vmatpush1.xpose.msra.mxu0 0.0
    %1691 = vmatprep.subr.mxu0 0.0
    %1692 = vmatpush1.xpose.msra.mxu0 0.0
    %1693 = vmatprep.subr.mxu0 0.0
    %1694 = vmatpush1.xpose.msra.mxu0 0.0
    %1695 = vmatprep.subr.mxu0 0.0
    %1696 = vmatpush1.xpose.msra.mxu0 0.0
    %1697 = vmatprep.subr.mxu0 0.0
    %1698 = vmatpush1.xpose.msra.mxu0 0.0
    %1699 = vmatprep.subr.mxu0 0.0
    %1700 = vmatpush1.xpose.msra.mxu0 0.0
    %1701 = vmatprep.subr.mxu0 0.0
    %1702 = vmatpush1.xpose.msra.mxu0 0.0
    %1703 = vmatprep.subr.mxu0 0.0
    %1704 = vmatpush1.xpose.msra.mxu0 0.0
    %1705 = vmatprep.subr.mxu0 0.0
    %1706 = vmatpush1.xpose.msra.mxu0 0.0
    %1707 = vmatprep.subr.mxu0 0.0
    %1708 = vmatpush1.xpose.msra.mxu0 0.0
    %1709 = vmatprep.subr.mxu0 0.0
    %1710 = vmatpush1.xpose.msra.mxu0 0.0
    %1711 = vmatprep.subr.mxu0 0.0
    %1712 = vmatpush1.xpose.msra.mxu0 0.0
    %1713 = vmatprep.subr.mxu0 0.0
    %1714 = vmatpush1.xpose.msra.mxu0 0.0
    %1715 = vmatprep.subr.mxu0 0.0
    %1716 = vmatpush1.xpose.msra.mxu0 0.0
    %1717 = vmatprep.subr.mxu0 0.0
    %1718 = vmatpush1.xpose.msra.mxu0 0.0
    %1719 = vmatprep.subr.mxu0 0.0
    %1720 = vmatpush1.xpose.msra.mxu0 0.0
    %1721 = vmatprep.subr.mxu0 0.0
    %1722 = vmatpush1.xpose.msra.mxu0 0.0
    %1723 = vmatprep.subr.mxu0 0.0
    %1724 = vmatpush1.xpose.msra.mxu0 0.0
    %1725 = vmatprep.subr.mxu0 0.0
    %1726 = vmatpush1.xpose.msra.mxu0 0.0
    %1727 = vmatprep.subr.mxu0 0.0
    %1728 = vmatpush1.xpose.msra.mxu0 0.0
    %1729 = vmatprep.subr.mxu0 0.0
    %1730 = vmatpush1.xpose.msra.mxu0 0.0
    %1731 = vmatprep.subr.mxu0 0.0
    %1732 = vmatpush1.xpose.msra.mxu0 0.0
    %1733 = vmatprep.subr.mxu0 0.0
    %1734 = vmatpush1.xpose.msra.mxu0 0.0
    %1735 = vmatprep.subr.mxu0 0.0
    %1736 = vmatpush1.xpose.msra.mxu0 0.0
    %1737 = vmatprep.subr.mxu0 0.0
    %1738 = vmatpush1.xpose.msra.mxu0 0.0
    %1739 = vmatprep.subr.mxu0 0.0
    %1740 = vmatpush1.xpose.msra.mxu0 0.0
    %1741 = vmatprep.subr.mxu0 0.0
    %1742 = vmatpush1.xpose.msra.mxu0 0.0
    %1743 = vmatprep.subr.mxu0 0.0
    %1744 = vmatpush1.xpose.msra.mxu0 0.0
    %1745 = vmatprep.subr.mxu0 0.0
    %1746 = vmatpush1.xpose.msra.mxu0 0.0
    %1747 = vmatprep.subr.mxu0 0.0
    %1748 = vmatpush1.xpose.msra.mxu0 0.0
    %1749 = vmatprep.subr.mxu0 0.0
    %1750 = vmatpush1.xpose.msra.mxu0 0.0
    %1751 = vmatprep.mubr.f32.mxu0 0.0
    %1752 = vmatmul.mubr.f32.gmra.mrb[0].mxu0 %v1683
    %v1753 = vpop.f32.mrb[0].mxu0
    %v1754 = vadd.f32 0.0, %v1753
    %v1755 = vpop.f32.mrb[0].mxu0
    %1756 = vdwg.mxu0
    %v1757 = vsel %vm373, %v1676, -inf
    %1758 = vmax.xlane.f32.xlu0 %v1757
    %v1759 = vpop.xlane.xlu0 %1758
    %v1760 = vsel %vm373, %v1754, -inf
    %1761 = vmax.xlane.f32.xlu0 %v1760
    %v1762 = vpop.xlane.xlu0 %1761
    %v1763 = vsub.f32 %v1676, %v1759
    %v1764 = vsub.f32 %v1754, %v1762
    %v1765 = vmul.f32 %v1763, 1.442695
    %v1766 = vpow.pop %v1765
    %v1767 = vmul.f32 %v1764, 1.442695
    %v1768 = vpow.pop %v1767
    %v1769 = vsel %vm373, %v1766, 0.0
    %1770 = vadd.xlane.f32.xlu0 %v1769
    %v1771 = vpop.xlane.xlu0 %1770
    %v1772 = vsel %vm373, %v1768, 0.0
    %1773 = vadd.xlane.f32.xlu0 %v1772
    %v1774 = vpop.xlane.xlu0 %1773
    %v1775 = vrcp.pop %v1771
    %v1776 = vrcp.pop %v1774
    %v1777 = vmul.f32 %v1766, %v1775
    %v1778 = vmul.f32 %v1768, %v1776
    %1779 = vrot.lane.b32.xlu0 %v365, 104
    %v1780 = vpop.permute.xlu0 %1779
    %v1783 = vsel %vm373, %v1777, 0
    %1785 = vmatprep.subr.mxu0 0.0
    %1786 = vmatpush1.msra.mxu0 %v1780
    %1787 = vmatprep.subr.mxu0 0.0
    %1788 = vmatpush1.msra.mxu0 0.0
    %1789 = vmatprep.subr.mxu0 0.0
    %1790 = vmatpush1.msra.mxu0 0.0
    %1791 = vmatprep.subr.mxu0 0.0
    %1792 = vmatpush1.msra.mxu0 0.0
    %1793 = vmatprep.subr.mxu0 0.0
    %1794 = vmatpush1.msra.mxu0 0.0
    %1795 = vmatprep.subr.mxu0 0.0
    %1796 = vmatpush1.msra.mxu0 0.0
    %1797 = vmatprep.subr.mxu0 0.0
    %1798 = vmatpush1.msra.mxu0 0.0
    %1799 = vmatprep.subr.mxu0 0.0
    %1800 = vmatpush1.msra.mxu0 0.0
    %1801 = vmatprep.subr.mxu0 0.0
    %1802 = vmatpush1.msra.mxu0 0.0
    %1803 = vmatprep.subr.mxu0 0.0
    %1804 = vmatpush1.msra.mxu0 0.0
    %1805 = vmatprep.subr.mxu0 0.0
    %1806 = vmatpush1.msra.mxu0 0.0
    %1807 = vmatprep.subr.mxu0 0.0
    %1808 = vmatpush1.msra.mxu0 0.0
    %1809 = vmatprep.subr.mxu0 0.0
    %1810 = vmatpush1.msra.mxu0 0.0
    %1811 = vmatprep.subr.mxu0 0.0
    %1812 = vmatpush1.msra.mxu0 0.0
    %1813 = vmatprep.subr.mxu0 0.0
    %1814 = vmatpush1.msra.mxu0 0.0
    %1815 = vmatprep.subr.mxu0 0.0
    %1816 = vmatpush1.msra.mxu0 0.0
    %1817 = vmatprep.subr.mxu0 0.0
    %1818 = vmatpush1.msra.mxu0 0.0
    %1819 = vmatprep.subr.mxu0 0.0
    %1820 = vmatpush1.msra.mxu0 0.0
    %1821 = vmatprep.subr.mxu0 0.0
    %1822 = vmatpush1.msra.mxu0 0.0
    %1823 = vmatprep.subr.mxu0 0.0
    %1824 = vmatpush1.msra.mxu0 0.0
    %1825 = vmatprep.subr.mxu0 0.0
    %1826 = vmatpush1.msra.mxu0 0.0
    %1827 = vmatprep.subr.mxu0 0.0
    %1828 = vmatpush1.msra.mxu0 0.0
    %1829 = vmatprep.subr.mxu0 0.0
    %1830 = vmatpush1.msra.mxu0 0.0
    %1831 = vmatprep.subr.mxu0 0.0
    %1832 = vmatpush1.msra.mxu0 0.0
    %1833 = vmatprep.subr.mxu0 0.0
    %1834 = vmatpush1.msra.mxu0 0.0
    %1835 = vmatprep.subr.mxu0 0.0
    %1836 = vmatpush1.msra.mxu0 0.0
    %1837 = vmatprep.subr.mxu0 0.0
    %1838 = vmatpush1.msra.mxu0 0.0
    %1839 = vmatprep.subr.mxu0 0.0
    %1840 = vmatpush1.msra.mxu0 0.0
    %1841 = vmatprep.subr.mxu0 0.0
    %1842 = vmatpush1.msra.mxu0 0.0
    %1843 = vmatprep.subr.mxu0 0.0
    %1844 = vmatpush1.msra.mxu0 0.0
    %1845 = vmatprep.subr.mxu0 0.0
    %1846 = vmatpush1.msra.mxu0 0.0
    %1847 = vmatprep.subr.mxu0 0.0
    %1848 = vmatpush1.msra.mxu0 0.0
    %1849 = vmatprep.mubr.f32.mxu0 0.0
    %1850 = vmatmul.mubr.f32.gmra.mrb[0].mxu0 %v1783
    %v1851 = vpop.f32.mrb[0].mxu0
    %v1852 = vadd.f32 0.0, %v1851
    %v1853 = vpop.f32.mrb[0].mxu0
    %1854 = vdwg.mxu0
    %1855 = vrot.lane.b32.xlu0 %v370, 104
    %v1856 = vpop.permute.xlu0 %1855
    %v1859 = vsel %vm373, %v1778, 0
    %1861 = vmatprep.subr.mxu0 0.0
    %1862 = vmatpush1.msra.mxu0 %v1856
    %1863 = vmatprep.subr.mxu0 0.0
    %1864 = vmatpush1.msra.mxu0 0.0
    %1865 = vmatprep.subr.mxu0 0.0
    %1866 = vmatpush1.msra.mxu0 0.0
    %1867 = vmatprep.subr.mxu0 0.0
    %1868 = vmatpush1.msra.mxu0 0.0
    %1869 = vmatprep.subr.mxu0 0.0
    %1870 = vmatpush1.msra.mxu0 0.0
    %1871 = vmatprep.subr.mxu0 0.0
    %1872 = vmatpush1.msra.mxu0 0.0
    %1873 = vmatprep.subr.mxu0 0.0
    %1874 = vmatpush1.msra.mxu0 0.0
    %1875 = vmatprep.subr.mxu0 0.0
    %1876 = vmatpush1.msra.mxu0 0.0
    %1877 = vmatprep.subr.mxu0 0.0
    %1878 = vmatpush1.msra.mxu0 0.0
    %1879 = vmatprep.subr.mxu0 0.0
    %1880 = vmatpush1.msra.mxu0 0.0
    %1881 = vmatprep.subr.mxu0 0.0
    %1882 = vmatpush1.msra.mxu0 0.0
    %1883 = vmatprep.subr.mxu0 0.0
    %1884 = vmatpush1.msra.mxu0 0.0
    %1885 = vmatprep.subr.mxu0 0.0
    %1886 = vmatpush1.msra.mxu0 0.0
    %1887 = vmatprep.subr.mxu0 0.0
    %1888 = vmatpush1.msra.mxu0 0.0
    %1889 = vmatprep.subr.mxu0 0.0
    %1890 = vmatpush1.msra.mxu0 0.0
    %1891 = vmatprep.subr.mxu0 0.0
    %1892 = vmatpush1.msra.mxu0 0.0
    %1893 = vmatprep.subr.mxu0 0.0
    %1894 = vmatpush1.msra.mxu0 0.0
    %1895 = vmatprep.subr.mxu0 0.0
    %1896 = vmatpush1.msra.mxu0 0.0
    %1897 = vmatprep.subr.mxu0 0.0
    %1898 = vmatpush1.msra.mxu0 0.0
    %1899 = vmatprep.subr.mxu0 0.0
    %1900 = vmatpush1.msra.mxu0 0.0
    %1901 = vmatprep.subr.mxu0 0.0
    %1902 = vmatpush1.msra.mxu0 0.0
    %1903 = vmatprep.subr.mxu0 0.0
    %1904 = vmatpush1.msra.mxu0 0.0
    %1905 = vmatprep.subr.mxu0 0.0
    %1906 = vmatpush1.msra.mxu0 0.0
    %1907 = vmatprep.subr.mxu0 0.0
    %1908 = vmatpush1.msra.mxu0 0.0
    %1909 = vmatprep.subr.mxu0 0.0
    %1910 = vmatpush1.msra.mxu0 0.0
    %1911 = vmatprep.subr.mxu0 0.0
    %1912 = vmatpush1.msra.mxu0 0.0
    %1913 = vmatprep.subr.mxu0 0.0
    %1914 = vmatpush1.msra.mxu0 0.0
    %1915 = vmatprep.subr.mxu0 0.0
    %1916 = vmatpush1.msra.mxu0 0.0
    %1917 = vmatprep.subr.mxu0 0.0
    %1918 = vmatpush1.msra.mxu0 0.0
    %1919 = vmatprep.subr.mxu0 0.0
    %1920 = vmatpush1.msra.mxu0 0.0
    %1921 = vmatprep.subr.mxu0 0.0
    %1922 = vmatpush1.msra.mxu0 0.0
    %1923 = vmatprep.subr.mxu0 0.0
    %1924 = vmatpush1.msra.mxu0 0.0
    %1925 = vmatprep.mubr.f32.mxu0 0.0
    %1926 = vmatmul.mubr.f32.gmra.mrb[0].mxu0 %v1859
    %v1927 = vpop.f32.mrb[0].mxu0
    %v1928 = vadd.f32 0.0, %v1927
    %v1929 = vpop.f32.mrb[0].mxu0
    %1930 = vdwg.mxu0
    %v1932 = vsel %vm373, %v1852, 0
    %v1935 = vsel %vm373, %v1928, 0
    %1937 = vmatprep.subr.mxu0 0.0
    %1938 = vmatpush1.msra.mxu0 %v118
    %1939 = vmatprep.subr.mxu0 0.0
    %1940 = vmatpush1.msra.mxu0 0.0
    %1941 = vmatprep.subr.mxu0 0.0
    %1942 = vmatpush1.msra.mxu0 0.0
    %1943 = vmatprep.subr.mxu0 0.0
    %1944 = vmatpush1.msra.mxu0 0.0
    %1945 = vmatprep.subr.mxu0 0.0
    %1946 = vmatpush1.msra.mxu0 0.0
    %1947 = vmatprep.subr.mxu0 0.0
    %1948 = vmatpush1.msra.mxu0 0.0
    %1949 = vmatprep.subr.mxu0 0.0
    %1950 = vmatpush1.msra.mxu0 0.0
    %1951 = vmatprep.subr.mxu0 0.0
    %1952 = vmatpush1.msra.mxu0 0.0
    %1953 = vmatprep.subr.mxu0 0.0
    %1954 = vmatpush1.msra.mxu0 0.0
    %1955 = vmatprep.subr.mxu0 0.0
    %1956 = vmatpush1.msra.mxu0 0.0
    %1957 = vmatprep.subr.mxu0 0.0
    %1958 = vmatpush1.msra.mxu0 0.0
    %1959 = vmatprep.subr.mxu0 0.0
    %1960 = vmatpush1.msra.mxu0 0.0
    %1961 = vmatprep.subr.mxu0 0.0
    %1962 = vmatpush1.msra.mxu0 0.0
    %1963 = vmatprep.subr.mxu0 0.0
    %1964 = vmatpush1.msra.mxu0 0.0
    %1965 = vmatprep.subr.mxu0 0.0
    %1966 = vmatpush1.msra.mxu0 0.0
    %1967 = vmatprep.subr.mxu0 0.0
    %1968 = vmatpush1.msra.mxu0 0.0
    %1969 = vmatprep.subr.mxu0 0.0
    %1970 = vmatpush1.msra.mxu0 0.0
    %1971 = vmatprep.subr.mxu0 0.0
    %1972 = vmatpush1.msra.mxu0 0.0
    %1973 = vmatprep.subr.mxu0 0.0
    %1974 = vmatpush1.msra.mxu0 0.0
    %1975 = vmatprep.subr.mxu0 0.0
    %1976 = vmatpush1.msra.mxu0 0.0
    %1977 = vmatprep.subr.mxu0 0.0
    %1978 = vmatpush1.msra.mxu0 0.0
    %1979 = vmatprep.subr.mxu0 0.0
    %1980 = vmatpush1.msra.mxu0 0.0
    %1981 = vmatprep.subr.mxu0 0.0
    %1982 = vmatpush1.msra.mxu0 0.0
    %1983 = vmatprep.subr.mxu0 0.0
    %1984 = vmatpush1.msra.mxu0 0.0
    %1985 = vmatprep.subr.mxu0 0.0
    %1986 = vmatpush1.msra.mxu0 0.0
    %1987 = vmatprep.subr.mxu0 0.0
    %1988 = vmatpush1.msra.mxu0 0.0
    %1989 = vmatprep.subr.mxu0 0.0
    %1990 = vmatpush1.msra.mxu0 0.0
    %1991 = vmatprep.subr.mxu0 0.0
    %1992 = vmatpush1.msra.mxu0 0.0
    %1993 = vmatprep.subr.mxu0 0.0
    %1994 = vmatpush1.msra.mxu0 0.0
    %1995 = vmatprep.subr.mxu0 0.0
    %1996 = vmatpush1.msra.mxu0 0.0
    %1997 = vmatprep.subr.mxu0 0.0
    %1998 = vmatpush1.msra.mxu0 0.0
    %1999 = vmatprep.subr.mxu0 0.0
    %2000 = vmatpush1.msra.mxu0 0.0
    %2001 = vmatprep.mubr.f32.mxu0 0.0
    %2002 = vmatmul.mubr.f32.gmra.mrb[0].mxu0 %v1932
    %v2003 = vpop.f32.mrb[0].mxu0
    %v2004 = vadd.f32 0.0, %v2003
    %v2005 = vpop.f32.mrb[0].mxu0
    %2006 = vmatprep.mubr.f32.mxu0 0.0
    %2007 = vmatmul.mubr.f32.gmra.mrb[0].mxu0 %v1935
    %v2008 = vpop.f32.mrb[0].mxu0
    %v2009 = vadd.f32 0.0, %v2008
    %v2010 = vpop.f32.mrb[0].mxu0
    %2011 = vdwg.mxu0
    %v2012 = vadd.f32 %v1599, %v2004
    %v2013 = vadd.f32 %v1600, %v2009
    %v2015 = vlaneseq
    %v2016 = vshrl.u32 %v2015, 7
    %v2017 = vsub.s32 0, %v2016
    %v2018 = vrot.slane %v122, %v2017
    %v2020 = vadd.f32 %v2012, %v2018
    %v2021 = vadd.f32 %v2013, %v2018
    %2022 = vst.msk [vmem:[#allocation11] sm:$0xff] %vm129, %v2020
    %2023 = vst.msk [vmem:[#allocation11 + $0x8] sm:$0xff] %vm129, %v2021
    // Predicated region
    $region58: #{tpu_custom_call.1} parent=1 // pred_check
      _
    $region59: #{tpu_custom_call.1} parent=1 // pred_check_branch
      %2025 = sbr.rel (0) target = $region61
    $region60: #{tpu_custom_call.1} parent=1 // pred_region
      %s2027 = ssub.s32 256, 256
      %2028 = vsyncadd [#allocation4], %s2027
      %s2029 = sshll.u32 [#allocation11], 4
      %s2030 = int_to_ptr.vmem [resolvable:$true] %s2029
      %2035 = dma.vmem_to_hbm [thread:$0]  %s2030, 256, %s9, [#allocation4], 128, 128, 8
    $region61: #{tpu_custom_call.1} parent=1 // pred_fallthru
      _
    // Predicated region
    $region62: #{tpu_custom_call.1} parent=1 // pred_check
      _
    $region63: #{tpu_custom_call.1} parent=1 // pred_check_branch
      %2037 = sbr.rel (0) target = $region65
    $region64: #{tpu_custom_call.1} parent=1 // pred_region
      %2038 = dma.done [#allocation4], 256
    $region65: #{tpu_custom_call.1} parent=1 // pred_fallthru
      _
    %2039 = vsyncpa [#allocation3], 1
    %2040 = vsyncpa [#allocation6], 1
    %2041 = vsyncpa [#allocation9], 1
    %2042 = vsyncpa [#allocation4], 1

</llo_original>
